<compile_context>
chip_gen: v7x
topology: tpu7x:2x2x1
jax: 0.10.0
libtpu: 0.0.40
codegen_flags: <defaults>
</compile_context>

<pallas_src>
import jax
import jax.numpy as jnp
from jax.experimental import pallas as pl
from jax.experimental.pallas import tpu as pltpu

IN_FEATURES = 3 * 40 * 40   # 4800
NUM_CLASSES = 10


def _round_up(n, m):
    return ((n + m - 1) // m) * m


def _mlp_kernel(x_ref, w1_ref, b1_ref, w2_ref, b2_ref, w3_ref, b3_ref, o_ref):
    # ---- fc1: cast the f32 x tile to bf16 in VMEM (no extra HBM pass), bf16
    #      MXU matmul with f32 accumulation, f32 bias add ----
    x_bf = x_ref[...].astype(jnp.bfloat16)
    h = jnp.dot(x_bf, w1_ref[...],
                preferred_element_type=jnp.float32) + b1_ref[...]
    # ---- sigmoid via tanh: one EUP op per element, inf-safe ----
    h = 0.5 * jnp.tanh(0.5 * h) + 0.5
    # ---- fc2: bf16 operands, f32 accumulation ----
    h = jnp.dot(h.astype(jnp.bfloat16), w2_ref[...],
                preferred_element_type=jnp.float32) + b2_ref[...]
    h = 0.5 * jnp.tanh(0.5 * h) + 0.5
    # ---- fc3: bf16 operands, f32 accumulation ----
    logits = jnp.dot(h.astype(jnp.bfloat16), w3_ref[...],
                     preferred_element_type=jnp.float32) + b3_ref[...]
    # ---- log_softmax over the (128-padded) class lane; padded logits sit at
    #      ~-1e30 so they never win the max and exp() underflows to 0 ----
    m = jnp.max(logits, axis=-1, keepdims=True)
    z = logits - m
    lse = jnp.log(jnp.sum(jnp.exp(z), axis=-1, keepdims=True))
    o_ref[...] = (z - lse).astype(o_ref.dtype)


def prepare_params(w1, b1, w2, b2, w3, b3):
    """One-time parameter prep (call at init/load time, NOT per forward).

    Transposes weights to (in, out), zero-pads hidden to a multiple of 128 and
    classes to 128 lanes, and casts all weights to bf16 (MXU operands).  Padded
    hidden lanes produce sigmoid(0)=0.5 activations, so the corresponding W2/W3
    rows are zero (jnp.pad zero-fills) and the math is unchanged.  Padded class
    biases are -1e30 so log_softmax is unaffected; the wrapper slices [:, :10].
    """
    hidden = w1.shape[0]
    hp = _round_up(hidden, 128)
    cp = _round_up(NUM_CLASSES, 128)   # lane-dense output (128)
    ph, pc = hp - hidden, cp - NUM_CLASSES

    w1_t = jnp.asarray(w1, jnp.float32).T   # (4800, H)
    w2_t = jnp.asarray(w2, jnp.float32).T   # (H, H)
    w3_t = jnp.asarray(w3, jnp.float32).T   # (H, 10)

    w1_p = jnp.pad(w1_t, ((0, 0), (0, ph))).astype(jnp.bfloat16)        # (4800, Hp) bf16
    b1_p = jnp.pad(jnp.asarray(b1, jnp.float32), (0, ph)).reshape(1, hp)
    w2_p = jnp.pad(w2_t, ((0, ph), (0, ph))).astype(jnp.bfloat16)       # (Hp, Hp)  bf16
    b2_p = jnp.pad(jnp.asarray(b2, jnp.float32), (0, ph)).reshape(1, hp)
    w3_p = jnp.pad(w3_t, ((0, ph), (0, pc))).astype(jnp.bfloat16)       # (Hp, Cp)  bf16
    b3_p = jnp.pad(jnp.asarray(b3, jnp.float32), (0, pc),
                   constant_values=-1e30).reshape(1, cp)
    return w1_p, b1_p, w2_p, b2_p, w3_p, b3_p


def three_layer_sigmoid_forward(x, params, *, block_b=512):
    """x: (B, 3, 40, 40) or (B, 4800).  params: output of prepare_params()."""
    w1_p, b1_p, w2_p, b2_p, w3_p, b3_p = params
    k_dim, hp = w1_p.shape
    cp = w3_p.shape[1]
    B = x.shape[0]

    # torch.flatten(x, 1); keep x in f32 — it is cast to bf16 inside the kernel
    # so it only crosses HBM once.
    x2d = x.reshape(B, IN_FEATURES)

    # Batch tile: multiple of 16, capped by block_b, and sized so there are at
    # least 2 tiles when the batch allows it (v7x shards the parallel axis
    # across its 2 TensorCores).
    bp16 = _round_up(B, 16)
    tb = min(block_b, max(16, _round_up(pl.cdiv(bp16, 2), 16)))
    bp = _round_up(B, tb)
    if bp != B:
        # TODO(synk): for very large ragged B, replace this full-copy pad with a
        # masked ragged last tile to avoid an extra HBM pass over x.
        x2d = jnp.pad(x2d, ((0, bp - B), (0, 0)))
    grid = (bp // tb,)

    def resident(shape):
        # Constant index map => fetched once; single-buffer to halve VMEM use.
        return pl.BlockSpec(shape, lambda i: (0,) * len(shape),
                            pipeline_mode=pl.Buffered(1))

    # VMEM budget (weights single-buffered, x/out double-buffered).
    xbytes = jnp.dtype(x2d.dtype).itemsize
    est_bytes = (2 * tb * k_dim * xbytes         # x tiles (double-buffered)
                 + k_dim * hp * 2 + hp * 4       # W1 bf16 + b1
                 + hp * hp * 2 + hp * 4          # W2 bf16 + b2
                 + hp * cp * 2 + cp * 4          # W3 bf16 + b3
                 + 2 * tb * cp * 4               # output tiles
                 + 4 * tb * hp * 4)              # activation headroom

    # Always set the scoped-VMEM limit (v5e defaults to ~16 MiB), but cap it
    # well below physical capacity so Mosaic keeps scratch headroom (v7x: 64 MiB
    # physical -> cap ~52 MiB).
    try:
        phys = pltpu.get_tpu_info().vmem_capacity_bytes
    except Exception:  # pragma: no cover - conservative fallback
        phys = 64 * 1024 * 1024
    cap = max(32 * 1024 * 1024, phys - 12 * 1024 * 1024)
    vmem_limit = int(min(max(est_bytes + (8 << 20), 32 << 20), cap))
    # TODO(synk): for hidden >~2048 on v7x (>~4096 on v5e/v6e) resident bf16
    # W1+W2 no longer fit; add a hidden/K grid axis with an f32 accumulator
    # (or emit_pipeline) instead of keeping the weights fully resident.

    out = pl.pallas_call(
        _mlp_kernel,
        out_shape=jax.ShapeDtypeStruct((bp, cp), jnp.float32),
        grid=grid,
        in_specs=[
            pl.BlockSpec((tb, k_dim), lambda i: (i, 0)),   # x tile (streams)
            resident((k_dim, hp)),                         # W1 (resident, bf16)
            resident((1, hp)),                             # b1
            resident((hp, hp)),                            # W2 (bf16)
            resident((1, hp)),                             # b2
            resident((hp, cp)),                            # W3 (bf16)
            resident((1, cp)),                             # b3
        ],
        out_specs=pl.BlockSpec((tb, cp), lambda i: (i, 0)),
        compiler_params=pltpu.CompilerParams(
            dimension_semantics=("parallel",),
            vmem_limit_bytes=vmem_limit),
    )(x2d, w1_p, b1_p, w2_p, b2_p, w3_p, b3_p)
    return out[:B, :NUM_CLASSES]


def init_params(key, hidden_size):
    """Deterministic init mimicking nn.Linear's U(-1/sqrt(fan_in), 1/sqrt(fan_in))."""
    ks = jax.random.split(key, 6)
    b1v = 1.0 / jnp.sqrt(IN_FEATURES)
    b2v = 1.0 / jnp.sqrt(hidden_size)
    w1 = jax.random.uniform(ks[0], (hidden_size, IN_FEATURES), jnp.float32, -b1v, b1v)
    b1 = jax.random.uniform(ks[1], (hidden_size,), jnp.float32, -b1v, b1v)
    w2 = jax.random.uniform(ks[2], (hidden_size, hidden_size), jnp.float32, -b2v, b2v)
    b2 = jax.random.uniform(ks[3], (hidden_size,), jnp.float32, -b2v, b2v)
    w3 = jax.random.uniform(ks[4], (NUM_CLASSES, hidden_size), jnp.float32, -b2v, b2v)
    b3 = jax.random.uniform(ks[5], (NUM_CLASSES,), jnp.float32, -b2v, b2v)
    return w1, b1, w2, b2, w3, b3


def _reference(x, w1, b1, w2, b2, w3, b3):
    """Pure-JAX f32 reference matching the PyTorch module."""
    x2d = x.reshape(x.shape[0], -1)
    h = jax.nn.sigmoid(x2d @ w1.T + b1)
    h = jax.nn.sigmoid(h @ w2.T + b2)
    logits = h @ w3.T + b3
    return jax.nn.log_softmax(logits, axis=1)


if __name__ == "__main__":
    key = jax.random.PRNGKey(0)
    kx, kp = jax.random.split(key)

    batch, hidden = 8, 32
    x = jax.random.normal(kx, (batch, 3, 40, 40), jnp.float32)
    raw = init_params(kp, hidden)

    params = prepare_params(*raw)          # one-time prep (transpose/pad/bf16 cast)
    out = three_layer_sigmoid_forward(x, params)
    out = jax.block_until_ready(out)

    ref = _reference(x, *raw)
    assert out.shape == (batch, NUM_CLASSES)
    # bf16 matmul operands (f32 accumulation) -> slightly loose tolerance.
    assert jnp.allclose(out, ref, atol=2e-2, rtol=2e-2), "mismatch vs JAX reference"

    print("KERNEL_OK")
</pallas_src>

<mosaic_0001>
module attributes {stable_mosaic.version = 11 : i64} {
  func.func @_mlp_kernel(%arg0: i32, %arg1: memref<16x4800xf32, #tpu.memory_space<vmem>>, %arg2: memref<4800x128xbf16, #tpu.memory_space<vmem>>, %arg3: memref<1x128xf32, #tpu.memory_space<vmem>>, %arg4: memref<128x128xbf16, #tpu.memory_space<vmem>>, %arg5: memref<1x128xf32, #tpu.memory_space<vmem>>, %arg6: memref<128x128xbf16, #tpu.memory_space<vmem>>, %arg7: memref<1x128xf32, #tpu.memory_space<vmem>>, %arg8: memref<16x128xf32, #tpu.memory_space<vmem>>) attributes {dimension_semantics = [#tpu.dimension_semantics<parallel>], iteration_bounds = array<i64: 1>, scalar_prefetch = 0 : i64, scratch_operands = 0 : i64, tpu.core_type = #tpu.core_type<tc>, window_params = [{transform_indices = @transform_0, window_bounds = array<i64: 16, 4800>}, {pipeline_mode = #tpu.pipeline_mode<synchronous>, transform_indices = @transform_1, window_bounds = array<i64: 4800, 128>}, {pipeline_mode = #tpu.pipeline_mode<synchronous>, transform_indices = @transform_2, window_bounds = array<i64: 1, 128>}, {pipeline_mode = #tpu.pipeline_mode<synchronous>, transform_indices = @transform_3, window_bounds = array<i64: 128, 128>}, {pipeline_mode = #tpu.pipeline_mode<synchronous>, transform_indices = @transform_4, window_bounds = array<i64: 1, 128>}, {pipeline_mode = #tpu.pipeline_mode<synchronous>, transform_indices = @transform_5, window_bounds = array<i64: 128, 128>}, {pipeline_mode = #tpu.pipeline_mode<synchronous>, transform_indices = @transform_6, window_bounds = array<i64: 1, 128>}, {transform_indices = @transform_7, window_bounds = array<i64: 16, 128>}]} {
    %c0 = arith.constant 0 : index
    %c0_0 = arith.constant 0 : index
    %0 = vector.load %arg1[%c0, %c0_0] : memref<16x4800xf32, #tpu.memory_space<vmem>>, vector<16x4800xf32>
    %1 = arith.truncf %0 : vector<16x4800xf32> to vector<16x4800xbf16>
    %c0_1 = arith.constant 0 : index
    %c0_2 = arith.constant 0 : index
    %2 = vector.load %arg2[%c0_1, %c0_2] : memref<4800x128xbf16, #tpu.memory_space<vmem>>, vector<4800x128xbf16>
    %cst = arith.constant dense<0.000000e+00> : vector<16x128xf32>
    %3 = tpu.matmul %1, %2, %cst {dimension_numbers = #tpu.dot_dimension_numbers<[1], [0], [0], [1], [0, 0, 1, 1], [], []>} : vector<16x4800xbf16>, vector<4800x128xbf16>, vector<16x128xf32> -> vector<16x128xf32>
    %c0_3 = arith.constant 0 : index
    %c0_4 = arith.constant 0 : index
    %4 = vector.load %arg3[%c0_3, %c0_4] : memref<1x128xf32, #tpu.memory_space<vmem>>, vector<1x128xf32>
    %5 = vector.broadcast %4 : vector<1x128xf32> to vector<16x128xf32>
    %6 = arith.addf %3, %5 : vector<16x128xf32>
    %cst_5 = arith.constant 5.000000e-01 : f32
    %7 = vector.broadcast %cst_5 : f32 to vector<16x128xf32>
    %8 = arith.mulf %7, %6 : vector<16x128xf32>
    %9 = math.tanh %8 : vector<16x128xf32>
    %cst_6 = arith.constant 5.000000e-01 : f32
    %10 = vector.broadcast %cst_6 : f32 to vector<16x128xf32>
    %11 = arith.mulf %10, %9 : vector<16x128xf32>
    %cst_7 = arith.constant 5.000000e-01 : f32
    %12 = vector.broadcast %cst_7 : f32 to vector<16x128xf32>
    %13 = arith.addf %11, %12 : vector<16x128xf32>
    %14 = arith.truncf %13 : vector<16x128xf32> to vector<16x128xbf16>
    %c0_8 = arith.constant 0 : index
    %c0_9 = arith.constant 0 : index
    %15 = vector.load %arg4[%c0_8, %c0_9] : memref<128x128xbf16, #tpu.memory_space<vmem>>, vector<128x128xbf16>
    %cst_10 = arith.constant dense<0.000000e+00> : vector<16x128xf32>
    %16 = tpu.matmul %14, %15, %cst_10 {dimension_numbers = #tpu.dot_dimension_numbers<[1], [0], [0], [1], [0, 0, 1, 1], [], []>} : vector<16x128xbf16>, vector<128x128xbf16>, vector<16x128xf32> -> vector<16x128xf32>
    %c0_11 = arith.constant 0 : index
    %c0_12 = arith.constant 0 : index
    %17 = vector.load %arg5[%c0_11, %c0_12] : memref<1x128xf32, #tpu.memory_space<vmem>>, vector<1x128xf32>
    %18 = vector.broadcast %17 : vector<1x128xf32> to vector<16x128xf32>
    %19 = arith.addf %16, %18 : vector<16x128xf32>
    %cst_13 = arith.constant 5.000000e-01 : f32
    %20 = vector.broadcast %cst_13 : f32 to vector<16x128xf32>
    %21 = arith.mulf %20, %19 : vector<16x128xf32>
    %22 = math.tanh %21 : vector<16x128xf32>
    %cst_14 = arith.constant 5.000000e-01 : f32
    %23 = vector.broadcast %cst_14 : f32 to vector<16x128xf32>
    %24 = arith.mulf %23, %22 : vector<16x128xf32>
    %cst_15 = arith.constant 5.000000e-01 : f32
    %25 = vector.broadcast %cst_15 : f32 to vector<16x128xf32>
    %26 = arith.addf %24, %25 : vector<16x128xf32>
    %27 = arith.truncf %26 : vector<16x128xf32> to vector<16x128xbf16>
    %c0_16 = arith.constant 0 : index
    %c0_17 = arith.constant 0 : index
    %28 = vector.load %arg6[%c0_16, %c0_17] : memref<128x128xbf16, #tpu.memory_space<vmem>>, vector<128x128xbf16>
    %cst_18 = arith.constant dense<0.000000e+00> : vector<16x128xf32>
    %29 = tpu.matmul %27, %28, %cst_18 {dimension_numbers = #tpu.dot_dimension_numbers<[1], [0], [0], [1], [0, 0, 1, 1], [], []>} : vector<16x128xbf16>, vector<128x128xbf16>, vector<16x128xf32> -> vector<16x128xf32>
    %c0_19 = arith.constant 0 : index
    %c0_20 = arith.constant 0 : index
    %30 = vector.load %arg7[%c0_19, %c0_20] : memref<1x128xf32, #tpu.memory_space<vmem>>, vector<1x128xf32>
    %31 = vector.broadcast %30 : vector<1x128xf32> to vector<16x128xf32>
    %32 = arith.addf %29, %31 : vector<16x128xf32>
    %cst_21 = arith.constant dense<0xFF800000> : vector<16xf32>
    %33 = vector.multi_reduction <maximumf>, %32, %cst_21 [1] : vector<16x128xf32> to vector<16xf32>
    %34 = vector.shape_cast %33 : vector<16xf32> to vector<16x1xf32>
    %35 = vector.broadcast %34 : vector<16x1xf32> to vector<16x128xf32>
    %36 = arith.subf %32, %35 : vector<16x128xf32>
    %37 = math.exp %36 : vector<16x128xf32>
    %cst_22 = arith.constant dense<0.000000e+00> : vector<16xf32>
    %38 = vector.multi_reduction <add>, %37, %cst_22 [1] : vector<16x128xf32> to vector<16xf32>
    %39 = vector.shape_cast %38 : vector<16xf32> to vector<16x1xf32>
    %40 = math.log %39 : vector<16x1xf32>
    %41 = vector.broadcast %40 : vector<16x1xf32> to vector<16x128xf32>
    %42 = arith.subf %36, %41 : vector<16x128xf32>
    %c0_23 = arith.constant 0 : index
    %c0_24 = arith.constant 0 : index
    %43 = vector.load %arg8[%c0_23, %c0_24] : memref<16x128xf32, #tpu.memory_space<vmem>>, vector<16x128xf32>
    tpu.vector_store %arg8[%c0_23, %c0_24], %42 {strides = array<i32>} : memref<16x128xf32, #tpu.memory_space<vmem>>, vector<16x128xf32>,
    return
  }
  func.func @transform_0(%arg0: i32) -> (i32, i32) {
    %c0_i32 = arith.constant 0 : i32
    %c0_i32_0 = arith.constant 0 : i32
    return %arg0, %c0_i32 : i32, i32
  }
  func.func @transform_1(%arg0: i32) -> (i32, i32) {
    %c0_i32 = arith.constant 0 : i32
    %c0_i32_0 = arith.constant 0 : i32
    %c0_i32_1 = arith.constant 0 : i32
    return %c0_i32, %c0_i32_0 : i32, i32
  }
  func.func @transform_2(%arg0: i32) -> (i32, i32) {
    %c0_i32 = arith.constant 0 : i32
    %c0_i32_0 = arith.constant 0 : i32
    %c0_i32_1 = arith.constant 0 : i32
    return %c0_i32, %c0_i32_0 : i32, i32
  }
  func.func @transform_3(%arg0: i32) -> (i32, i32) {
    %c0_i32 = arith.constant 0 : i32
    %c0_i32_0 = arith.constant 0 : i32
    %c0_i32_1 = arith.constant 0 : i32
    return %c0_i32, %c0_i32_0 : i32, i32
  }
  func.func @transform_4(%arg0: i32) -> (i32, i32) {
    %c0_i32 = arith.constant 0 : i32
    %c0_i32_0 = arith.constant 0 : i32
    %c0_i32_1 = arith.constant 0 : i32
    return %c0_i32, %c0_i32_0 : i32, i32
  }
  func.func @transform_5(%arg0: i32) -> (i32, i32) {
    %c0_i32 = arith.constant 0 : i32
    %c0_i32_0 = arith.constant 0 : i32
    %c0_i32_1 = arith.constant 0 : i32
    return %c0_i32, %c0_i32_0 : i32, i32
  }
  func.func @transform_6(%arg0: i32) -> (i32, i32) {
    %c0_i32 = arith.constant 0 : i32
    %c0_i32_0 = arith.constant 0 : i32
    %c0_i32_1 = arith.constant 0 : i32
    return %c0_i32, %c0_i32_0 : i32, i32
  }
  func.func @transform_7(%arg0: i32) -> (i32, i32) {
    %c0_i32 = arith.constant 0 : i32
    %c0_i32_0 = arith.constant 0 : i32
    return %arg0, %c0_i32 : i32, i32
  }
}

</mosaic_0001>

<llo_original>
// kernel: tpu_custom_call.1
$region0: #{tpu_custom_call.1}
  #allocation0 [shape = 'u32[]', space=smem, size = 0x4, offset = 0x4, fixed_abs, tag = 'smem constant byte address 0x4 - core index']
  #allocation1 [shape = 'u32[144,128]{1,0:T(1,128)}', space=vmem, size = 0x12000, scoped, tag = 'internal scratch']
  %s0 = inlined_call_operand.hbm [shape: f32[16,4800], index: 0, kind: input, shape index: {}]
  %s1 = inlined_call_operand.hbm [shape: bf16[4800,128], index: 1, kind: input, shape index: {}]
  %s2 = inlined_call_operand.hbm [shape: f32[1,128], index: 2, kind: input, shape index: {}]
  %s3 = inlined_call_operand.hbm [shape: bf16[128,128], index: 3, kind: input, shape index: {}]
  %s4 = inlined_call_operand.hbm [shape: f32[1,128], index: 4, kind: input, shape index: {}]
  %s5 = inlined_call_operand.hbm [shape: bf16[128,128], index: 5, kind: input, shape index: {}]
  %s6 = inlined_call_operand.hbm [shape: f32[1,128], index: 6, kind: input, shape index: {}]
  %s7 = inlined_call_operand.hbm [shape: f32[16,128], index: 7, kind: output, shape index: {}]
  %s8 = sld [smem:[#allocation0]]
  $region66: #{tpu_custom_call.1} parent=0
    _
  %s10 = ssub.s32 1, %s8
  %s11 = scalar_select 0, %s10, %s8
  $region1: #{tpu_custom_call.1} parent=0
    #allocation2 [shape = 'u8[311296]{0}', space=vmem, size = 0x4c000, scoped, tag = 'input window, operand 0, single buffered']
    #allocation3 [shape = 's32[1]{0}', space=sflag, size = 0x4, scoped, tag = 'scoped memory for tpu_custom_call.1']
    #allocation4 [shape = 's32[1]{0}', space=sflag, size = 0x4, scoped, tag = 'scoped memory for tpu_custom_call.1']
    #allocation5 [shape = 'u8[1228800]{0}', space=vmem, size = 0x12c000, scoped, tag = 'input window, operand 1, single buffered']
    #allocation6 [shape = 's32[1]{0}', space=sflag, size = 0x4, scoped, tag = 'scoped memory for tpu_custom_call.1']
    #allocation7 [shape = 'u8[512]{0}', space=vmem, size = 0x400, scoped, tag = 'input window, operand 2, single buffered']
    #allocation8 [shape = 'u8[32768]{0}', space=vmem, size = 0x8000, scoped, tag = 'input window, operand 3, single buffered']
    #allocation9 [shape = 's32[1]{0}', space=sflag, size = 0x4, scoped, tag = 'scoped memory for tpu_custom_call.1']
    #allocation10 [shape = 'u8[512]{0}', space=vmem, size = 0x400, scoped, tag = 'input window, operand 4, single buffered']
    #allocation11 [shape = 'u8[32768]{0}', space=vmem, size = 0x8000, scoped, tag = 'input window, operand 5, single buffered']
    #allocation12 [shape = 's32[1]{0}', space=sflag, size = 0x4, scoped, tag = 'scoped memory for tpu_custom_call.1']
    #allocation13 [shape = 'u8[512]{0}', space=vmem, size = 0x400, scoped, tag = 'input window, operand 6, single buffered']
    #allocation14 [shape = 'u8[8192]{0}', space=vmem, size = 0x2000, scoped, tag = 'output window, operand 0, single buffered']
    %12 = vsyncpa [#allocation3], 0
    %13 = vsyncpa [#allocation6], 0
    %14 = vsyncpa [#allocation9], 0
    %15 = vsyncpa [#allocation12], 0
    %16 = vsyncpa [#allocation4], 0
    // Predicated region
    $region2: #{tpu_custom_call.1} parent=1 // pred_check
      _
    $region3: #{tpu_custom_call.1} parent=1 // pred_check_branch
      %18 = sbr.rel (0) target = $region5
    $region4: #{tpu_custom_call.1} parent=1 // pred_region
      %s20 = ssub.s32 9728, 9728
      %21 = vsyncadd [#allocation3], %s20
      %s22 = sshll.u32 [#allocation2], 4
      %s23 = int_to_ptr.vmem [resolvable:$true] %s22
      %28 = dma.hbm_to_vmem [thread:$0]  %s0, 9728, %s23, [#allocation3], 4864, 4864, 304
    $region5: #{tpu_custom_call.1} parent=1 // pred_fallthru
      _
    // Predicated region
    $region6: #{tpu_custom_call.1} parent=1 // pred_check
      _
    $region7: #{tpu_custom_call.1} parent=1 // pred_check_branch
      %30 = sbr.rel (0) target = $region9
    $region8: #{tpu_custom_call.1} parent=1 // pred_region
      %s32 = ssub.s32 38400, 38400
      %33 = vsyncadd [#allocation6], %s32
      %s34 = sshll.u32 [#allocation5], 4
      %s35 = int_to_ptr.vmem [resolvable:$true] %s34
      %40 = dma.hbm_to_vmem [thread:$0]  %s1, 38400, %s35, [#allocation6], 64, 64, 4
    $region9: #{tpu_custom_call.1} parent=1 // pred_fallthru
      _
    // Predicated region
    $region10: #{tpu_custom_call.1} parent=1 // pred_check
      _
    $region11: #{tpu_custom_call.1} parent=1 // pred_check_branch
      %42 = sbr.rel (0) target = $region13
    $region12: #{tpu_custom_call.1} parent=1 // pred_region
      %s44 = ssub.s32 16, 16
      %45 = vsyncadd [#allocation6], %s44
      %s47 = sshll.u32 [#allocation7], 4
      %s48 = int_to_ptr.vmem [resolvable:$true] %s47
      %50 = dma.hbm_to_vmem [thread:$0]  %s2, 16, %s48, [#allocation6]
    $region13: #{tpu_custom_call.1} parent=1 // pred_fallthru
      _
    // Predicated region
    $region14: #{tpu_custom_call.1} parent=1 // pred_check
      _
    $region15: #{tpu_custom_call.1} parent=1 // pred_check_branch
      %52 = sbr.rel (0) target = $region17
    $region16: #{tpu_custom_call.1} parent=1 // pred_region
      %s54 = ssub.s32 1024, 1024
      %55 = vsyncadd [#allocation9], %s54
      %s56 = sshll.u32 [#allocation8], 4
      %s57 = int_to_ptr.vmem [resolvable:$true] %s56
      %62 = dma.hbm_to_vmem [thread:$0]  %s3, 1024, %s57, [#allocation9], 64, 64, 4
    $region17: #{tpu_custom_call.1} parent=1 // pred_fallthru
      _
    // Predicated region
    $region18: #{tpu_custom_call.1} parent=1 // pred_check
      _
    $region19: #{tpu_custom_call.1} parent=1 // pred_check_branch
      %64 = sbr.rel (0) target = $region21
    $region20: #{tpu_custom_call.1} parent=1 // pred_region
      %s66 = ssub.s32 16, 16
      %67 = vsyncadd [#allocation9], %s66
      %s69 = sshll.u32 [#allocation10], 4
      %s70 = int_to_ptr.vmem [resolvable:$true] %s69
      %72 = dma.hbm_to_vmem [thread:$0]  %s4, 16, %s70, [#allocation9]
    $region21: #{tpu_custom_call.1} parent=1 // pred_fallthru
      _
    // Predicated region
    $region22: #{tpu_custom_call.1} parent=1 // pred_check
      _
    $region23: #{tpu_custom_call.1} parent=1 // pred_check_branch
      %74 = sbr.rel (0) target = $region25
    $region24: #{tpu_custom_call.1} parent=1 // pred_region
      %s76 = ssub.s32 1024, 1024
      %77 = vsyncadd [#allocation12], %s76
      %s78 = sshll.u32 [#allocation11], 4
      %s79 = int_to_ptr.vmem [resolvable:$true] %s78
      %84 = dma.hbm_to_vmem [thread:$0]  %s5, 1024, %s79, [#allocation12], 64, 64, 4
    $region25: #{tpu_custom_call.1} parent=1 // pred_fallthru
      _
    // Predicated region
    $region26: #{tpu_custom_call.1} parent=1 // pred_check
      _
    $region27: #{tpu_custom_call.1} parent=1 // pred_check_branch
      %86 = sbr.rel (0) target = $region29
    $region28: #{tpu_custom_call.1} parent=1 // pred_region
      %s88 = ssub.s32 16, 16
      %89 = vsyncadd [#allocation12], %s88
      %s91 = sshll.u32 [#allocation13], 4
      %s92 = int_to_ptr.vmem [resolvable:$true] %s91
      %94 = dma.hbm_to_vmem [thread:$0]  %s6, 16, %s92, [#allocation12]
    $region29: #{tpu_custom_call.1} parent=1 // pred_fallthru
      _
    // Predicated region
    $region30: #{tpu_custom_call.1} parent=1 // pred_check
      _
    $region31: #{tpu_custom_call.1} parent=1 // pred_check_branch
      %96 = sbr.rel (0) target = $region33
    $region32: #{tpu_custom_call.1} parent=1 // pred_region
      %97 = dma.done [#allocation3], 9728
    $region33: #{tpu_custom_call.1} parent=1 // pred_fallthru
      _
    // Predicated region
    $region34: #{tpu_custom_call.1} parent=1 // pred_check
      _
    $region35: #{tpu_custom_call.1} parent=1 // pred_check_branch
      %99 = sbr.rel (0) target = $region37
    $region36: #{tpu_custom_call.1} parent=1 // pred_region
      %100 = dma.done [#allocation6], 38400
    $region37: #{tpu_custom_call.1} parent=1 // pred_fallthru
      _
    // Predicated region
    $region38: #{tpu_custom_call.1} parent=1 // pred_check
      _
    $region39: #{tpu_custom_call.1} parent=1 // pred_check_branch
      %102 = sbr.rel (0) target = $region41
    $region40: #{tpu_custom_call.1} parent=1 // pred_region
      %103 = dma.done [#allocation6], 16
    $region41: #{tpu_custom_call.1} parent=1 // pred_fallthru
      _
    // Predicated region
    $region42: #{tpu_custom_call.1} parent=1 // pred_check
      _
    $region43: #{tpu_custom_call.1} parent=1 // pred_check_branch
      %105 = sbr.rel (0) target = $region45
    $region44: #{tpu_custom_call.1} parent=1 // pred_region
      %106 = dma.done [#allocation9], 1024
    $region45: #{tpu_custom_call.1} parent=1 // pred_fallthru
      _
    // Predicated region
    $region46: #{tpu_custom_call.1} parent=1 // pred_check
      _
    $region47: #{tpu_custom_call.1} parent=1 // pred_check_branch
      %108 = sbr.rel (0) target = $region49
    $region48: #{tpu_custom_call.1} parent=1 // pred_region
      %109 = dma.done [#allocation9], 16
    $region49: #{tpu_custom_call.1} parent=1 // pred_fallthru
      _
    // Predicated region
    $region50: #{tpu_custom_call.1} parent=1 // pred_check
      _
    $region51: #{tpu_custom_call.1} parent=1 // pred_check_branch
      %111 = sbr.rel (0) target = $region53
    $region52: #{tpu_custom_call.1} parent=1 // pred_region
      %112 = dma.done [#allocation12], 1024
    $region53: #{tpu_custom_call.1} parent=1 // pred_fallthru
      _
    // Predicated region
    $region54: #{tpu_custom_call.1} parent=1 // pred_check
      _
    $region55: #{tpu_custom_call.1} parent=1 // pred_check_branch
      %114 = sbr.rel (0) target = $region57
    $region56: #{tpu_custom_call.1} parent=1 // pred_region
      %115 = dma.done [#allocation12], 16
    $region57: #{tpu_custom_call.1} parent=1 // pred_fallthru
      _
    %v117 = vld [vmem:[#allocation2] sm:$0xff]
    %v118 = vld [vmem:[#allocation2 + $0x8] sm:$0xff]
    %v119 = vld [vmem:[#allocation2 + $0x10] sm:$0xff]
    %v120 = vld [vmem:[#allocation2 + $0x18] sm:$0xff]
    %v121 = vld [vmem:[#allocation2 + $0x20] sm:$0xff]
    %v122 = vld [vmem:[#allocation2 + $0x28] sm:$0xff]
    %v123 = vld [vmem:[#allocation2 + $0x30] sm:$0xff]
    %v124 = vld [vmem:[#allocation2 + $0x38] sm:$0xff]
    %v125 = vld [vmem:[#allocation2 + $0x40] sm:$0xff]
    %v126 = vld [vmem:[#allocation2 + $0x48] sm:$0xff]
    %v127 = vld [vmem:[#allocation2 + $0x50] sm:$0xff]
    %v128 = vld [vmem:[#allocation2 + $0x58] sm:$0xff]
    %v129 = vld [vmem:[#allocation2 + $0x60] sm:$0xff]
    %v130 = vld [vmem:[#allocation2 + $0x68] sm:$0xff]
    %v131 = vld [vmem:[#allocation2 + $0x70] sm:$0xff]
    %v132 = vld [vmem:[#allocation2 + $0x78] sm:$0xff]
    %v133 = vld [vmem:[#allocation2 + $0x80] sm:$0xff]
    %v134 = vld [vmem:[#allocation2 + $0x88] sm:$0xff]
    %v135 = vld [vmem:[#allocation2 + $0x90] sm:$0xff]
    %v136 = vld [vmem:[#allocation2 + $0x98] sm:$0xff]
    %v137 = vld [vmem:[#allocation2 + $0xa0] sm:$0xff]
    %v138 = vld [vmem:[#allocation2 + $0xa8] sm:$0xff]
    %v139 = vld [vmem:[#allocation2 + $0xb0] sm:$0xff]
    %v140 = vld [vmem:[#allocation2 + $0xb8] sm:$0xff]
    %v141 = vld [vmem:[#allocation2 + $0xc0] sm:$0xff]
    %v142 = vld [vmem:[#allocation2 + $0xc8] sm:$0xff]
    %v143 = vld [vmem:[#allocation2 + $0xd0] sm:$0xff]
    %v144 = vld [vmem:[#allocation2 + $0xd8] sm:$0xff]
    %v145 = vld [vmem:[#allocation2 + $0xe0] sm:$0xff]
    %v146 = vld [vmem:[#allocation2 + $0xe8] sm:$0xff]
    %v147 = vld [vmem:[#allocation2 + $0xf0] sm:$0xff]
    %v148 = vld [vmem:[#allocation2 + $0xf8] sm:$0xff]
    %v149 = vld [vmem:[#allocation2 + $0x100] sm:$0xff]
    %v150 = vld [vmem:[#allocation2 + $0x108] sm:$0xff]
    %v151 = vld [vmem:[#allocation2 + $0x110] sm:$0xff]
    %v152 = vld [vmem:[#allocation2 + $0x118] sm:$0xff]
    %v153 = vld [vmem:[#allocation2 + $0x120] sm:$0xff]
    %v154 = vld [vmem:[#allocation2 + $0x128] sm:$0xff]
    %v155 = vld [vmem:[#allocation2 + $0x130] sm:$0xff]
    %v156 = vld [vmem:[#allocation2 + $0x138] sm:$0xff]
    %v157 = vld [vmem:[#allocation2 + $0x140] sm:$0xff]
    %v158 = vld [vmem:[#allocation2 + $0x148] sm:$0xff]
    %v159 = vld [vmem:[#allocation2 + $0x150] sm:$0xff]
    %v160 = vld [vmem:[#allocation2 + $0x158] sm:$0xff]
    %v161 = vld [vmem:[#allocation2 + $0x160] sm:$0xff]
    %v162 = vld [vmem:[#allocation2 + $0x168] sm:$0xff]
    %v163 = vld [vmem:[#allocation2 + $0x170] sm:$0xff]
    %v164 = vld [vmem:[#allocation2 + $0x178] sm:$0xff]
    %v165 = vld [vmem:[#allocation2 + $0x180] sm:$0xff]
    %v166 = vld [vmem:[#allocation2 + $0x188] sm:$0xff]
    %v167 = vld [vmem:[#allocation2 + $0x190] sm:$0xff]
    %v168 = vld [vmem:[#allocation2 + $0x198] sm:$0xff]
    %v169 = vld [vmem:[#allocation2 + $0x1a0] sm:$0xff]
    %v170 = vld [vmem:[#allocation2 + $0x1a8] sm:$0xff]
    %v171 = vld [vmem:[#allocation2 + $0x1b0] sm:$0xff]
    %v172 = vld [vmem:[#allocation2 + $0x1b8] sm:$0xff]
    %v173 = vld [vmem:[#allocation2 + $0x1c0] sm:$0xff]
    %v174 = vld [vmem:[#allocation2 + $0x1c8] sm:$0xff]
    %v175 = vld [vmem:[#allocation2 + $0x1d0] sm:$0xff]
    %v176 = vld [vmem:[#allocation2 + $0x1d8] sm:$0xff]
    %v177 = vld [vmem:[#allocation2 + $0x1e0] sm:$0xff]
    %v178 = vld [vmem:[#allocation2 + $0x1e8] sm:$0xff]
    %v179 = vld [vmem:[#allocation2 + $0x1f0] sm:$0xff]
    %v180 = vld [vmem:[#allocation2 + $0x1f8] sm:$0xff]
    %v181 = vld [vmem:[#allocation2 + $0x200] sm:$0xff]
    %v182 = vld [vmem:[#allocation2 + $0x208] sm:$0xff]
    %v183 = vld [vmem:[#allocation2 + $0x210] sm:$0xff]
    %v184 = vld [vmem:[#allocation2 + $0x218] sm:$0xff]
    %v185 = vld [vmem:[#allocation2 + $0x220] sm:$0xff]
    %v186 = vld [vmem:[#allocation2 + $0x228] sm:$0xff]
    %v187 = vld [vmem:[#allocation2 + $0x230] sm:$0xff]
    %v188 = vld [vmem:[#allocation2 + $0x238] sm:$0xff]
    %v189 = vld [vmem:[#allocation2 + $0x240] sm:$0xff]
    %v190 = vld [vmem:[#allocation2 + $0x248] sm:$0xff]
    %v191 = vld [vmem:[#allocation2 + $0x250] sm:$0xff]
    %v192 = vld [vmem:[#allocation2 + $0x258] sm:$0xff]
    %v193 = vpack.c.bf16 %v155, %v117
    %v194 = vpack.c.bf16 %v156, %v118
    %v195 = vpack.c.bf16 %v157, %v119
    %v196 = vpack.c.bf16 %v158, %v120
    %v197 = vpack.c.bf16 %v159, %v121
    %v198 = vpack.c.bf16 %v160, %v122
    %v199 = vpack.c.bf16 %v161, %v123
    %v200 = vpack.c.bf16 %v162, %v124
    %v201 = vpack.c.bf16 %v163, %v125
    %v202 = vpack.c.bf16 %v164, %v126
    %v203 = vpack.c.bf16 %v165, %v127
    %v204 = vpack.c.bf16 %v166, %v128
    %v205 = vpack.c.bf16 %v167, %v129
    %v206 = vpack.c.bf16 %v168, %v130
    %v207 = vpack.c.bf16 %v169, %v131
    %v208 = vpack.c.bf16 %v170, %v132
    %v209 = vpack.c.bf16 %v171, %v133
    %v210 = vpack.c.bf16 %v172, %v134
    %v211 = vpack.c.bf16 %v173, %v135
    %v212 = vpack.c.bf16 %v174, %v136
    %v213 = vpack.c.bf16 %v175, %v137
    %v214 = vpack.c.bf16 %v176, %v138
    %v215 = vpack.c.bf16 %v177, %v139
    %v216 = vpack.c.bf16 %v178, %v140
    %v217 = vpack.c.bf16 %v179, %v141
    %v218 = vpack.c.bf16 %v180, %v142
    %v219 = vpack.c.bf16 %v181, %v143
    %v220 = vpack.c.bf16 %v182, %v144
    %v221 = vpack.c.bf16 %v183, %v145
    %v222 = vpack.c.bf16 %v184, %v146
    %v223 = vpack.c.bf16 %v185, %v147
    %v224 = vpack.c.bf16 %v186, %v148
    %v225 = vpack.c.bf16 %v187, %v149
    %v226 = vpack.c.bf16 %v188, %v150
    %v227 = vpack.c.bf16 %v189, %v151
    %v228 = vpack.c.bf16 %v190, %v152
    %v229 = vpack.c.bf16 %v191, %v153
    %v230 = vpack.c.bf16 %v192, %v154
    %v231 = vld [vmem:[#allocation5] sm:$0xf]
    %v232 = vld [vmem:[#allocation5 + $0x4] sm:$0xf]
    %v233 = vld [vmem:[#allocation5 + $0x8] sm:$0xf]
    %v234 = vld [vmem:[#allocation5 + $0xc] sm:$0xf]
    %v235 = vld [vmem:[#allocation5 + $0x10] sm:$0xf]
    %v236 = vld [vmem:[#allocation5 + $0x14] sm:$0xf]
    %v237 = vld [vmem:[#allocation5 + $0x18] sm:$0xf]
    %v238 = vld [vmem:[#allocation5 + $0x1c] sm:$0xf]
    %v239 = vld [vmem:[#allocation5 + $0x20] sm:$0xf]
    %v240 = vld [vmem:[#allocation5 + $0x24] sm:$0xf]
    %v241 = vld [vmem:[#allocation5 + $0x28] sm:$0xf]
    %v242 = vld [vmem:[#allocation5 + $0x2c] sm:$0xf]
    %v243 = vld [vmem:[#allocation5 + $0x30] sm:$0xf]
    %v244 = vld [vmem:[#allocation5 + $0x34] sm:$0xf]
    %v245 = vld [vmem:[#allocation5 + $0x38] sm:$0xf]
    %v246 = vld [vmem:[#allocation5 + $0x3c] sm:$0xf]
    %v247 = vld [vmem:[#allocation5 + $0x40] sm:$0xf]
    %v248 = vld [vmem:[#allocation5 + $0x44] sm:$0xf]
    %v249 = vld [vmem:[#allocation5 + $0x48] sm:$0xf]
    %v250 = vld [vmem:[#allocation5 + $0x4c] sm:$0xf]
    %v251 = vld [vmem:[#allocation5 + $0x50] sm:$0xf]
    %v252 = vld [vmem:[#allocation5 + $0x54] sm:$0xf]
    %v253 = vld [vmem:[#allocation5 + $0x58] sm:$0xf]
    %v254 = vld [vmem:[#allocation5 + $0x5c] sm:$0xf]
    %v255 = vld [vmem:[#allocation5 + $0x60] sm:$0xf]
    %v256 = vld [vmem:[#allocation5 + $0x64] sm:$0xf]
    %v257 = vld [vmem:[#allocation5 + $0x68] sm:$0xf]
    %v258 = vld [vmem:[#allocation5 + $0x6c] sm:$0xf]
    %v259 = vld [vmem:[#allocation5 + $0x70] sm:$0xf]
    %v260 = vld [vmem:[#allocation5 + $0x74] sm:$0xf]
    %v261 = vld [vmem:[#allocation5 + $0x78] sm:$0xf]
    %v262 = vld [vmem:[#allocation5 + $0x7c] sm:$0xf]
    %v263 = vld [vmem:[#allocation5 + $0x80] sm:$0xf]
    %v264 = vld [vmem:[#allocation5 + $0x84] sm:$0xf]
    %v265 = vld [vmem:[#allocation5 + $0x88] sm:$0xf]
    %v266 = vld [vmem:[#allocation5 + $0x8c] sm:$0xf]
    %v267 = vld [vmem:[#allocation5 + $0x90] sm:$0xf]
    %v268 = vld [vmem:[#allocation5 + $0x94] sm:$0xf]
    %v269 = vld [vmem:[#allocation5 + $0x98] sm:$0xf]
    %v270 = vld [vmem:[#allocation5 + $0x9c] sm:$0xf]
    %v271 = vld [vmem:[#allocation5 + $0xa0] sm:$0xf]
    %v272 = vld [vmem:[#allocation5 + $0xa4] sm:$0xf]
    %v273 = vld [vmem:[#allocation5 + $0xa8] sm:$0xf]
    %v274 = vld [vmem:[#allocation5 + $0xac] sm:$0xf]
    %v275 = vld [vmem:[#allocation5 + $0xb0] sm:$0xf]
    %v276 = vld [vmem:[#allocation5 + $0xb4] sm:$0xf]
    %v277 = vld [vmem:[#allocation5 + $0xb8] sm:$0xf]
    %v278 = vld [vmem:[#allocation5 + $0xbc] sm:$0xf]
    %v279 = vld [vmem:[#allocation5 + $0xc0] sm:$0xf]
    %v280 = vld [vmem:[#allocation5 + $0xc4] sm:$0xf]
    %v281 = vld [vmem:[#allocation5 + $0xc8] sm:$0xf]
    %v282 = vld [vmem:[#allocation5 + $0xcc] sm:$0xf]
    %v283 = vld [vmem:[#allocation5 + $0xd0] sm:$0xf]
    %v284 = vld [vmem:[#allocation5 + $0xd4] sm:$0xf]
    %v285 = vld [vmem:[#allocation5 + $0xd8] sm:$0xf]
    %v286 = vld [vmem:[#allocation5 + $0xdc] sm:$0xf]
    %v287 = vld [vmem:[#allocation5 + $0xe0] sm:$0xf]
    %v288 = vld [vmem:[#allocation5 + $0xe4] sm:$0xf]
    %v289 = vld [vmem:[#allocation5 + $0xe8] sm:$0xf]
    %v290 = vld [vmem:[#allocation5 + $0xec] sm:$0xf]
    %v291 = vld [vmem:[#allocation5 + $0xf0] sm:$0xf]
    %v292 = vld [vmem:[#allocation5 + $0xf4] sm:$0xf]
    %v293 = vld [vmem:[#allocation5 + $0xf8] sm:$0xf]
    %v294 = vld [vmem:[#allocation5 + $0xfc] sm:$0xf]
    %v295 = vld [vmem:[#allocation5 + $0x100] sm:$0xf]
    %v296 = vld [vmem:[#allocation5 + $0x104] sm:$0xf]
    %v297 = vld [vmem:[#allocation5 + $0x108] sm:$0xf]
    %v298 = vld [vmem:[#allocation5 + $0x10c] sm:$0xf]
    %v299 = vld [vmem:[#allocation5 + $0x110] sm:$0xf]
    %v300 = vld [vmem:[#allocation5 + $0x114] sm:$0xf]
    %v301 = vld [vmem:[#allocation5 + $0x118] sm:$0xf]
    %v302 = vld [vmem:[#allocation5 + $0x11c] sm:$0xf]
    %v303 = vld [vmem:[#allocation5 + $0x120] sm:$0xf]
    %v304 = vld [vmem:[#allocation5 + $0x124] sm:$0xf]
    %v305 = vld [vmem:[#allocation5 + $0x128] sm:$0xf]
    %v306 = vld [vmem:[#allocation5 + $0x12c] sm:$0xf]
    %v307 = vld [vmem:[#allocation5 + $0x130] sm:$0xf]
    %v308 = vld [vmem:[#allocation5 + $0x134] sm:$0xf]
    %v309 = vld [vmem:[#allocation5 + $0x138] sm:$0xf]
    %v310 = vld [vmem:[#allocation5 + $0x13c] sm:$0xf]
    %v311 = vld [vmem:[#allocation5 + $0x140] sm:$0xf]
    %v312 = vld [vmem:[#allocation5 + $0x144] sm:$0xf]
    %v313 = vld [vmem:[#allocation5 + $0x148] sm:$0xf]
    %v314 = vld [vmem:[#allocation5 + $0x14c] sm:$0xf]
    %v315 = vld [vmem:[#allocation5 + $0x150] sm:$0xf]
    %v316 = vld [vmem:[#allocation5 + $0x154] sm:$0xf]
    %v317 = vld [vmem:[#allocation5 + $0x158] sm:$0xf]
    %v318 = vld [vmem:[#allocation5 + $0x15c] sm:$0xf]
    %v319 = vld [vmem:[#allocation5 + $0x160] sm:$0xf]
    %v320 = vld [vmem:[#allocation5 + $0x164] sm:$0xf]
    %v321 = vld [vmem:[#allocation5 + $0x168] sm:$0xf]
    %v322 = vld [vmem:[#allocation5 + $0x16c] sm:$0xf]
    %v323 = vld [vmem:[#allocation5 + $0x170] sm:$0xf]
    %v324 = vld [vmem:[#allocation5 + $0x174] sm:$0xf]
    %v325 = vld [vmem:[#allocation5 + $0x178] sm:$0xf]
    %v326 = vld [vmem:[#allocation5 + $0x17c] sm:$0xf]
    %v327 = vld [vmem:[#allocation5 + $0x180] sm:$0xf]
    %v328 = vld [vmem:[#allocation5 + $0x184] sm:$0xf]
    %v329 = vld [vmem:[#allocation5 + $0x188] sm:$0xf]
    %v330 = vld [vmem:[#allocation5 + $0x18c] sm:$0xf]
    %v331 = vld [vmem:[#allocation5 + $0x190] sm:$0xf]
    %v332 = vld [vmem:[#allocation5 + $0x194] sm:$0xf]
    %v333 = vld [vmem:[#allocation5 + $0x198] sm:$0xf]
    %v334 = vld [vmem:[#allocation5 + $0x19c] sm:$0xf]
    %v335 = vld [vmem:[#allocation5 + $0x1a0] sm:$0xf]
    %v336 = vld [vmem:[#allocation5 + $0x1a4] sm:$0xf]
    %v337 = vld [vmem:[#allocation5 + $0x1a8] sm:$0xf]
    %v338 = vld [vmem:[#allocation5 + $0x1ac] sm:$0xf]
    %v339 = vld [vmem:[#allocation5 + $0x1b0] sm:$0xf]
    %v340 = vld [vmem:[#allocation5 + $0x1b4] sm:$0xf]
    %v341 = vld [vmem:[#allocation5 + $0x1b8] sm:$0xf]
    %v342 = vld [vmem:[#allocation5 + $0x1bc] sm:$0xf]
    %v343 = vld [vmem:[#allocation5 + $0x1c0] sm:$0xf]
    %v344 = vld [vmem:[#allocation5 + $0x1c4] sm:$0xf]
    %v345 = vld [vmem:[#allocation5 + $0x1c8] sm:$0xf]
    %v346 = vld [vmem:[#allocation5 + $0x1cc] sm:$0xf]
    %v347 = vld [vmem:[#allocation5 + $0x1d0] sm:$0xf]
    %v348 = vld [vmem:[#allocation5 + $0x1d4] sm:$0xf]
    %v349 = vld [vmem:[#allocation5 + $0x1d8] sm:$0xf]
    %v350 = vld [vmem:[#allocation5 + $0x1dc] sm:$0xf]
    %v351 = vld [vmem:[#allocation5 + $0x1e0] sm:$0xf]
    %v352 = vld [vmem:[#allocation5 + $0x1e4] sm:$0xf]
    %v353 = vld [vmem:[#allocation5 + $0x1e8] sm:$0xf]
    %v354 = vld [vmem:[#allocation5 + $0x1ec] sm:$0xf]
    %v355 = vld [vmem:[#allocation5 + $0x1f0] sm:$0xf]
    %v356 = vld [vmem:[#allocation5 + $0x1f4] sm:$0xf]
    %v357 = vld [vmem:[#allocation5 + $0x1f8] sm:$0xf]
    %v358 = vld [vmem:[#allocation5 + $0x1fc] sm:$0xf]
    %v359 = vld [vmem:[#allocation5 + $0x200] sm:$0xf]
    %v360 = vld [vmem:[#allocation5 + $0x204] sm:$0xf]
    %v361 = vld [vmem:[#allocation5 + $0x208] sm:$0xf]
    %v362 = vld [vmem:[#allocation5 + $0x20c] sm:$0xf]
    %v363 = vld [vmem:[#allocation5 + $0x210] sm:$0xf]
    %v364 = vld [vmem:[#allocation5 + $0x214] sm:$0xf]
    %v365 = vld [vmem:[#allocation5 + $0x218] sm:$0xf]
    %v366 = vld [vmem:[#allocation5 + $0x21c] sm:$0xf]
    %v367 = vld [vmem:[#allocation5 + $0x220] sm:$0xf]
    %v368 = vld [vmem:[#allocation5 + $0x224] sm:$0xf]
    %v369 = vld [vmem:[#allocation5 + $0x228] sm:$0xf]
    %v370 = vld [vmem:[#allocation5 + $0x22c] sm:$0xf]
    %v371 = vld [vmem:[#allocation5 + $0x230] sm:$0xf]
    %v372 = vld [vmem:[#allocation5 + $0x234] sm:$0xf]
    %v373 = vld [vmem:[#allocation5 + $0x238] sm:$0xf]
    %v374 = vld [vmem:[#allocation5 + $0x23c] sm:$0xf]
    %v375 = vld [vmem:[#allocation5 + $0x240] sm:$0xf]
    %v376 = vld [vmem:[#allocation5 + $0x244] sm:$0xf]
    %v377 = vld [vmem:[#allocation5 + $0x248] sm:$0xf]
    %v378 = vld [vmem:[#allocation5 + $0x24c] sm:$0xf]
    %v379 = vld [vmem:[#allocation5 + $0x250] sm:$0xf]
    %v380 = vld [vmem:[#allocation5 + $0x254] sm:$0xf]
    %v381 = vld [vmem:[#allocation5 + $0x258] sm:$0xf]
    %v382 = vld [vmem:[#allocation5 + $0x25c] sm:$0xf]
    %v383 = vld [vmem:[#allocation5 + $0x260] sm:$0xf]
    %v384 = vld [vmem:[#allocation5 + $0x264] sm:$0xf]
    %v385 = vld [vmem:[#allocation5 + $0x268] sm:$0xf]
    %v386 = vld [vmem:[#allocation5 + $0x26c] sm:$0xf]
    %v387 = vld [vmem:[#allocation5 + $0x270] sm:$0xf]
    %v388 = vld [vmem:[#allocation5 + $0x274] sm:$0xf]
    %v389 = vld [vmem:[#allocation5 + $0x278] sm:$0xf]
    %v390 = vld [vmem:[#allocation5 + $0x27c] sm:$0xf]
    %v391 = vld [vmem:[#allocation5 + $0x280] sm:$0xf]
    %v392 = vld [vmem:[#allocation5 + $0x284] sm:$0xf]
    %v393 = vld [vmem:[#allocation5 + $0x288] sm:$0xf]
    %v394 = vld [vmem:[#allocation5 + $0x28c] sm:$0xf]
    %v395 = vld [vmem:[#allocation5 + $0x290] sm:$0xf]
    %v396 = vld [vmem:[#allocation5 + $0x294] sm:$0xf]
    %v397 = vld [vmem:[#allocation5 + $0x298] sm:$0xf]
    %v398 = vld [vmem:[#allocation5 + $0x29c] sm:$0xf]
    %v399 = vld [vmem:[#allocation5 + $0x2a0] sm:$0xf]
    %v400 = vld [vmem:[#allocation5 + $0x2a4] sm:$0xf]
    %v401 = vld [vmem:[#allocation5 + $0x2a8] sm:$0xf]
    %v402 = vld [vmem:[#allocation5 + $0x2ac] sm:$0xf]
    %v403 = vld [vmem:[#allocation5 + $0x2b0] sm:$0xf]
    %v404 = vld [vmem:[#allocation5 + $0x2b4] sm:$0xf]
    %v405 = vld [vmem:[#allocation5 + $0x2b8] sm:$0xf]
    %v406 = vld [vmem:[#allocation5 + $0x2bc] sm:$0xf]
    %v407 = vld [vmem:[#allocation5 + $0x2c0] sm:$0xf]
    %v408 = vld [vmem:[#allocation5 + $0x2c4] sm:$0xf]
    %v409 = vld [vmem:[#allocation5 + $0x2c8] sm:$0xf]
    %v410 = vld [vmem:[#allocation5 + $0x2cc] sm:$0xf]
    %v411 = vld [vmem:[#allocation5 + $0x2d0] sm:$0xf]
    %v412 = vld [vmem:[#allocation5 + $0x2d4] sm:$0xf]
    %v413 = vld [vmem:[#allocation5 + $0x2d8] sm:$0xf]
    %v414 = vld [vmem:[#allocation5 + $0x2dc] sm:$0xf]
    %v415 = vld [vmem:[#allocation5 + $0x2e0] sm:$0xf]
    %v416 = vld [vmem:[#allocation5 + $0x2e4] sm:$0xf]
    %v417 = vld [vmem:[#allocation5 + $0x2e8] sm:$0xf]
    %v418 = vld [vmem:[#allocation5 + $0x2ec] sm:$0xf]
    %v419 = vld [vmem:[#allocation5 + $0x2f0] sm:$0xf]
    %v420 = vld [vmem:[#allocation5 + $0x2f4] sm:$0xf]
    %v421 = vld [vmem:[#allocation5 + $0x2f8] sm:$0xf]
    %v422 = vld [vmem:[#allocation5 + $0x2fc] sm:$0xf]
    %v423 = vld [vmem:[#allocation5 + $0x300] sm:$0xf]
    %v424 = vld [vmem:[#allocation5 + $0x304] sm:$0xf]
    %v425 = vld [vmem:[#allocation5 + $0x308] sm:$0xf]
    %v426 = vld [vmem:[#allocation5 + $0x30c] sm:$0xf]
    %v427 = vld [vmem:[#allocation5 + $0x310] sm:$0xf]
    %v428 = vld [vmem:[#allocation5 + $0x314] sm:$0xf]
    %v429 = vld [vmem:[#allocation5 + $0x318] sm:$0xf]
    %v430 = vld [vmem:[#allocation5 + $0x31c] sm:$0xf]
    %v431 = vld [vmem:[#allocation5 + $0x320] sm:$0xf]
    %v432 = vld [vmem:[#allocation5 + $0x324] sm:$0xf]
    %v433 = vld [vmem:[#allocation5 + $0x328] sm:$0xf]
    %v434 = vld [vmem:[#allocation5 + $0x32c] sm:$0xf]
    %v435 = vld [vmem:[#allocation5 + $0x330] sm:$0xf]
    %v436 = vld [vmem:[#allocation5 + $0x334] sm:$0xf]
    %v437 = vld [vmem:[#allocation5 + $0x338] sm:$0xf]
    %v438 = vld [vmem:[#allocation5 + $0x33c] sm:$0xf]
    %v439 = vld [vmem:[#allocation5 + $0x340] sm:$0xf]
    %v440 = vld [vmem:[#allocation5 + $0x344] sm:$0xf]
    %v441 = vld [vmem:[#allocation5 + $0x348] sm:$0xf]
    %v442 = vld [vmem:[#allocation5 + $0x34c] sm:$0xf]
    %v443 = vld [vmem:[#allocation5 + $0x350] sm:$0xf]
    %v444 = vld [vmem:[#allocation5 + $0x354] sm:$0xf]
    %v445 = vld [vmem:[#allocation5 + $0x358] sm:$0xf]
    %v446 = vld [vmem:[#allocation5 + $0x35c] sm:$0xf]
    %v447 = vld [vmem:[#allocation5 + $0x360] sm:$0xf]
    %v448 = vld [vmem:[#allocation5 + $0x364] sm:$0xf]
    %v449 = vld [vmem:[#allocation5 + $0x368] sm:$0xf]
    %v450 = vld [vmem:[#allocation5 + $0x36c] sm:$0xf]
    %v451 = vld [vmem:[#allocation5 + $0x370] sm:$0xf]
    %v452 = vld [vmem:[#allocation5 + $0x374] sm:$0xf]
    %v453 = vld [vmem:[#allocation5 + $0x378] sm:$0xf]
    %v454 = vld [vmem:[#allocation5 + $0x37c] sm:$0xf]
    %v455 = vld [vmem:[#allocation5 + $0x380] sm:$0xf]
    %v456 = vld [vmem:[#allocation5 + $0x384] sm:$0xf]
    %v457 = vld [vmem:[#allocation5 + $0x388] sm:$0xf]
    %v458 = vld [vmem:[#allocation5 + $0x38c] sm:$0xf]
    %v459 = vld [vmem:[#allocation5 + $0x390] sm:$0xf]
    %v460 = vld [vmem:[#allocation5 + $0x394] sm:$0xf]
    %v461 = vld [vmem:[#allocation5 + $0x398] sm:$0xf]
    %v462 = vld [vmem:[#allocation5 + $0x39c] sm:$0xf]
    %v463 = vld [vmem:[#allocation5 + $0x3a0] sm:$0xf]
    %v464 = vld [vmem:[#allocation5 + $0x3a4] sm:$0xf]
    %v465 = vld [vmem:[#allocation5 + $0x3a8] sm:$0xf]
    %v466 = vld [vmem:[#allocation5 + $0x3ac] sm:$0xf]
    %v467 = vld [vmem:[#allocation5 + $0x3b0] sm:$0xf]
    %v468 = vld [vmem:[#allocation5 + $0x3b4] sm:$0xf]
    %v469 = vld [vmem:[#allocation5 + $0x3b8] sm:$0xf]
    %v470 = vld [vmem:[#allocation5 + $0x3bc] sm:$0xf]
    %v471 = vld [vmem:[#allocation5 + $0x3c0] sm:$0xf]
    %v472 = vld [vmem:[#allocation5 + $0x3c4] sm:$0xf]
    %v473 = vld [vmem:[#allocation5 + $0x3c8] sm:$0xf]
    %v474 = vld [vmem:[#allocation5 + $0x3cc] sm:$0xf]
    %v475 = vld [vmem:[#allocation5 + $0x3d0] sm:$0xf]
    %v476 = vld [vmem:[#allocation5 + $0x3d4] sm:$0xf]
    %v477 = vld [vmem:[#allocation5 + $0x3d8] sm:$0xf]
    %v478 = vld [vmem:[#allocation5 + $0x3dc] sm:$0xf]
    %v479 = vld [vmem:[#allocation5 + $0x3e0] sm:$0xf]
    %v480 = vld [vmem:[#allocation5 + $0x3e4] sm:$0xf]
    %v481 = vld [vmem:[#allocation5 + $0x3e8] sm:$0xf]
    %v482 = vld [vmem:[#allocation5 + $0x3ec] sm:$0xf]
    %v483 = vld [vmem:[#allocation5 + $0x3f0] sm:$0xf]
    %v484 = vld [vmem:[#allocation5 + $0x3f4] sm:$0xf]
    %v485 = vld [vmem:[#allocation5 + $0x3f8] sm:$0xf]
    %v486 = vld [vmem:[#allocation5 + $0x3fc] sm:$0xf]
    %v487 = vld [vmem:[#allocation5 + $0x400] sm:$0xf]
    %v488 = vld [vmem:[#allocation5 + $0x404] sm:$0xf]
    %v489 = vld [vmem:[#allocation5 + $0x408] sm:$0xf]
    %v490 = vld [vmem:[#allocation5 + $0x40c] sm:$0xf]
    %v491 = vld [vmem:[#allocation5 + $0x410] sm:$0xf]
    %v492 = vld [vmem:[#allocation5 + $0x414] sm:$0xf]
    %v493 = vld [vmem:[#allocation5 + $0x418] sm:$0xf]
    %v494 = vld [vmem:[#allocation5 + $0x41c] sm:$0xf]
    %v495 = vld [vmem:[#allocation5 + $0x420] sm:$0xf]
    %v496 = vld [vmem:[#allocation5 + $0x424] sm:$0xf]
    %v497 = vld [vmem:[#allocation5 + $0x428] sm:$0xf]
    %v498 = vld [vmem:[#allocation5 + $0x42c] sm:$0xf]
    %v499 = vld [vmem:[#allocation5 + $0x430] sm:$0xf]
    %v500 = vld [vmem:[#allocation5 + $0x434] sm:$0xf]
    %v501 = vld [vmem:[#allocation5 + $0x438] sm:$0xf]
    %v502 = vld [vmem:[#allocation5 + $0x43c] sm:$0xf]
    %v503 = vld [vmem:[#allocation5 + $0x440] sm:$0xf]
    %v504 = vld [vmem:[#allocation5 + $0x444] sm:$0xf]
    %v505 = vld [vmem:[#allocation5 + $0x448] sm:$0xf]
    %v506 = vld [vmem:[#allocation5 + $0x44c] sm:$0xf]
    %v507 = vld [vmem:[#allocation5 + $0x450] sm:$0xf]
    %v508 = vld [vmem:[#allocation5 + $0x454] sm:$0xf]
    %v509 = vld [vmem:[#allocation5 + $0x458] sm:$0xf]
    %v510 = vld [vmem:[#allocation5 + $0x45c] sm:$0xf]
    %v511 = vld [vmem:[#allocation5 + $0x460] sm:$0xf]
    %v512 = vld [vmem:[#allocation5 + $0x464] sm:$0xf]
    %v513 = vld [vmem:[#allocation5 + $0x468] sm:$0xf]
    %v514 = vld [vmem:[#allocation5 + $0x46c] sm:$0xf]
    %v515 = vld [vmem:[#allocation5 + $0x470] sm:$0xf]
    %v516 = vld [vmem:[#allocation5 + $0x474] sm:$0xf]
    %v517 = vld [vmem:[#allocation5 + $0x478] sm:$0xf]
    %v518 = vld [vmem:[#allocation5 + $0x47c] sm:$0xf]
    %v519 = vld [vmem:[#allocation5 + $0x480] sm:$0xf]
    %v520 = vld [vmem:[#allocation5 + $0x484] sm:$0xf]
    %v521 = vld [vmem:[#allocation5 + $0x488] sm:$0xf]
    %v522 = vld [vmem:[#allocation5 + $0x48c] sm:$0xf]
    %v523 = vld [vmem:[#allocation5 + $0x490] sm:$0xf]
    %v524 = vld [vmem:[#allocation5 + $0x494] sm:$0xf]
    %v525 = vld [vmem:[#allocation5 + $0x498] sm:$0xf]
    %v526 = vld [vmem:[#allocation5 + $0x49c] sm:$0xf]
    %v527 = vld [vmem:[#allocation5 + $0x4a0] sm:$0xf]
    %v528 = vld [vmem:[#allocation5 + $0x4a4] sm:$0xf]
    %v529 = vld [vmem:[#allocation5 + $0x4a8] sm:$0xf]
    %v530 = vld [vmem:[#allocation5 + $0x4ac] sm:$0xf]
    %v531 = vld [vmem:[#allocation5 + $0x4b0] sm:$0xf]
    %v532 = vld [vmem:[#allocation5 + $0x4b4] sm:$0xf]
    %v533 = vld [vmem:[#allocation5 + $0x4b8] sm:$0xf]
    %v534 = vld [vmem:[#allocation5 + $0x4bc] sm:$0xf]
    %v535 = vld [vmem:[#allocation5 + $0x4c0] sm:$0xf]
    %v536 = vld [vmem:[#allocation5 + $0x4c4] sm:$0xf]
    %v537 = vld [vmem:[#allocation5 + $0x4c8] sm:$0xf]
    %v538 = vld [vmem:[#allocation5 + $0x4cc] sm:$0xf]
    %v539 = vld [vmem:[#allocation5 + $0x4d0] sm:$0xf]
    %v540 = vld [vmem:[#allocation5 + $0x4d4] sm:$0xf]
    %v541 = vld [vmem:[#allocation5 + $0x4d8] sm:$0xf]
    %v542 = vld [vmem:[#allocation5 + $0x4dc] sm:$0xf]
    %v543 = vld [vmem:[#allocation5 + $0x4e0] sm:$0xf]
    %v544 = vld [vmem:[#allocation5 + $0x4e4] sm:$0xf]
    %v545 = vld [vmem:[#allocation5 + $0x4e8] sm:$0xf]
    %v546 = vld [vmem:[#allocation5 + $0x4ec] sm:$0xf]
    %v547 = vld [vmem:[#allocation5 + $0x4f0] sm:$0xf]
    %v548 = vld [vmem:[#allocation5 + $0x4f4] sm:$0xf]
    %v549 = vld [vmem:[#allocation5 + $0x4f8] sm:$0xf]
    %v550 = vld [vmem:[#allocation5 + $0x4fc] sm:$0xf]
    %v551 = vld [vmem:[#allocation5 + $0x500] sm:$0xf]
    %v552 = vld [vmem:[#allocation5 + $0x504] sm:$0xf]
    %v553 = vld [vmem:[#allocation5 + $0x508] sm:$0xf]
    %v554 = vld [vmem:[#allocation5 + $0x50c] sm:$0xf]
    %v555 = vld [vmem:[#allocation5 + $0x510] sm:$0xf]
    %v556 = vld [vmem:[#allocation5 + $0x514] sm:$0xf]
    %v557 = vld [vmem:[#allocation5 + $0x518] sm:$0xf]
    %v558 = vld [vmem:[#allocation5 + $0x51c] sm:$0xf]
    %v559 = vld [vmem:[#allocation5 + $0x520] sm:$0xf]
    %v560 = vld [vmem:[#allocation5 + $0x524] sm:$0xf]
    %v561 = vld [vmem:[#allocation5 + $0x528] sm:$0xf]
    %v562 = vld [vmem:[#allocation5 + $0x52c] sm:$0xf]
    %v563 = vld [vmem:[#allocation5 + $0x530] sm:$0xf]
    %v564 = vld [vmem:[#allocation5 + $0x534] sm:$0xf]
    %v565 = vld [vmem:[#allocation5 + $0x538] sm:$0xf]
    %v566 = vld [vmem:[#allocation5 + $0x53c] sm:$0xf]
    %v567 = vld [vmem:[#allocation5 + $0x540] sm:$0xf]
    %v568 = vld [vmem:[#allocation5 + $0x544] sm:$0xf]
    %v569 = vld [vmem:[#allocation5 + $0x548] sm:$0xf]
    %v570 = vld [vmem:[#allocation5 + $0x54c] sm:$0xf]
    %v571 = vld [vmem:[#allocation5 + $0x550] sm:$0xf]
    %v572 = vld [vmem:[#allocation5 + $0x554] sm:$0xf]
    %v573 = vld [vmem:[#allocation5 + $0x558] sm:$0xf]
    %v574 = vld [vmem:[#allocation5 + $0x55c] sm:$0xf]
    %v575 = vld [vmem:[#allocation5 + $0x560] sm:$0xf]
    %v576 = vld [vmem:[#allocation5 + $0x564] sm:$0xf]
    %v577 = vld [vmem:[#allocation5 + $0x568] sm:$0xf]
    %v578 = vld [vmem:[#allocation5 + $0x56c] sm:$0xf]
    %v579 = vld [vmem:[#allocation5 + $0x570] sm:$0xf]
    %v580 = vld [vmem:[#allocation5 + $0x574] sm:$0xf]
    %v581 = vld [vmem:[#allocation5 + $0x578] sm:$0xf]
    %v582 = vld [vmem:[#allocation5 + $0x57c] sm:$0xf]
    %v583 = vld [vmem:[#allocation5 + $0x580] sm:$0xf]
    %v584 = vld [vmem:[#allocation5 + $0x584] sm:$0xf]
    %v585 = vld [vmem:[#allocation5 + $0x588] sm:$0xf]
    %v586 = vld [vmem:[#allocation5 + $0x58c] sm:$0xf]
    %v587 = vld [vmem:[#allocation5 + $0x590] sm:$0xf]
    %v588 = vld [vmem:[#allocation5 + $0x594] sm:$0xf]
    %v589 = vld [vmem:[#allocation5 + $0x598] sm:$0xf]
    %v590 = vld [vmem:[#allocation5 + $0x59c] sm:$0xf]
    %v591 = vld [vmem:[#allocation5 + $0x5a0] sm:$0xf]
    %v592 = vld [vmem:[#allocation5 + $0x5a4] sm:$0xf]
    %v593 = vld [vmem:[#allocation5 + $0x5a8] sm:$0xf]
    %v594 = vld [vmem:[#allocation5 + $0x5ac] sm:$0xf]
    %v595 = vld [vmem:[#allocation5 + $0x5b0] sm:$0xf]
    %v596 = vld [vmem:[#allocation5 + $0x5b4] sm:$0xf]
    %v597 = vld [vmem:[#allocation5 + $0x5b8] sm:$0xf]
    %v598 = vld [vmem:[#allocation5 + $0x5bc] sm:$0xf]
    %v599 = vld [vmem:[#allocation5 + $0x5c0] sm:$0xf]
    %v600 = vld [vmem:[#allocation5 + $0x5c4] sm:$0xf]
    %v601 = vld [vmem:[#allocation5 + $0x5c8] sm:$0xf]
    %v602 = vld [vmem:[#allocation5 + $0x5cc] sm:$0xf]
    %v603 = vld [vmem:[#allocation5 + $0x5d0] sm:$0xf]
    %v604 = vld [vmem:[#allocation5 + $0x5d4] sm:$0xf]
    %v605 = vld [vmem:[#allocation5 + $0x5d8] sm:$0xf]
    %v606 = vld [vmem:[#allocation5 + $0x5dc] sm:$0xf]
    %v607 = vld [vmem:[#allocation5 + $0x5e0] sm:$0xf]
    %v608 = vld [vmem:[#allocation5 + $0x5e4] sm:$0xf]
    %v609 = vld [vmem:[#allocation5 + $0x5e8] sm:$0xf]
    %v610 = vld [vmem:[#allocation5 + $0x5ec] sm:$0xf]
    %v611 = vld [vmem:[#allocation5 + $0x5f0] sm:$0xf]
    %v612 = vld [vmem:[#allocation5 + $0x5f4] sm:$0xf]
    %v613 = vld [vmem:[#allocation5 + $0x5f8] sm:$0xf]
    %v614 = vld [vmem:[#allocation5 + $0x5fc] sm:$0xf]
    %v615 = vld [vmem:[#allocation5 + $0x600] sm:$0xf]
    %v616 = vld [vmem:[#allocation5 + $0x604] sm:$0xf]
    %v617 = vld [vmem:[#allocation5 + $0x608] sm:$0xf]
    %v618 = vld [vmem:[#allocation5 + $0x60c] sm:$0xf]
    %v619 = vld [vmem:[#allocation5 + $0x610] sm:$0xf]
    %v620 = vld [vmem:[#allocation5 + $0x614] sm:$0xf]
    %v621 = vld [vmem:[#allocation5 + $0x618] sm:$0xf]
    %v622 = vld [vmem:[#allocation5 + $0x61c] sm:$0xf]
    %v623 = vld [vmem:[#allocation5 + $0x620] sm:$0xf]
    %v624 = vld [vmem:[#allocation5 + $0x624] sm:$0xf]
    %v625 = vld [vmem:[#allocation5 + $0x628] sm:$0xf]
    %v626 = vld [vmem:[#allocation5 + $0x62c] sm:$0xf]
    %v627 = vld [vmem:[#allocation5 + $0x630] sm:$0xf]
    %v628 = vld [vmem:[#allocation5 + $0x634] sm:$0xf]
    %v629 = vld [vmem:[#allocation5 + $0x638] sm:$0xf]
    %v630 = vld [vmem:[#allocation5 + $0x63c] sm:$0xf]
    %v631 = vld [vmem:[#allocation5 + $0x640] sm:$0xf]
    %v632 = vld [vmem:[#allocation5 + $0x644] sm:$0xf]
    %v633 = vld [vmem:[#allocation5 + $0x648] sm:$0xf]
    %v634 = vld [vmem:[#allocation5 + $0x64c] sm:$0xf]
    %v635 = vld [vmem:[#allocation5 + $0x650] sm:$0xf]
    %v636 = vld [vmem:[#allocation5 + $0x654] sm:$0xf]
    %v637 = vld [vmem:[#allocation5 + $0x658] sm:$0xf]
    %v638 = vld [vmem:[#allocation5 + $0x65c] sm:$0xf]
    %v639 = vld [vmem:[#allocation5 + $0x660] sm:$0xf]
    %v640 = vld [vmem:[#allocation5 + $0x664] sm:$0xf]
    %v641 = vld [vmem:[#allocation5 + $0x668] sm:$0xf]
    %v642 = vld [vmem:[#allocation5 + $0x66c] sm:$0xf]
    %v643 = vld [vmem:[#allocation5 + $0x670] sm:$0xf]
    %v644 = vld [vmem:[#allocation5 + $0x674] sm:$0xf]
    %v645 = vld [vmem:[#allocation5 + $0x678] sm:$0xf]
    %v646 = vld [vmem:[#allocation5 + $0x67c] sm:$0xf]
    %v647 = vld [vmem:[#allocation5 + $0x680] sm:$0xf]
    %v648 = vld [vmem:[#allocation5 + $0x684] sm:$0xf]
    %v649 = vld [vmem:[#allocation5 + $0x688] sm:$0xf]
    %v650 = vld [vmem:[#allocation5 + $0x68c] sm:$0xf]
    %v651 = vld [vmem:[#allocation5 + $0x690] sm:$0xf]
    %v652 = vld [vmem:[#allocation5 + $0x694] sm:$0xf]
    %v653 = vld [vmem:[#allocation5 + $0x698] sm:$0xf]
    %v654 = vld [vmem:[#allocation5 + $0x69c] sm:$0xf]
    %v655 = vld [vmem:[#allocation5 + $0x6a0] sm:$0xf]
    %v656 = vld [vmem:[#allocation5 + $0x6a4] sm:$0xf]
    %v657 = vld [vmem:[#allocation5 + $0x6a8] sm:$0xf]
    %v658 = vld [vmem:[#allocation5 + $0x6ac] sm:$0xf]
    %v659 = vld [vmem:[#allocation5 + $0x6b0] sm:$0xf]
    %v660 = vld [vmem:[#allocation5 + $0x6b4] sm:$0xf]
    %v661 = vld [vmem:[#allocation5 + $0x6b8] sm:$0xf]
    %v662 = vld [vmem:[#allocation5 + $0x6bc] sm:$0xf]
    %v663 = vld [vmem:[#allocation5 + $0x6c0] sm:$0xf]
    %v664 = vld [vmem:[#allocation5 + $0x6c4] sm:$0xf]
    %v665 = vld [vmem:[#allocation5 + $0x6c8] sm:$0xf]
    %v666 = vld [vmem:[#allocation5 + $0x6cc] sm:$0xf]
    %v667 = vld [vmem:[#allocation5 + $0x6d0] sm:$0xf]
    %v668 = vld [vmem:[#allocation5 + $0x6d4] sm:$0xf]
    %v669 = vld [vmem:[#allocation5 + $0x6d8] sm:$0xf]
    %v670 = vld [vmem:[#allocation5 + $0x6dc] sm:$0xf]
    %v671 = vld [vmem:[#allocation5 + $0x6e0] sm:$0xf]
    %v672 = vld [vmem:[#allocation5 + $0x6e4] sm:$0xf]
    %v673 = vld [vmem:[#allocation5 + $0x6e8] sm:$0xf]
    %v674 = vld [vmem:[#allocation5 + $0x6ec] sm:$0xf]
    %v675 = vld [vmem:[#allocation5 + $0x6f0] sm:$0xf]
    %v676 = vld [vmem:[#allocation5 + $0x6f4] sm:$0xf]
    %v677 = vld [vmem:[#allocation5 + $0x6f8] sm:$0xf]
    %v678 = vld [vmem:[#allocation5 + $0x6fc] sm:$0xf]
    %v679 = vld [vmem:[#allocation5 + $0x700] sm:$0xf]
    %v680 = vld [vmem:[#allocation5 + $0x704] sm:$0xf]
    %v681 = vld [vmem:[#allocation5 + $0x708] sm:$0xf]
    %v682 = vld [vmem:[#allocation5 + $0x70c] sm:$0xf]
    %v683 = vld [vmem:[#allocation5 + $0x710] sm:$0xf]
    %v684 = vld [vmem:[#allocation5 + $0x714] sm:$0xf]
    %v685 = vld [vmem:[#allocation5 + $0x718] sm:$0xf]
    %v686 = vld [vmem:[#allocation5 + $0x71c] sm:$0xf]
    %v687 = vld [vmem:[#allocation5 + $0x720] sm:$0xf]
    %v688 = vld [vmem:[#allocation5 + $0x724] sm:$0xf]
    %v689 = vld [vmem:[#allocation5 + $0x728] sm:$0xf]
    %v690 = vld [vmem:[#allocation5 + $0x72c] sm:$0xf]
    %v691 = vld [vmem:[#allocation5 + $0x730] sm:$0xf]
    %v692 = vld [vmem:[#allocation5 + $0x734] sm:$0xf]
    %v693 = vld [vmem:[#allocation5 + $0x738] sm:$0xf]
    %v694 = vld [vmem:[#allocation5 + $0x73c] sm:$0xf]
    %v695 = vld [vmem:[#allocation5 + $0x740] sm:$0xf]
    %v696 = vld [vmem:[#allocation5 + $0x744] sm:$0xf]
    %v697 = vld [vmem:[#allocation5 + $0x748] sm:$0xf]
    %v698 = vld [vmem:[#allocation5 + $0x74c] sm:$0xf]
    %v699 = vld [vmem:[#allocation5 + $0x750] sm:$0xf]
    %v700 = vld [vmem:[#allocation5 + $0x754] sm:$0xf]
    %v701 = vld [vmem:[#allocation5 + $0x758] sm:$0xf]
    %v702 = vld [vmem:[#allocation5 + $0x75c] sm:$0xf]
    %v703 = vld [vmem:[#allocation5 + $0x760] sm:$0xf]
    %v704 = vld [vmem:[#allocation5 + $0x764] sm:$0xf]
    %v705 = vld [vmem:[#allocation5 + $0x768] sm:$0xf]
    %v706 = vld [vmem:[#allocation5 + $0x76c] sm:$0xf]
    %v707 = vld [vmem:[#allocation5 + $0x770] sm:$0xf]
    %v708 = vld [vmem:[#allocation5 + $0x774] sm:$0xf]
    %v709 = vld [vmem:[#allocation5 + $0x778] sm:$0xf]
    %v710 = vld [vmem:[#allocation5 + $0x77c] sm:$0xf]
    %v711 = vld [vmem:[#allocation5 + $0x780] sm:$0xf]
    %v712 = vld [vmem:[#allocation5 + $0x784] sm:$0xf]
    %v713 = vld [vmem:[#allocation5 + $0x788] sm:$0xf]
    %v714 = vld [vmem:[#allocation5 + $0x78c] sm:$0xf]
    %v715 = vld [vmem:[#allocation5 + $0x790] sm:$0xf]
    %v716 = vld [vmem:[#allocation5 + $0x794] sm:$0xf]
    %v717 = vld [vmem:[#allocation5 + $0x798] sm:$0xf]
    %v718 = vld [vmem:[#allocation5 + $0x79c] sm:$0xf]
    %v719 = vld [vmem:[#allocation5 + $0x7a0] sm:$0xf]
    %v720 = vld [vmem:[#allocation5 + $0x7a4] sm:$0xf]
    %v721 = vld [vmem:[#allocation5 + $0x7a8] sm:$0xf]
    %v722 = vld [vmem:[#allocation5 + $0x7ac] sm:$0xf]
    %v723 = vld [vmem:[#allocation5 + $0x7b0] sm:$0xf]
    %v724 = vld [vmem:[#allocation5 + $0x7b4] sm:$0xf]
    %v725 = vld [vmem:[#allocation5 + $0x7b8] sm:$0xf]
    %v726 = vld [vmem:[#allocation5 + $0x7bc] sm:$0xf]
    %v727 = vld [vmem:[#allocation5 + $0x7c0] sm:$0xf]
    %v728 = vld [vmem:[#allocation5 + $0x7c4] sm:$0xf]
    %v729 = vld [vmem:[#allocation5 + $0x7c8] sm:$0xf]
    %v730 = vld [vmem:[#allocation5 + $0x7cc] sm:$0xf]
    %v731 = vld [vmem:[#allocation5 + $0x7d0] sm:$0xf]
    %v732 = vld [vmem:[#allocation5 + $0x7d4] sm:$0xf]
    %v733 = vld [vmem:[#allocation5 + $0x7d8] sm:$0xf]
    %v734 = vld [vmem:[#allocation5 + $0x7dc] sm:$0xf]
    %v735 = vld [vmem:[#allocation5 + $0x7e0] sm:$0xf]
    %v736 = vld [vmem:[#allocation5 + $0x7e4] sm:$0xf]
    %v737 = vld [vmem:[#allocation5 + $0x7e8] sm:$0xf]
    %v738 = vld [vmem:[#allocation5 + $0x7ec] sm:$0xf]
    %v739 = vld [vmem:[#allocation5 + $0x7f0] sm:$0xf]
    %v740 = vld [vmem:[#allocation5 + $0x7f4] sm:$0xf]
    %v741 = vld [vmem:[#allocation5 + $0x7f8] sm:$0xf]
    %v742 = vld [vmem:[#allocation5 + $0x7fc] sm:$0xf]
    %v743 = vld [vmem:[#allocation5 + $0x800] sm:$0xf]
    %v744 = vld [vmem:[#allocation5 + $0x804] sm:$0xf]
    %v745 = vld [vmem:[#allocation5 + $0x808] sm:$0xf]
    %v746 = vld [vmem:[#allocation5 + $0x80c] sm:$0xf]
    %v747 = vld [vmem:[#allocation5 + $0x810] sm:$0xf]
    %v748 = vld [vmem:[#allocation5 + $0x814] sm:$0xf]
    %v749 = vld [vmem:[#allocation5 + $0x818] sm:$0xf]
    %v750 = vld [vmem:[#allocation5 + $0x81c] sm:$0xf]
    %v751 = vld [vmem:[#allocation5 + $0x820] sm:$0xf]
    %v752 = vld [vmem:[#allocation5 + $0x824] sm:$0xf]
    %v753 = vld [vmem:[#allocation5 + $0x828] sm:$0xf]
    %v754 = vld [vmem:[#allocation5 + $0x82c] sm:$0xf]
    %v755 = vld [vmem:[#allocation5 + $0x830] sm:$0xf]
    %v756 = vld [vmem:[#allocation5 + $0x834] sm:$0xf]
    %v757 = vld [vmem:[#allocation5 + $0x838] sm:$0xf]
    %v758 = vld [vmem:[#allocation5 + $0x83c] sm:$0xf]
    %v759 = vld [vmem:[#allocation5 + $0x840] sm:$0xf]
    %v760 = vld [vmem:[#allocation5 + $0x844] sm:$0xf]
    %v761 = vld [vmem:[#allocation5 + $0x848] sm:$0xf]
    %v762 = vld [vmem:[#allocation5 + $0x84c] sm:$0xf]
    %v763 = vld [vmem:[#allocation5 + $0x850] sm:$0xf]
    %v764 = vld [vmem:[#allocation5 + $0x854] sm:$0xf]
    %v765 = vld [vmem:[#allocation5 + $0x858] sm:$0xf]
    %v766 = vld [vmem:[#allocation5 + $0x85c] sm:$0xf]
    %v767 = vld [vmem:[#allocation5 + $0x860] sm:$0xf]
    %v768 = vld [vmem:[#allocation5 + $0x864] sm:$0xf]
    %v769 = vld [vmem:[#allocation5 + $0x868] sm:$0xf]
    %v770 = vld [vmem:[#allocation5 + $0x86c] sm:$0xf]
    %v771 = vld [vmem:[#allocation5 + $0x870] sm:$0xf]
    %v772 = vld [vmem:[#allocation5 + $0x874] sm:$0xf]
    %v773 = vld [vmem:[#allocation5 + $0x878] sm:$0xf]
    %v774 = vld [vmem:[#allocation5 + $0x87c] sm:$0xf]
    %v775 = vld [vmem:[#allocation5 + $0x880] sm:$0xf]
    %v776 = vld [vmem:[#allocation5 + $0x884] sm:$0xf]
    %v777 = vld [vmem:[#allocation5 + $0x888] sm:$0xf]
    %v778 = vld [vmem:[#allocation5 + $0x88c] sm:$0xf]
    %v779 = vld [vmem:[#allocation5 + $0x890] sm:$0xf]
    %v780 = vld [vmem:[#allocation5 + $0x894] sm:$0xf]
    %v781 = vld [vmem:[#allocation5 + $0x898] sm:$0xf]
    %v782 = vld [vmem:[#allocation5 + $0x89c] sm:$0xf]
    %v783 = vld [vmem:[#allocation5 + $0x8a0] sm:$0xf]
    %v784 = vld [vmem:[#allocation5 + $0x8a4] sm:$0xf]
    %v785 = vld [vmem:[#allocation5 + $0x8a8] sm:$0xf]
    %v786 = vld [vmem:[#allocation5 + $0x8ac] sm:$0xf]
    %v787 = vld [vmem:[#allocation5 + $0x8b0] sm:$0xf]
    %v788 = vld [vmem:[#allocation5 + $0x8b4] sm:$0xf]
    %v789 = vld [vmem:[#allocation5 + $0x8b8] sm:$0xf]
    %v790 = vld [vmem:[#allocation5 + $0x8bc] sm:$0xf]
    %v791 = vld [vmem:[#allocation5 + $0x8c0] sm:$0xf]
    %v792 = vld [vmem:[#allocation5 + $0x8c4] sm:$0xf]
    %v793 = vld [vmem:[#allocation5 + $0x8c8] sm:$0xf]
    %v794 = vld [vmem:[#allocation5 + $0x8cc] sm:$0xf]
    %v795 = vld [vmem:[#allocation5 + $0x8d0] sm:$0xf]
    %v796 = vld [vmem:[#allocation5 + $0x8d4] sm:$0xf]
    %v797 = vld [vmem:[#allocation5 + $0x8d8] sm:$0xf]
    %v798 = vld [vmem:[#allocation5 + $0x8dc] sm:$0xf]
    %v799 = vld [vmem:[#allocation5 + $0x8e0] sm:$0xf]
    %v800 = vld [vmem:[#allocation5 + $0x8e4] sm:$0xf]
    %v801 = vld [vmem:[#allocation5 + $0x8e8] sm:$0xf]
    %v802 = vld [vmem:[#allocation5 + $0x8ec] sm:$0xf]
    %v803 = vld [vmem:[#allocation5 + $0x8f0] sm:$0xf]
    %v804 = vld [vmem:[#allocation5 + $0x8f4] sm:$0xf]
    %v805 = vld [vmem:[#allocation5 + $0x8f8] sm:$0xf]
    %v806 = vld [vmem:[#allocation5 + $0x8fc] sm:$0xf]
    %v807 = vld [vmem:[#allocation5 + $0x900] sm:$0xf]
    %v808 = vld [vmem:[#allocation5 + $0x904] sm:$0xf]
    %v809 = vld [vmem:[#allocation5 + $0x908] sm:$0xf]
    %v810 = vld [vmem:[#allocation5 + $0x90c] sm:$0xf]
    %v811 = vld [vmem:[#allocation5 + $0x910] sm:$0xf]
    %v812 = vld [vmem:[#allocation5 + $0x914] sm:$0xf]
    %v813 = vld [vmem:[#allocation5 + $0x918] sm:$0xf]
    %v814 = vld [vmem:[#allocation5 + $0x91c] sm:$0xf]
    %v815 = vld [vmem:[#allocation5 + $0x920] sm:$0xf]
    %v816 = vld [vmem:[#allocation5 + $0x924] sm:$0xf]
    %v817 = vld [vmem:[#allocation5 + $0x928] sm:$0xf]
    %v818 = vld [vmem:[#allocation5 + $0x92c] sm:$0xf]
    %v819 = vld [vmem:[#allocation5 + $0x930] sm:$0xf]
    %v820 = vld [vmem:[#allocation5 + $0x934] sm:$0xf]
    %v821 = vld [vmem:[#allocation5 + $0x938] sm:$0xf]
    %v822 = vld [vmem:[#allocation5 + $0x93c] sm:$0xf]
    %v823 = vld [vmem:[#allocation5 + $0x940] sm:$0xf]
    %v824 = vld [vmem:[#allocation5 + $0x944] sm:$0xf]
    %v825 = vld [vmem:[#allocation5 + $0x948] sm:$0xf]
    %v826 = vld [vmem:[#allocation5 + $0x94c] sm:$0xf]
    %v827 = vld [vmem:[#allocation5 + $0x950] sm:$0xf]
    %v828 = vld [vmem:[#allocation5 + $0x954] sm:$0xf]
    %v829 = vld [vmem:[#allocation5 + $0x958] sm:$0xf]
    %v830 = vld [vmem:[#allocation5 + $0x95c] sm:$0xf]
    %v831 = vld [vmem:[#allocation7] sm:$0x1]
    %v833 = vlaneseq
    %v834 = vshrl.u32 %v833, 7
    %v835 = vsub.s32 0, %v834
    %v836 = vrot.slane %v831, %v835
    %v1438 = vunpack.c.l.b16 %v231
    %v1439 = vunpack.c.l.b16 %v232
    %v1440 = vunpack.c.l.b16 %v233
    %v1441 = vunpack.c.l.b16 %v234
    %v1442 = vunpack.c.l.b16 %v235
    %v1443 = vunpack.c.l.b16 %v236
    %v1444 = vunpack.c.l.b16 %v237
    %v1445 = vunpack.c.l.b16 %v238
    %v1446 = vunpack.c.l.b16 %v239
    %v1447 = vunpack.c.l.b16 %v240
    %v1448 = vunpack.c.l.b16 %v241
    %v1449 = vunpack.c.l.b16 %v242
    %v1450 = vunpack.c.l.b16 %v243
    %v1451 = vunpack.c.l.b16 %v244
    %v1452 = vunpack.c.l.b16 %v245
    %v1453 = vunpack.c.l.b16 %v246
    %v1454 = vunpack.c.l.b16 %v247
    %v1455 = vunpack.c.l.b16 %v248
    %v1456 = vunpack.c.l.b16 %v249
    %v1457 = vunpack.c.l.b16 %v250
    %v1458 = vunpack.c.l.b16 %v251
    %v1459 = vunpack.c.l.b16 %v252
    %v1460 = vunpack.c.l.b16 %v253
    %v1461 = vunpack.c.l.b16 %v254
    %v1462 = vunpack.c.l.b16 %v255
    %v1463 = vunpack.c.l.b16 %v256
    %v1464 = vunpack.c.l.b16 %v257
    %v1465 = vunpack.c.l.b16 %v258
    %v1466 = vunpack.c.l.b16 %v259
    %v1467 = vunpack.c.l.b16 %v260
    %v1468 = vunpack.c.l.b16 %v261
    %v1469 = vunpack.c.l.b16 %v262
    %v1470 = vunpack.c.l.b16 %v263
    %v1471 = vunpack.c.l.b16 %v264
    %v1472 = vunpack.c.l.b16 %v265
    %v1473 = vunpack.c.l.b16 %v266
    %v1474 = vunpack.c.l.b16 %v267
    %v1475 = vunpack.c.l.b16 %v268
    %v1476 = vunpack.c.l.b16 %v269
    %v1477 = vunpack.c.l.b16 %v270
    %v1478 = vunpack.c.l.b16 %v271
    %v1479 = vunpack.c.l.b16 %v272
    %v1480 = vunpack.c.l.b16 %v273
    %v1481 = vunpack.c.l.b16 %v274
    %v1482 = vunpack.c.l.b16 %v275
    %v1483 = vunpack.c.l.b16 %v276
    %v1484 = vunpack.c.l.b16 %v277
    %v1485 = vunpack.c.l.b16 %v278
    %v1486 = vunpack.c.l.b16 %v279
    %v1487 = vunpack.c.l.b16 %v280
    %v1488 = vunpack.c.l.b16 %v281
    %v1489 = vunpack.c.l.b16 %v282
    %v1490 = vunpack.c.l.b16 %v283
    %v1491 = vunpack.c.l.b16 %v284
    %v1492 = vunpack.c.l.b16 %v285
    %v1493 = vunpack.c.l.b16 %v286
    %v1494 = vunpack.c.l.b16 %v287
    %v1495 = vunpack.c.l.b16 %v288
    %v1496 = vunpack.c.l.b16 %v289
    %v1497 = vunpack.c.l.b16 %v290
    %v1498 = vunpack.c.l.b16 %v291
    %v1499 = vunpack.c.l.b16 %v292
    %v1500 = vunpack.c.l.b16 %v293
    %v1501 = vunpack.c.l.b16 %v294
    %v1502 = vunpack.c.l.b16 %v295
    %v1503 = vunpack.c.l.b16 %v296
    %v1504 = vunpack.c.l.b16 %v297
    %v1505 = vunpack.c.l.b16 %v298
    %v1506 = vunpack.c.l.b16 %v299
    %v1507 = vunpack.c.l.b16 %v300
    %v1508 = vunpack.c.l.b16 %v301
    %v1509 = vunpack.c.l.b16 %v302
    %v1510 = vunpack.c.l.b16 %v303
    %v1511 = vunpack.c.l.b16 %v304
    %v1512 = vunpack.c.l.b16 %v305
    %v1513 = vunpack.c.l.b16 %v306
    %v1514 = vunpack.c.l.b16 %v307
    %v1515 = vunpack.c.l.b16 %v308
    %v1516 = vunpack.c.l.b16 %v309
    %v1517 = vunpack.c.l.b16 %v310
    %v1518 = vunpack.c.l.b16 %v311
    %v1519 = vunpack.c.l.b16 %v312
    %v1520 = vunpack.c.l.b16 %v313
    %v1521 = vunpack.c.l.b16 %v314
    %v1522 = vunpack.c.l.b16 %v315
    %v1523 = vunpack.c.l.b16 %v316
    %v1524 = vunpack.c.l.b16 %v317
    %v1525 = vunpack.c.l.b16 %v318
    %v1526 = vunpack.c.l.b16 %v319
    %v1527 = vunpack.c.l.b16 %v320
    %v1528 = vunpack.c.l.b16 %v321
    %v1529 = vunpack.c.l.b16 %v322
    %v1530 = vunpack.c.l.b16 %v323
    %v1531 = vunpack.c.l.b16 %v324
    %v1532 = vunpack.c.l.b16 %v325
    %v1533 = vunpack.c.l.b16 %v326
    %v1534 = vunpack.c.l.b16 %v327
    %v1535 = vunpack.c.l.b16 %v328
    %v1536 = vunpack.c.l.b16 %v329
    %v1537 = vunpack.c.l.b16 %v330
    %v1538 = vunpack.c.l.b16 %v331
    %v1539 = vunpack.c.l.b16 %v332
    %v1540 = vunpack.c.l.b16 %v333
    %v1541 = vunpack.c.l.b16 %v334
    %v1542 = vunpack.c.l.b16 %v335
    %v1543 = vunpack.c.l.b16 %v336
    %v1544 = vunpack.c.l.b16 %v337
    %v1545 = vunpack.c.l.b16 %v338
    %v1546 = vunpack.c.l.b16 %v339
    %v1547 = vunpack.c.l.b16 %v340
    %v1548 = vunpack.c.l.b16 %v341
    %v1549 = vunpack.c.l.b16 %v342
    %v1550 = vunpack.c.l.b16 %v343
    %v1551 = vunpack.c.l.b16 %v344
    %v1552 = vunpack.c.l.b16 %v345
    %v1553 = vunpack.c.l.b16 %v346
    %v1554 = vunpack.c.l.b16 %v347
    %v1555 = vunpack.c.l.b16 %v348
    %v1556 = vunpack.c.l.b16 %v349
    %v1557 = vunpack.c.l.b16 %v350
    %v1558 = vunpack.c.l.b16 %v351
    %v1559 = vunpack.c.l.b16 %v352
    %v1560 = vunpack.c.l.b16 %v353
    %v1561 = vunpack.c.l.b16 %v354
    %v1562 = vunpack.c.l.b16 %v355
    %v1563 = vunpack.c.l.b16 %v356
    %v1564 = vunpack.c.l.b16 %v357
    %v1565 = vunpack.c.l.b16 %v358
    %v1566 = vunpack.c.l.b16 %v359
    %v1567 = vunpack.c.l.b16 %v360
    %v1568 = vunpack.c.l.b16 %v361
    %v1569 = vunpack.c.l.b16 %v362
    %v1570 = vunpack.c.l.b16 %v363
    %v1571 = vunpack.c.l.b16 %v364
    %v1572 = vunpack.c.l.b16 %v365
    %v1573 = vunpack.c.l.b16 %v366
    %v1574 = vunpack.c.l.b16 %v367
    %v1575 = vunpack.c.l.b16 %v368
    %v1576 = vunpack.c.l.b16 %v369
    %v1577 = vunpack.c.l.b16 %v370
    %v1578 = vunpack.c.l.b16 %v371
    %v1579 = vunpack.c.l.b16 %v372
    %v1580 = vunpack.c.l.b16 %v373
    %v1581 = vunpack.c.l.b16 %v374
    %v1582 = vunpack.c.l.b16 %v375
    %v1583 = vunpack.c.l.b16 %v376
    %v1584 = vunpack.c.l.b16 %v377
    %v1585 = vunpack.c.l.b16 %v378
    %v1586 = vunpack.c.l.b16 %v379
    %v1587 = vunpack.c.l.b16 %v380
    %v1588 = vunpack.c.l.b16 %v381
    %v1589 = vunpack.c.l.b16 %v382
    %v1590 = vunpack.c.l.b16 %v383
    %v1591 = vunpack.c.l.b16 %v384
    %v1592 = vunpack.c.l.b16 %v385
    %v1593 = vunpack.c.l.b16 %v386
    %v1594 = vunpack.c.l.b16 %v387
    %v1595 = vunpack.c.l.b16 %v388
    %v1596 = vunpack.c.l.b16 %v389
    %v1597 = vunpack.c.l.b16 %v390
    %v1598 = vunpack.c.l.b16 %v391
    %v1599 = vunpack.c.l.b16 %v392
    %v1600 = vunpack.c.l.b16 %v393
    %v1601 = vunpack.c.l.b16 %v394
    %v1602 = vunpack.c.l.b16 %v395
    %v1603 = vunpack.c.l.b16 %v396
    %v1604 = vunpack.c.l.b16 %v397
    %v1605 = vunpack.c.l.b16 %v398
    %v1606 = vunpack.c.l.b16 %v399
    %v1607 = vunpack.c.l.b16 %v400
    %v1608 = vunpack.c.l.b16 %v401
    %v1609 = vunpack.c.l.b16 %v402
    %v1610 = vunpack.c.l.b16 %v403
    %v1611 = vunpack.c.l.b16 %v404
    %v1612 = vunpack.c.l.b16 %v405
    %v1613 = vunpack.c.l.b16 %v406
    %v1614 = vunpack.c.l.b16 %v407
    %v1615 = vunpack.c.l.b16 %v408
    %v1616 = vunpack.c.l.b16 %v409
    %v1617 = vunpack.c.l.b16 %v410
    %v1618 = vunpack.c.l.b16 %v411
    %v1619 = vunpack.c.l.b16 %v412
    %v1620 = vunpack.c.l.b16 %v413
    %v1621 = vunpack.c.l.b16 %v414
    %v1622 = vunpack.c.l.b16 %v415
    %v1623 = vunpack.c.l.b16 %v416
    %v1624 = vunpack.c.l.b16 %v417
    %v1625 = vunpack.c.l.b16 %v418
    %v1626 = vunpack.c.l.b16 %v419
    %v1627 = vunpack.c.l.b16 %v420
    %v1628 = vunpack.c.l.b16 %v421
    %v1629 = vunpack.c.l.b16 %v422
    %v1630 = vunpack.c.l.b16 %v423
    %v1631 = vunpack.c.l.b16 %v424
    %v1632 = vunpack.c.l.b16 %v425
    %v1633 = vunpack.c.l.b16 %v426
    %v1634 = vunpack.c.l.b16 %v427
    %v1635 = vunpack.c.l.b16 %v428
    %v1636 = vunpack.c.l.b16 %v429
    %v1637 = vunpack.c.l.b16 %v430
    %v1638 = vunpack.c.l.b16 %v431
    %v1639 = vunpack.c.l.b16 %v432
    %v1640 = vunpack.c.l.b16 %v433
    %v1641 = vunpack.c.l.b16 %v434
    %v1642 = vunpack.c.l.b16 %v435
    %v1643 = vunpack.c.l.b16 %v436
    %v1644 = vunpack.c.l.b16 %v437
    %v1645 = vunpack.c.l.b16 %v438
    %v1646 = vunpack.c.l.b16 %v439
    %v1647 = vunpack.c.l.b16 %v440
    %v1648 = vunpack.c.l.b16 %v441
    %v1649 = vunpack.c.l.b16 %v442
    %v1650 = vunpack.c.l.b16 %v443
    %v1651 = vunpack.c.l.b16 %v444
    %v1652 = vunpack.c.l.b16 %v445
    %v1653 = vunpack.c.l.b16 %v446
    %v1654 = vunpack.c.l.b16 %v447
    %v1655 = vunpack.c.l.b16 %v448
    %v1656 = vunpack.c.l.b16 %v449
    %v1657 = vunpack.c.l.b16 %v450
    %v1658 = vunpack.c.l.b16 %v451
    %v1659 = vunpack.c.l.b16 %v452
    %v1660 = vunpack.c.l.b16 %v453
    %v1661 = vunpack.c.l.b16 %v454
    %v1662 = vunpack.c.l.b16 %v455
    %v1663 = vunpack.c.l.b16 %v456
    %v1664 = vunpack.c.l.b16 %v457
    %v1665 = vunpack.c.l.b16 %v458
    %v1666 = vunpack.c.l.b16 %v459
    %v1667 = vunpack.c.l.b16 %v460
    %v1668 = vunpack.c.l.b16 %v461
    %v1669 = vunpack.c.l.b16 %v462
    %v1670 = vunpack.c.l.b16 %v463
    %v1671 = vunpack.c.l.b16 %v464
    %v1672 = vunpack.c.l.b16 %v465
    %v1673 = vunpack.c.l.b16 %v466
    %v1674 = vunpack.c.l.b16 %v467
    %v1675 = vunpack.c.l.b16 %v468
    %v1676 = vunpack.c.l.b16 %v469
    %v1677 = vunpack.c.l.b16 %v470
    %v1678 = vunpack.c.l.b16 %v471
    %v1679 = vunpack.c.l.b16 %v472
    %v1680 = vunpack.c.l.b16 %v473
    %v1681 = vunpack.c.l.b16 %v474
    %v1682 = vunpack.c.l.b16 %v475
    %v1683 = vunpack.c.l.b16 %v476
    %v1684 = vunpack.c.l.b16 %v477
    %v1685 = vunpack.c.l.b16 %v478
    %v1686 = vunpack.c.l.b16 %v479
    %v1687 = vunpack.c.l.b16 %v480
    %v1688 = vunpack.c.l.b16 %v481
    %v1689 = vunpack.c.l.b16 %v482
    %v1690 = vunpack.c.l.b16 %v483
    %v1691 = vunpack.c.l.b16 %v484
    %v1692 = vunpack.c.l.b16 %v485
    %v1693 = vunpack.c.l.b16 %v486
    %v1694 = vunpack.c.l.b16 %v487
    %v1695 = vunpack.c.l.b16 %v488
    %v1696 = vunpack.c.l.b16 %v489
    %v1697 = vunpack.c.l.b16 %v490
    %v1698 = vunpack.c.l.b16 %v491
    %v1699 = vunpack.c.l.b16 %v492
    %v1700 = vunpack.c.l.b16 %v493
    %v1701 = vunpack.c.l.b16 %v494
    %v1702 = vunpack.c.l.b16 %v495
    %v1703 = vunpack.c.l.b16 %v496
    %v1704 = vunpack.c.l.b16 %v497
    %v1705 = vunpack.c.l.b16 %v498
    %v1706 = vunpack.c.l.b16 %v499
    %v1707 = vunpack.c.l.b16 %v500
    %v1708 = vunpack.c.l.b16 %v501
    %v1709 = vunpack.c.l.b16 %v502
    %v1710 = vunpack.c.l.b16 %v503
    %v1711 = vunpack.c.l.b16 %v504
    %v1712 = vunpack.c.l.b16 %v505
    %v1713 = vunpack.c.l.b16 %v506
    %v1714 = vunpack.c.l.b16 %v507
    %v1715 = vunpack.c.l.b16 %v508
    %v1716 = vunpack.c.l.b16 %v509
    %v1717 = vunpack.c.l.b16 %v510
    %v1718 = vunpack.c.l.b16 %v511
    %v1719 = vunpack.c.l.b16 %v512
    %v1720 = vunpack.c.l.b16 %v513
    %v1721 = vunpack.c.l.b16 %v514
    %v1722 = vunpack.c.l.b16 %v515
    %v1723 = vunpack.c.l.b16 %v516
    %v1724 = vunpack.c.l.b16 %v517
    %v1725 = vunpack.c.l.b16 %v518
    %v1726 = vunpack.c.l.b16 %v519
    %v1727 = vunpack.c.l.b16 %v520
    %v1728 = vunpack.c.l.b16 %v521
    %v1729 = vunpack.c.l.b16 %v522
    %v1730 = vunpack.c.l.b16 %v523
    %v1731 = vunpack.c.l.b16 %v524
    %v1732 = vunpack.c.l.b16 %v525
    %v1733 = vunpack.c.l.b16 %v526
    %v1734 = vunpack.c.l.b16 %v527
    %v1735 = vunpack.c.l.b16 %v528
    %v1736 = vunpack.c.l.b16 %v529
    %v1737 = vunpack.c.l.b16 %v530
    %v1738 = vunpack.c.l.b16 %v531
    %v1739 = vunpack.c.l.b16 %v532
    %v1740 = vunpack.c.l.b16 %v533
    %v1741 = vunpack.c.l.b16 %v534
    %v1742 = vunpack.c.l.b16 %v535
    %v1743 = vunpack.c.l.b16 %v536
    %v1744 = vunpack.c.l.b16 %v537
    %v1745 = vunpack.c.l.b16 %v538
    %v1746 = vunpack.c.l.b16 %v539
    %v1747 = vunpack.c.l.b16 %v540
    %v1748 = vunpack.c.l.b16 %v541
    %v1749 = vunpack.c.l.b16 %v542
    %v1750 = vunpack.c.l.b16 %v543
    %v1751 = vunpack.c.l.b16 %v544
    %v1752 = vunpack.c.l.b16 %v545
    %v1753 = vunpack.c.l.b16 %v546
    %v1754 = vunpack.c.l.b16 %v547
    %v1755 = vunpack.c.l.b16 %v548
    %v1756 = vunpack.c.l.b16 %v549
    %v1757 = vunpack.c.l.b16 %v550
    %v1758 = vunpack.c.l.b16 %v551
    %v1759 = vunpack.c.l.b16 %v552
    %v1760 = vunpack.c.l.b16 %v553
    %v1761 = vunpack.c.l.b16 %v554
    %v1762 = vunpack.c.l.b16 %v555
    %v1763 = vunpack.c.l.b16 %v556
    %v1764 = vunpack.c.l.b16 %v557
    %v1765 = vunpack.c.l.b16 %v558
    %v1766 = vunpack.c.l.b16 %v559
    %v1767 = vunpack.c.l.b16 %v560
    %v1768 = vunpack.c.l.b16 %v561
    %v1769 = vunpack.c.l.b16 %v562
    %v1770 = vunpack.c.l.b16 %v563
    %v1771 = vunpack.c.l.b16 %v564
    %v1772 = vunpack.c.l.b16 %v565
    %v1773 = vunpack.c.l.b16 %v566
    %v1774 = vunpack.c.l.b16 %v567
    %v1775 = vunpack.c.l.b16 %v568
    %v1776 = vunpack.c.l.b16 %v569
    %v1777 = vunpack.c.l.b16 %v570
    %v1778 = vunpack.c.l.b16 %v571
    %v1779 = vunpack.c.l.b16 %v572
    %v1780 = vunpack.c.l.b16 %v573
    %v1781 = vunpack.c.l.b16 %v574
    %v1782 = vunpack.c.l.b16 %v575
    %v1783 = vunpack.c.l.b16 %v576
    %v1784 = vunpack.c.l.b16 %v577
    %v1785 = vunpack.c.l.b16 %v578
    %v1786 = vunpack.c.l.b16 %v579
    %v1787 = vunpack.c.l.b16 %v580
    %v1788 = vunpack.c.l.b16 %v581
    %v1789 = vunpack.c.l.b16 %v582
    %v1790 = vunpack.c.l.b16 %v583
    %v1791 = vunpack.c.l.b16 %v584
    %v1792 = vunpack.c.l.b16 %v585
    %v1793 = vunpack.c.l.b16 %v586
    %v1794 = vunpack.c.l.b16 %v587
    %v1795 = vunpack.c.l.b16 %v588
    %v1796 = vunpack.c.l.b16 %v589
    %v1797 = vunpack.c.l.b16 %v590
    %v1798 = vunpack.c.l.b16 %v591
    %v1799 = vunpack.c.l.b16 %v592
    %v1800 = vunpack.c.l.b16 %v593
    %v1801 = vunpack.c.l.b16 %v594
    %v1802 = vunpack.c.l.b16 %v595
    %v1803 = vunpack.c.l.b16 %v596
    %v1804 = vunpack.c.l.b16 %v597
    %v1805 = vunpack.c.l.b16 %v598
    %v1806 = vunpack.c.l.b16 %v599
    %v1807 = vunpack.c.l.b16 %v600
    %v1808 = vunpack.c.l.b16 %v601
    %v1809 = vunpack.c.l.b16 %v602
    %v1810 = vunpack.c.l.b16 %v603
    %v1811 = vunpack.c.l.b16 %v604
    %v1812 = vunpack.c.l.b16 %v605
    %v1813 = vunpack.c.l.b16 %v606
    %v1814 = vunpack.c.l.b16 %v607
    %v1815 = vunpack.c.l.b16 %v608
    %v1816 = vunpack.c.l.b16 %v609
    %v1817 = vunpack.c.l.b16 %v610
    %v1818 = vunpack.c.l.b16 %v611
    %v1819 = vunpack.c.l.b16 %v612
    %v1820 = vunpack.c.l.b16 %v613
    %v1821 = vunpack.c.l.b16 %v614
    %v1822 = vunpack.c.l.b16 %v615
    %v1823 = vunpack.c.l.b16 %v616
    %v1824 = vunpack.c.l.b16 %v617
    %v1825 = vunpack.c.l.b16 %v618
    %v1826 = vunpack.c.l.b16 %v619
    %v1827 = vunpack.c.l.b16 %v620
    %v1828 = vunpack.c.l.b16 %v621
    %v1829 = vunpack.c.l.b16 %v622
    %v1830 = vunpack.c.l.b16 %v623
    %v1831 = vunpack.c.l.b16 %v624
    %v1832 = vunpack.c.l.b16 %v625
    %v1833 = vunpack.c.l.b16 %v626
    %v1834 = vunpack.c.l.b16 %v627
    %v1835 = vunpack.c.l.b16 %v628
    %v1836 = vunpack.c.l.b16 %v629
    %v1837 = vunpack.c.l.b16 %v630
    %v1838 = vunpack.c.l.b16 %v631
    %v1839 = vunpack.c.l.b16 %v632
    %v1840 = vunpack.c.l.b16 %v633
    %v1841 = vunpack.c.l.b16 %v634
    %v1842 = vunpack.c.l.b16 %v635
    %v1843 = vunpack.c.l.b16 %v636
    %v1844 = vunpack.c.l.b16 %v637
    %v1845 = vunpack.c.l.b16 %v638
    %v1846 = vunpack.c.l.b16 %v639
    %v1847 = vunpack.c.l.b16 %v640
    %v1848 = vunpack.c.l.b16 %v641
    %v1849 = vunpack.c.l.b16 %v642
    %v1850 = vunpack.c.l.b16 %v643
    %v1851 = vunpack.c.l.b16 %v644
    %v1852 = vunpack.c.l.b16 %v645
    %v1853 = vunpack.c.l.b16 %v646
    %v1854 = vunpack.c.l.b16 %v647
    %v1855 = vunpack.c.l.b16 %v648
    %v1856 = vunpack.c.l.b16 %v649
    %v1857 = vunpack.c.l.b16 %v650
    %v1858 = vunpack.c.l.b16 %v651
    %v1859 = vunpack.c.l.b16 %v652
    %v1860 = vunpack.c.l.b16 %v653
    %v1861 = vunpack.c.l.b16 %v654
    %v1862 = vunpack.c.l.b16 %v655
    %v1863 = vunpack.c.l.b16 %v656
    %v1864 = vunpack.c.l.b16 %v657
    %v1865 = vunpack.c.l.b16 %v658
    %v1866 = vunpack.c.l.b16 %v659
    %v1867 = vunpack.c.l.b16 %v660
    %v1868 = vunpack.c.l.b16 %v661
    %v1869 = vunpack.c.l.b16 %v662
    %v1870 = vunpack.c.l.b16 %v663
    %v1871 = vunpack.c.l.b16 %v664
    %v1872 = vunpack.c.l.b16 %v665
    %v1873 = vunpack.c.l.b16 %v666
    %v1874 = vunpack.c.l.b16 %v667
    %v1875 = vunpack.c.l.b16 %v668
    %v1876 = vunpack.c.l.b16 %v669
    %v1877 = vunpack.c.l.b16 %v670
    %v1878 = vunpack.c.l.b16 %v671
    %v1879 = vunpack.c.l.b16 %v672
    %v1880 = vunpack.c.l.b16 %v673
    %v1881 = vunpack.c.l.b16 %v674
    %v1882 = vunpack.c.l.b16 %v675
    %v1883 = vunpack.c.l.b16 %v676
    %v1884 = vunpack.c.l.b16 %v677
    %v1885 = vunpack.c.l.b16 %v678
    %v1886 = vunpack.c.l.b16 %v679
    %v1887 = vunpack.c.l.b16 %v680
    %v1888 = vunpack.c.l.b16 %v681
    %v1889 = vunpack.c.l.b16 %v682
    %v1890 = vunpack.c.l.b16 %v683
    %v1891 = vunpack.c.l.b16 %v684
    %v1892 = vunpack.c.l.b16 %v685
    %v1893 = vunpack.c.l.b16 %v686
    %v1894 = vunpack.c.l.b16 %v687
    %v1895 = vunpack.c.l.b16 %v688
    %v1896 = vunpack.c.l.b16 %v689
    %v1897 = vunpack.c.l.b16 %v690
    %v1898 = vunpack.c.l.b16 %v691
    %v1899 = vunpack.c.l.b16 %v692
    %v1900 = vunpack.c.l.b16 %v693
    %v1901 = vunpack.c.l.b16 %v694
    %v1902 = vunpack.c.l.b16 %v695
    %v1903 = vunpack.c.l.b16 %v696
    %v1904 = vunpack.c.l.b16 %v697
    %v1905 = vunpack.c.l.b16 %v698
    %v1906 = vunpack.c.l.b16 %v699
    %v1907 = vunpack.c.l.b16 %v700
    %v1908 = vunpack.c.l.b16 %v701
    %v1909 = vunpack.c.l.b16 %v702
    %v1910 = vunpack.c.l.b16 %v703
    %v1911 = vunpack.c.l.b16 %v704
    %v1912 = vunpack.c.l.b16 %v705
    %v1913 = vunpack.c.l.b16 %v706
    %v1914 = vunpack.c.l.b16 %v707
    %v1915 = vunpack.c.l.b16 %v708
    %v1916 = vunpack.c.l.b16 %v709
    %v1917 = vunpack.c.l.b16 %v710
    %v1918 = vunpack.c.l.b16 %v711
    %v1919 = vunpack.c.l.b16 %v712
    %v1920 = vunpack.c.l.b16 %v713
    %v1921 = vunpack.c.l.b16 %v714
    %v1922 = vunpack.c.l.b16 %v715
    %v1923 = vunpack.c.l.b16 %v716
    %v1924 = vunpack.c.l.b16 %v717
    %v1925 = vunpack.c.l.b16 %v718
    %v1926 = vunpack.c.l.b16 %v719
    %v1927 = vunpack.c.l.b16 %v720
    %v1928 = vunpack.c.l.b16 %v721
    %v1929 = vunpack.c.l.b16 %v722
    %v1930 = vunpack.c.l.b16 %v723
    %v1931 = vunpack.c.l.b16 %v724
    %v1932 = vunpack.c.l.b16 %v725
    %v1933 = vunpack.c.l.b16 %v726
    %v1934 = vunpack.c.l.b16 %v727
    %v1935 = vunpack.c.l.b16 %v728
    %v1936 = vunpack.c.l.b16 %v729
    %v1937 = vunpack.c.l.b16 %v730
    %v1938 = vunpack.c.l.b16 %v731
    %v1939 = vunpack.c.l.b16 %v732
    %v1940 = vunpack.c.l.b16 %v733
    %v1941 = vunpack.c.l.b16 %v734
    %v1942 = vunpack.c.l.b16 %v735
    %v1943 = vunpack.c.l.b16 %v736
    %v1944 = vunpack.c.l.b16 %v737
    %v1945 = vunpack.c.l.b16 %v738
    %v1946 = vunpack.c.l.b16 %v739
    %v1947 = vunpack.c.l.b16 %v740
    %v1948 = vunpack.c.l.b16 %v741
    %v1949 = vunpack.c.l.b16 %v742
    %v1950 = vunpack.c.l.b16 %v743
    %v1951 = vunpack.c.l.b16 %v744
    %v1952 = vunpack.c.l.b16 %v745
    %v1953 = vunpack.c.l.b16 %v746
    %v1954 = vunpack.c.l.b16 %v747
    %v1955 = vunpack.c.l.b16 %v748
    %v1956 = vunpack.c.l.b16 %v749
    %v1957 = vunpack.c.l.b16 %v750
    %v1958 = vunpack.c.l.b16 %v751
    %v1959 = vunpack.c.l.b16 %v752
    %v1960 = vunpack.c.l.b16 %v753
    %v1961 = vunpack.c.l.b16 %v754
    %v1962 = vunpack.c.l.b16 %v755
    %v1963 = vunpack.c.l.b16 %v756
    %v1964 = vunpack.c.l.b16 %v757
    %v1965 = vunpack.c.l.b16 %v758
    %v1966 = vunpack.c.l.b16 %v759
    %v1967 = vunpack.c.l.b16 %v760
    %v1968 = vunpack.c.l.b16 %v761
    %v1969 = vunpack.c.l.b16 %v762
    %v1970 = vunpack.c.l.b16 %v763
    %v1971 = vunpack.c.l.b16 %v764
    %v1972 = vunpack.c.l.b16 %v765
    %v1973 = vunpack.c.l.b16 %v766
    %v1974 = vunpack.c.l.b16 %v767
    %v1975 = vunpack.c.l.b16 %v768
    %v1976 = vunpack.c.l.b16 %v769
    %v1977 = vunpack.c.l.b16 %v770
    %v1978 = vunpack.c.l.b16 %v771
    %v1979 = vunpack.c.l.b16 %v772
    %v1980 = vunpack.c.l.b16 %v773
    %v1981 = vunpack.c.l.b16 %v774
    %v1982 = vunpack.c.l.b16 %v775
    %v1983 = vunpack.c.l.b16 %v776
    %v1984 = vunpack.c.l.b16 %v777
    %v1985 = vunpack.c.l.b16 %v778
    %v1986 = vunpack.c.l.b16 %v779
    %v1987 = vunpack.c.l.b16 %v780
    %v1988 = vunpack.c.l.b16 %v781
    %v1989 = vunpack.c.l.b16 %v782
    %v1990 = vunpack.c.l.b16 %v783
    %v1991 = vunpack.c.l.b16 %v784
    %v1992 = vunpack.c.l.b16 %v785
    %v1993 = vunpack.c.l.b16 %v786
    %v1994 = vunpack.c.l.b16 %v787
    %v1995 = vunpack.c.l.b16 %v788
    %v1996 = vunpack.c.l.b16 %v789
    %v1997 = vunpack.c.l.b16 %v790
    %v1998 = vunpack.c.l.b16 %v791
    %v1999 = vunpack.c.l.b16 %v792
    %v2000 = vunpack.c.l.b16 %v793
    %v2001 = vunpack.c.l.b16 %v794
    %v2002 = vunpack.c.l.b16 %v795
    %v2003 = vunpack.c.l.b16 %v796
    %v2004 = vunpack.c.l.b16 %v797
    %v2005 = vunpack.c.l.b16 %v798
    %v2006 = vunpack.c.l.b16 %v799
    %v2007 = vunpack.c.l.b16 %v800
    %v2008 = vunpack.c.l.b16 %v801
    %v2009 = vunpack.c.l.b16 %v802
    %v2010 = vunpack.c.l.b16 %v803
    %v2011 = vunpack.c.l.b16 %v804
    %v2012 = vunpack.c.l.b16 %v805
    %v2013 = vunpack.c.l.b16 %v806
    %v2014 = vunpack.c.l.b16 %v807
    %v2015 = vunpack.c.l.b16 %v808
    %v2016 = vunpack.c.l.b16 %v809
    %v2017 = vunpack.c.l.b16 %v810
    %v2018 = vunpack.c.l.b16 %v811
    %v2019 = vunpack.c.l.b16 %v812
    %v2020 = vunpack.c.l.b16 %v813
    %v2021 = vunpack.c.l.b16 %v814
    %v2022 = vunpack.c.l.b16 %v815
    %v2023 = vunpack.c.l.b16 %v816
    %v2024 = vunpack.c.l.b16 %v817
    %v2025 = vunpack.c.l.b16 %v818
    %v2026 = vunpack.c.l.b16 %v819
    %v2027 = vunpack.c.l.b16 %v820
    %v2028 = vunpack.c.l.b16 %v821
    %v2029 = vunpack.c.l.b16 %v822
    %v2030 = vunpack.c.l.b16 %v823
    %v2031 = vunpack.c.l.b16 %v824
    %v2032 = vunpack.c.l.b16 %v825
    %v2033 = vunpack.c.l.b16 %v826
    %v2034 = vunpack.c.l.b16 %v827
    %v2035 = vunpack.c.l.b16 %v828
    %v2036 = vunpack.c.l.b16 %v829
    %v2037 = vunpack.c.l.b16 %v830
    %v2038 = vpack.c.b16 %v1439, %v1438
    %v2039 = vpack.c.b16 %v1441, %v1440
    %v2040 = vpack.c.b16 %v1443, %v1442
    %v2041 = vpack.c.b16 %v1445, %v1444
    %v2042 = vpack.c.b16 %v1447, %v1446
    %v2043 = vpack.c.b16 %v1449, %v1448
    %v2044 = vpack.c.b16 %v1451, %v1450
    %v2045 = vpack.c.b16 %v1453, %v1452
    %v2046 = vpack.c.b16 %v1455, %v1454
    %v2047 = vpack.c.b16 %v1457, %v1456
    %v2048 = vpack.c.b16 %v1459, %v1458
    %v2049 = vpack.c.b16 %v1461, %v1460
    %v2050 = vpack.c.b16 %v1463, %v1462
    %v2051 = vpack.c.b16 %v1465, %v1464
    %v2052 = vpack.c.b16 %v1467, %v1466
    %v2053 = vpack.c.b16 %v1469, %v1468
    %v2054 = vpack.c.b16 %v1471, %v1470
    %v2055 = vpack.c.b16 %v1473, %v1472
    %v2056 = vpack.c.b16 %v1475, %v1474
    %v2057 = vpack.c.b16 %v1477, %v1476
    %v2058 = vpack.c.b16 %v1479, %v1478
    %v2059 = vpack.c.b16 %v1481, %v1480
    %v2060 = vpack.c.b16 %v1483, %v1482
    %v2061 = vpack.c.b16 %v1485, %v1484
    %v2062 = vpack.c.b16 %v1487, %v1486
    %v2063 = vpack.c.b16 %v1489, %v1488
    %v2064 = vpack.c.b16 %v1491, %v1490
    %v2065 = vpack.c.b16 %v1493, %v1492
    %v2066 = vpack.c.b16 %v1495, %v1494
    %v2067 = vpack.c.b16 %v1497, %v1496
    %v2068 = vpack.c.b16 %v1499, %v1498
    %v2069 = vpack.c.b16 %v1501, %v1500
    %v2070 = vpack.c.b16 %v1503, %v1502
    %v2071 = vpack.c.b16 %v1505, %v1504
    %v2072 = vpack.c.b16 %v1507, %v1506
    %v2073 = vpack.c.b16 %v1509, %v1508
    %v2074 = vpack.c.b16 %v1511, %v1510
    %v2075 = vpack.c.b16 %v1513, %v1512
    %v2076 = vpack.c.b16 %v1515, %v1514
    %v2077 = vpack.c.b16 %v1517, %v1516
    %v2078 = vpack.c.b16 %v1519, %v1518
    %v2079 = vpack.c.b16 %v1521, %v1520
    %v2080 = vpack.c.b16 %v1523, %v1522
    %v2081 = vpack.c.b16 %v1525, %v1524
    %v2082 = vpack.c.b16 %v1527, %v1526
    %v2083 = vpack.c.b16 %v1529, %v1528
    %v2084 = vpack.c.b16 %v1531, %v1530
    %v2085 = vpack.c.b16 %v1533, %v1532
    %v2086 = vpack.c.b16 %v1535, %v1534
    %v2087 = vpack.c.b16 %v1537, %v1536
    %v2088 = vpack.c.b16 %v1539, %v1538
    %v2089 = vpack.c.b16 %v1541, %v1540
    %v2090 = vpack.c.b16 %v1543, %v1542
    %v2091 = vpack.c.b16 %v1545, %v1544
    %v2092 = vpack.c.b16 %v1547, %v1546
    %v2093 = vpack.c.b16 %v1549, %v1548
    %v2094 = vpack.c.b16 %v1551, %v1550
    %v2095 = vpack.c.b16 %v1553, %v1552
    %v2096 = vpack.c.b16 %v1555, %v1554
    %v2097 = vpack.c.b16 %v1557, %v1556
    %v2098 = vpack.c.b16 %v1559, %v1558
    %v2099 = vpack.c.b16 %v1561, %v1560
    %v2100 = vpack.c.b16 %v1563, %v1562
    %v2101 = vpack.c.b16 %v1565, %v1564
    %v2102 = vpack.c.b16 %v1567, %v1566
    %v2103 = vpack.c.b16 %v1569, %v1568
    %v2104 = vpack.c.b16 %v1571, %v1570
    %v2105 = vpack.c.b16 %v1573, %v1572
    %v2106 = vpack.c.b16 %v1575, %v1574
    %v2107 = vpack.c.b16 %v1577, %v1576
    %v2108 = vpack.c.b16 %v1579, %v1578
    %v2109 = vpack.c.b16 %v1581, %v1580
    %v2110 = vpack.c.b16 %v1583, %v1582
    %v2111 = vpack.c.b16 %v1585, %v1584
    %v2112 = vpack.c.b16 %v1587, %v1586
    %v2113 = vpack.c.b16 %v1589, %v1588
    %v2114 = vpack.c.b16 %v1591, %v1590
    %v2115 = vpack.c.b16 %v1593, %v1592
    %v2116 = vpack.c.b16 %v1595, %v1594
    %v2117 = vpack.c.b16 %v1597, %v1596
    %v2118 = vpack.c.b16 %v1599, %v1598
    %v2119 = vpack.c.b16 %v1601, %v1600
    %v2120 = vpack.c.b16 %v1603, %v1602
    %v2121 = vpack.c.b16 %v1605, %v1604
    %v2122 = vpack.c.b16 %v1607, %v1606
    %v2123 = vpack.c.b16 %v1609, %v1608
    %v2124 = vpack.c.b16 %v1611, %v1610
    %v2125 = vpack.c.b16 %v1613, %v1612
    %v2126 = vpack.c.b16 %v1615, %v1614
    %v2127 = vpack.c.b16 %v1617, %v1616
    %v2128 = vpack.c.b16 %v1619, %v1618
    %v2129 = vpack.c.b16 %v1621, %v1620
    %v2130 = vpack.c.b16 %v1623, %v1622
    %v2131 = vpack.c.b16 %v1625, %v1624
    %v2132 = vpack.c.b16 %v1627, %v1626
    %v2133 = vpack.c.b16 %v1629, %v1628
    %v2134 = vpack.c.b16 %v1631, %v1630
    %v2135 = vpack.c.b16 %v1633, %v1632
    %v2136 = vpack.c.b16 %v1635, %v1634
    %v2137 = vpack.c.b16 %v1637, %v1636
    %v2138 = vpack.c.b16 %v1639, %v1638
    %v2139 = vpack.c.b16 %v1641, %v1640
    %v2140 = vpack.c.b16 %v1643, %v1642
    %v2141 = vpack.c.b16 %v1645, %v1644
    %v2142 = vpack.c.b16 %v1647, %v1646
    %v2143 = vpack.c.b16 %v1649, %v1648
    %v2144 = vpack.c.b16 %v1651, %v1650
    %v2145 = vpack.c.b16 %v1653, %v1652
    %v2146 = vpack.c.b16 %v1655, %v1654
    %v2147 = vpack.c.b16 %v1657, %v1656
    %v2148 = vpack.c.b16 %v1659, %v1658
    %v2149 = vpack.c.b16 %v1661, %v1660
    %v2150 = vpack.c.b16 %v1663, %v1662
    %v2151 = vpack.c.b16 %v1665, %v1664
    %v2152 = vpack.c.b16 %v1667, %v1666
    %v2153 = vpack.c.b16 %v1669, %v1668
    %v2154 = vpack.c.b16 %v1671, %v1670
    %v2155 = vpack.c.b16 %v1673, %v1672
    %v2156 = vpack.c.b16 %v1675, %v1674
    %v2157 = vpack.c.b16 %v1677, %v1676
    %v2158 = vpack.c.b16 %v1679, %v1678
    %v2159 = vpack.c.b16 %v1681, %v1680
    %v2160 = vpack.c.b16 %v1683, %v1682
    %v2161 = vpack.c.b16 %v1685, %v1684
    %v2162 = vpack.c.b16 %v1687, %v1686
    %v2163 = vpack.c.b16 %v1689, %v1688
    %v2164 = vpack.c.b16 %v1691, %v1690
    %v2165 = vpack.c.b16 %v1693, %v1692
    %v2166 = vpack.c.b16 %v1695, %v1694
    %v2167 = vpack.c.b16 %v1697, %v1696
    %v2168 = vpack.c.b16 %v1699, %v1698
    %v2169 = vpack.c.b16 %v1701, %v1700
    %v2170 = vpack.c.b16 %v1703, %v1702
    %v2171 = vpack.c.b16 %v1705, %v1704
    %v2172 = vpack.c.b16 %v1707, %v1706
    %v2173 = vpack.c.b16 %v1709, %v1708
    %v2174 = vpack.c.b16 %v1711, %v1710
    %v2175 = vpack.c.b16 %v1713, %v1712
    %v2176 = vpack.c.b16 %v1715, %v1714
    %v2177 = vpack.c.b16 %v1717, %v1716
    %v2178 = vpack.c.b16 %v1719, %v1718
    %v2179 = vpack.c.b16 %v1721, %v1720
    %v2180 = vpack.c.b16 %v1723, %v1722
    %v2181 = vpack.c.b16 %v1725, %v1724
    %v2182 = vpack.c.b16 %v1727, %v1726
    %v2183 = vpack.c.b16 %v1729, %v1728
    %v2184 = vpack.c.b16 %v1731, %v1730
    %v2185 = vpack.c.b16 %v1733, %v1732
    %v2186 = vpack.c.b16 %v1735, %v1734
    %v2187 = vpack.c.b16 %v1737, %v1736
    %v2188 = vpack.c.b16 %v1739, %v1738
    %v2189 = vpack.c.b16 %v1741, %v1740
    %v2190 = vpack.c.b16 %v1743, %v1742
    %v2191 = vpack.c.b16 %v1745, %v1744
    %v2192 = vpack.c.b16 %v1747, %v1746
    %v2193 = vpack.c.b16 %v1749, %v1748
    %v2194 = vpack.c.b16 %v1751, %v1750
    %v2195 = vpack.c.b16 %v1753, %v1752
    %v2196 = vpack.c.b16 %v1755, %v1754
    %v2197 = vpack.c.b16 %v1757, %v1756
    %v2198 = vpack.c.b16 %v1759, %v1758
    %v2199 = vpack.c.b16 %v1761, %v1760
    %v2200 = vpack.c.b16 %v1763, %v1762
    %v2201 = vpack.c.b16 %v1765, %v1764
    %v2202 = vpack.c.b16 %v1767, %v1766
    %v2203 = vpack.c.b16 %v1769, %v1768
    %v2204 = vpack.c.b16 %v1771, %v1770
    %v2205 = vpack.c.b16 %v1773, %v1772
    %v2206 = vpack.c.b16 %v1775, %v1774
    %v2207 = vpack.c.b16 %v1777, %v1776
    %v2208 = vpack.c.b16 %v1779, %v1778
    %v2209 = vpack.c.b16 %v1781, %v1780
    %v2210 = vpack.c.b16 %v1783, %v1782
    %v2211 = vpack.c.b16 %v1785, %v1784
    %v2212 = vpack.c.b16 %v1787, %v1786
    %v2213 = vpack.c.b16 %v1789, %v1788
    %v2214 = vpack.c.b16 %v1791, %v1790
    %v2215 = vpack.c.b16 %v1793, %v1792
    %v2216 = vpack.c.b16 %v1795, %v1794
    %v2217 = vpack.c.b16 %v1797, %v1796
    %v2218 = vpack.c.b16 %v1799, %v1798
    %v2219 = vpack.c.b16 %v1801, %v1800
    %v2220 = vpack.c.b16 %v1803, %v1802
    %v2221 = vpack.c.b16 %v1805, %v1804
    %v2222 = vpack.c.b16 %v1807, %v1806
    %v2223 = vpack.c.b16 %v1809, %v1808
    %v2224 = vpack.c.b16 %v1811, %v1810
    %v2225 = vpack.c.b16 %v1813, %v1812
    %v2226 = vpack.c.b16 %v1815, %v1814
    %v2227 = vpack.c.b16 %v1817, %v1816
    %v2228 = vpack.c.b16 %v1819, %v1818
    %v2229 = vpack.c.b16 %v1821, %v1820
    %v2230 = vpack.c.b16 %v1823, %v1822
    %v2231 = vpack.c.b16 %v1825, %v1824
    %v2232 = vpack.c.b16 %v1827, %v1826
    %v2233 = vpack.c.b16 %v1829, %v1828
    %v2234 = vpack.c.b16 %v1831, %v1830
    %v2235 = vpack.c.b16 %v1833, %v1832
    %v2236 = vpack.c.b16 %v1835, %v1834
    %v2237 = vpack.c.b16 %v1837, %v1836
    %v2238 = vpack.c.b16 %v1839, %v1838
    %v2239 = vpack.c.b16 %v1841, %v1840
    %v2240 = vpack.c.b16 %v1843, %v1842
    %v2241 = vpack.c.b16 %v1845, %v1844
    %v2242 = vpack.c.b16 %v1847, %v1846
    %v2243 = vpack.c.b16 %v1849, %v1848
    %v2244 = vpack.c.b16 %v1851, %v1850
    %v2245 = vpack.c.b16 %v1853, %v1852
    %v2246 = vpack.c.b16 %v1855, %v1854
    %v2247 = vpack.c.b16 %v1857, %v1856
    %v2248 = vpack.c.b16 %v1859, %v1858
    %v2249 = vpack.c.b16 %v1861, %v1860
    %v2250 = vpack.c.b16 %v1863, %v1862
    %v2251 = vpack.c.b16 %v1865, %v1864
    %v2252 = vpack.c.b16 %v1867, %v1866
    %v2253 = vpack.c.b16 %v1869, %v1868
    %v2254 = vpack.c.b16 %v1871, %v1870
    %v2255 = vpack.c.b16 %v1873, %v1872
    %v2256 = vpack.c.b16 %v1875, %v1874
    %v2257 = vpack.c.b16 %v1877, %v1876
    %v2258 = vpack.c.b16 %v1879, %v1878
    %v2259 = vpack.c.b16 %v1881, %v1880
    %v2260 = vpack.c.b16 %v1883, %v1882
    %v2261 = vpack.c.b16 %v1885, %v1884
    %v2262 = vpack.c.b16 %v1887, %v1886
    %v2263 = vpack.c.b16 %v1889, %v1888
    %v2264 = vpack.c.b16 %v1891, %v1890
    %v2265 = vpack.c.b16 %v1893, %v1892
    %v2266 = vpack.c.b16 %v1895, %v1894
    %v2267 = vpack.c.b16 %v1897, %v1896
    %v2268 = vpack.c.b16 %v1899, %v1898
    %v2269 = vpack.c.b16 %v1901, %v1900
    %v2270 = vpack.c.b16 %v1903, %v1902
    %v2271 = vpack.c.b16 %v1905, %v1904
    %v2272 = vpack.c.b16 %v1907, %v1906
    %v2273 = vpack.c.b16 %v1909, %v1908
    %v2274 = vpack.c.b16 %v1911, %v1910
    %v2275 = vpack.c.b16 %v1913, %v1912
    %v2276 = vpack.c.b16 %v1915, %v1914
    %v2277 = vpack.c.b16 %v1917, %v1916
    %v2278 = vpack.c.b16 %v1919, %v1918
    %v2279 = vpack.c.b16 %v1921, %v1920
    %v2280 = vpack.c.b16 %v1923, %v1922
    %v2281 = vpack.c.b16 %v1925, %v1924
    %v2282 = vpack.c.b16 %v1927, %v1926
    %v2283 = vpack.c.b16 %v1929, %v1928
    %v2284 = vpack.c.b16 %v1931, %v1930
    %v2285 = vpack.c.b16 %v1933, %v1932
    %v2286 = vpack.c.b16 %v1935, %v1934
    %v2287 = vpack.c.b16 %v1937, %v1936
    %v2288 = vpack.c.b16 %v1939, %v1938
    %v2289 = vpack.c.b16 %v1941, %v1940
    %v2290 = vpack.c.b16 %v1943, %v1942
    %v2291 = vpack.c.b16 %v1945, %v1944
    %v2292 = vpack.c.b16 %v1947, %v1946
    %v2293 = vpack.c.b16 %v1949, %v1948
    %v2294 = vpack.c.b16 %v1951, %v1950
    %v2295 = vpack.c.b16 %v1953, %v1952
    %v2296 = vpack.c.b16 %v1955, %v1954
    %v2297 = vpack.c.b16 %v1957, %v1956
    %v2298 = vpack.c.b16 %v1959, %v1958
    %v2299 = vpack.c.b16 %v1961, %v1960
    %v2300 = vpack.c.b16 %v1963, %v1962
    %v2301 = vpack.c.b16 %v1965, %v1964
    %v2302 = vpack.c.b16 %v1967, %v1966
    %v2303 = vpack.c.b16 %v1969, %v1968
    %v2304 = vpack.c.b16 %v1971, %v1970
    %v2305 = vpack.c.b16 %v1973, %v1972
    %v2306 = vpack.c.b16 %v1975, %v1974
    %v2307 = vpack.c.b16 %v1977, %v1976
    %v2308 = vpack.c.b16 %v1979, %v1978
    %v2309 = vpack.c.b16 %v1981, %v1980
    %v2310 = vpack.c.b16 %v1983, %v1982
    %v2311 = vpack.c.b16 %v1985, %v1984
    %v2312 = vpack.c.b16 %v1987, %v1986
    %v2313 = vpack.c.b16 %v1989, %v1988
    %v2314 = vpack.c.b16 %v1991, %v1990
    %v2315 = vpack.c.b16 %v1993, %v1992
    %v2316 = vpack.c.b16 %v1995, %v1994
    %v2317 = vpack.c.b16 %v1997, %v1996
    %v2318 = vpack.c.b16 %v1999, %v1998
    %v2319 = vpack.c.b16 %v2001, %v2000
    %v2320 = vpack.c.b16 %v2003, %v2002
    %v2321 = vpack.c.b16 %v2005, %v2004
    %v2322 = vpack.c.b16 %v2007, %v2006
    %v2323 = vpack.c.b16 %v2009, %v2008
    %v2324 = vpack.c.b16 %v2011, %v2010
    %v2325 = vpack.c.b16 %v2013, %v2012
    %v2326 = vpack.c.b16 %v2015, %v2014
    %v2327 = vpack.c.b16 %v2017, %v2016
    %v2328 = vpack.c.b16 %v2019, %v2018
    %v2329 = vpack.c.b16 %v2021, %v2020
    %v2330 = vpack.c.b16 %v2023, %v2022
    %v2331 = vpack.c.b16 %v2025, %v2024
    %v2332 = vpack.c.b16 %v2027, %v2026
    %v2333 = vpack.c.b16 %v2029, %v2028
    %v2334 = vpack.c.b16 %v2031, %v2030
    %v2335 = vpack.c.b16 %v2033, %v2032
    %v2336 = vpack.c.b16 %v2035, %v2034
    %v2337 = vpack.c.b16 %v2037, %v2036
    %vm2638 = vcmask 523264
    %v2640 = vsel %vm2638, %v230, 0
    %2642 = vmatprep.subr.bf16.mxu0 0
    %2643 = vmatpush1.bf16.msra.mxu0 %v2038
    %2644 = vmatprep.subr.bf16.mxu0 0
    %2645 = vmatpush1.bf16.msra.mxu0 %v2039
    %2646 = vmatprep.subr.bf16.mxu0 0
    %2647 = vmatpush1.bf16.msra.mxu0 %v2040
    %2648 = vmatprep.subr.bf16.mxu0 0
    %2649 = vmatpush1.bf16.msra.mxu0 %v2041
    %2650 = vmatprep.subr.bf16.mxu0 0
    %2651 = vmatpush1.bf16.msra.mxu0 %v2042
    %2652 = vmatprep.subr.bf16.mxu0 0
    %2653 = vmatpush1.bf16.msra.mxu0 %v2043
    %2654 = vmatprep.subr.bf16.mxu0 0
    %2655 = vmatpush1.bf16.msra.mxu0 %v2044
    %2656 = vmatprep.subr.bf16.mxu0 0
    %2657 = vmatpush1.bf16.msra.mxu0 %v2045
    %2658 = vmatprep.subr.bf16.mxu0 0
    %2659 = vmatpush1.bf16.msra.mxu0 %v2046
    %2660 = vmatprep.subr.bf16.mxu0 0
    %2661 = vmatpush1.bf16.msra.mxu0 %v2047
    %2662 = vmatprep.subr.bf16.mxu0 0
    %2663 = vmatpush1.bf16.msra.mxu0 %v2048
    %2664 = vmatprep.subr.bf16.mxu0 0
    %2665 = vmatpush1.bf16.msra.mxu0 %v2049
    %2666 = vmatprep.subr.bf16.mxu0 0
    %2667 = vmatpush1.bf16.msra.mxu0 %v2050
    %2668 = vmatprep.subr.bf16.mxu0 0
    %2669 = vmatpush1.bf16.msra.mxu0 %v2051
    %2670 = vmatprep.subr.bf16.mxu0 0
    %2671 = vmatpush1.bf16.msra.mxu0 %v2052
    %2672 = vmatprep.subr.bf16.mxu0 0
    %2673 = vmatpush1.bf16.msra.mxu0 %v2053
    %2674 = vmatprep.mubr.bf16.mxu0 %v194
    %2675 = vmatmul.mubr.bf16.gmra.mrb[0].mxu0 %v193
    %v2676 = vpop.f32.mrb[0].mxu0
    %v2677 = vadd.f32 %v836, %v2676
    %v2678 = vpop.f32.mrb[0].mxu0
    %v2679 = vpop.f32.mrb[0].mxu0
    %v2680 = vadd.f32 %v836, %v2679
    %v2681 = vpop.f32.mrb[0].mxu0
    %2682 = vdwg.mxu0
    %2683 = vmatprep.subr.bf16.mxu0 0
    %2684 = vmatpush1.bf16.msra.mxu0 %v2054
    %2685 = vmatprep.subr.bf16.mxu0 0
    %2686 = vmatpush1.bf16.msra.mxu0 %v2055
    %2687 = vmatprep.subr.bf16.mxu0 0
    %2688 = vmatpush1.bf16.msra.mxu0 %v2056
    %2689 = vmatprep.subr.bf16.mxu0 0
    %2690 = vmatpush1.bf16.msra.mxu0 %v2057
    %2691 = vmatprep.subr.bf16.mxu0 0
    %2692 = vmatpush1.bf16.msra.mxu0 %v2058
    %2693 = vmatprep.subr.bf16.mxu0 0
    %2694 = vmatpush1.bf16.msra.mxu0 %v2059
    %2695 = vmatprep.subr.bf16.mxu0 0
    %2696 = vmatpush1.bf16.msra.mxu0 %v2060
    %2697 = vmatprep.subr.bf16.mxu0 0
    %2698 = vmatpush1.bf16.msra.mxu0 %v2061
    %2699 = vmatprep.subr.bf16.mxu0 0
    %2700 = vmatpush1.bf16.msra.mxu0 %v2062
    %2701 = vmatprep.subr.bf16.mxu0 0
    %2702 = vmatpush1.bf16.msra.mxu0 %v2063
    %2703 = vmatprep.subr.bf16.mxu0 0
    %2704 = vmatpush1.bf16.msra.mxu0 %v2064
    %2705 = vmatprep.subr.bf16.mxu0 0
    %2706 = vmatpush1.bf16.msra.mxu0 %v2065
    %2707 = vmatprep.subr.bf16.mxu0 0
    %2708 = vmatpush1.bf16.msra.mxu0 %v2066
    %2709 = vmatprep.subr.bf16.mxu0 0
    %2710 = vmatpush1.bf16.msra.mxu0 %v2067
    %2711 = vmatprep.subr.bf16.mxu0 0
    %2712 = vmatpush1.bf16.msra.mxu0 %v2068
    %2713 = vmatprep.subr.bf16.mxu0 0
    %2714 = vmatpush1.bf16.msra.mxu0 %v2069
    %2715 = vmatprep.mubr.bf16.mxu0 %v196
    %2716 = vmatmul.mubr.bf16.gmra.mrb[0].mxu0 %v195
    %v2717 = vpop.f32.mrb[0].mxu0
    %v2718 = vadd.f32 %v2677, %v2717
    %v2719 = vpop.f32.mrb[0].mxu0
    %v2720 = vpop.f32.mrb[0].mxu0
    %v2721 = vadd.f32 %v2680, %v2720
    %v2722 = vpop.f32.mrb[0].mxu0
    %2723 = vdwg.mxu0
    %2724 = vmatprep.subr.bf16.mxu0 0
    %2725 = vmatpush1.bf16.msra.mxu0 %v2070
    %2726 = vmatprep.subr.bf16.mxu0 0
    %2727 = vmatpush1.bf16.msra.mxu0 %v2071
    %2728 = vmatprep.subr.bf16.mxu0 0
    %2729 = vmatpush1.bf16.msra.mxu0 %v2072
    %2730 = vmatprep.subr.bf16.mxu0 0
    %2731 = vmatpush1.bf16.msra.mxu0 %v2073
    %2732 = vmatprep.subr.bf16.mxu0 0
    %2733 = vmatpush1.bf16.msra.mxu0 %v2074
    %2734 = vmatprep.subr.bf16.mxu0 0
    %2735 = vmatpush1.bf16.msra.mxu0 %v2075
    %2736 = vmatprep.subr.bf16.mxu0 0
    %2737 = vmatpush1.bf16.msra.mxu0 %v2076
    %2738 = vmatprep.subr.bf16.mxu0 0
    %2739 = vmatpush1.bf16.msra.mxu0 %v2077
    %2740 = vmatprep.subr.bf16.mxu0 0
    %2741 = vmatpush1.bf16.msra.mxu0 %v2078
    %2742 = vmatprep.subr.bf16.mxu0 0
    %2743 = vmatpush1.bf16.msra.mxu0 %v2079
    %2744 = vmatprep.subr.bf16.mxu0 0
    %2745 = vmatpush1.bf16.msra.mxu0 %v2080
    %2746 = vmatprep.subr.bf16.mxu0 0
    %2747 = vmatpush1.bf16.msra.mxu0 %v2081
    %2748 = vmatprep.subr.bf16.mxu0 0
    %2749 = vmatpush1.bf16.msra.mxu0 %v2082
    %2750 = vmatprep.subr.bf16.mxu0 0
    %2751 = vmatpush1.bf16.msra.mxu0 %v2083
    %2752 = vmatprep.subr.bf16.mxu0 0
    %2753 = vmatpush1.bf16.msra.mxu0 %v2084
    %2754 = vmatprep.subr.bf16.mxu0 0
    %2755 = vmatpush1.bf16.msra.mxu0 %v2085
    %2756 = vmatprep.mubr.bf16.mxu0 %v198
    %2757 = vmatmul.mubr.bf16.gmra.mrb[0].mxu0 %v197
    %v2758 = vpop.f32.mrb[0].mxu0
    %v2759 = vadd.f32 %v2718, %v2758
    %v2760 = vpop.f32.mrb[0].mxu0
    %v2761 = vpop.f32.mrb[0].mxu0
    %v2762 = vadd.f32 %v2721, %v2761
    %v2763 = vpop.f32.mrb[0].mxu0
    %2764 = vdwg.mxu0
    %2765 = vmatprep.subr.bf16.mxu0 0
    %2766 = vmatpush1.bf16.msra.mxu0 %v2086
    %2767 = vmatprep.subr.bf16.mxu0 0
    %2768 = vmatpush1.bf16.msra.mxu0 %v2087
    %2769 = vmatprep.subr.bf16.mxu0 0
    %2770 = vmatpush1.bf16.msra.mxu0 %v2088
    %2771 = vmatprep.subr.bf16.mxu0 0
    %2772 = vmatpush1.bf16.msra.mxu0 %v2089
    %2773 = vmatprep.subr.bf16.mxu0 0
    %2774 = vmatpush1.bf16.msra.mxu0 %v2090
    %2775 = vmatprep.subr.bf16.mxu0 0
    %2776 = vmatpush1.bf16.msra.mxu0 %v2091
    %2777 = vmatprep.subr.bf16.mxu0 0
    %2778 = vmatpush1.bf16.msra.mxu0 %v2092
    %2779 = vmatprep.subr.bf16.mxu0 0
    %2780 = vmatpush1.bf16.msra.mxu0 %v2093
    %2781 = vmatprep.subr.bf16.mxu0 0
    %2782 = vmatpush1.bf16.msra.mxu0 %v2094
    %2783 = vmatprep.subr.bf16.mxu0 0
    %2784 = vmatpush1.bf16.msra.mxu0 %v2095
    %2785 = vmatprep.subr.bf16.mxu0 0
    %2786 = vmatpush1.bf16.msra.mxu0 %v2096
    %2787 = vmatprep.subr.bf16.mxu0 0
    %2788 = vmatpush1.bf16.msra.mxu0 %v2097
    %2789 = vmatprep.subr.bf16.mxu0 0
    %2790 = vmatpush1.bf16.msra.mxu0 %v2098
    %2791 = vmatprep.subr.bf16.mxu0 0
    %2792 = vmatpush1.bf16.msra.mxu0 %v2099
    %2793 = vmatprep.subr.bf16.mxu0 0
    %2794 = vmatpush1.bf16.msra.mxu0 %v2100
    %2795 = vmatprep.subr.bf16.mxu0 0
    %2796 = vmatpush1.bf16.msra.mxu0 %v2101
    %2797 = vmatprep.mubr.bf16.mxu0 %v200
    %2798 = vmatmul.mubr.bf16.gmra.mrb[0].mxu0 %v199
    %v2799 = vpop.f32.mrb[0].mxu0
    %v2800 = vadd.f32 %v2759, %v2799
    %v2801 = vpop.f32.mrb[0].mxu0
    %v2802 = vpop.f32.mrb[0].mxu0
    %v2803 = vadd.f32 %v2762, %v2802
    %v2804 = vpop.f32.mrb[0].mxu0
    %2805 = vdwg.mxu0
    %2806 = vmatprep.subr.bf16.mxu0 0
    %2807 = vmatpush1.bf16.msra.mxu0 %v2102
    %2808 = vmatprep.subr.bf16.mxu0 0
    %2809 = vmatpush1.bf16.msra.mxu0 %v2103
    %2810 = vmatprep.subr.bf16.mxu0 0
    %2811 = vmatpush1.bf16.msra.mxu0 %v2104
    %2812 = vmatprep.subr.bf16.mxu0 0
    %2813 = vmatpush1.bf16.msra.mxu0 %v2105
    %2814 = vmatprep.subr.bf16.mxu0 0
    %2815 = vmatpush1.bf16.msra.mxu0 %v2106
    %2816 = vmatprep.subr.bf16.mxu0 0
    %2817 = vmatpush1.bf16.msra.mxu0 %v2107
    %2818 = vmatprep.subr.bf16.mxu0 0
    %2819 = vmatpush1.bf16.msra.mxu0 %v2108
    %2820 = vmatprep.subr.bf16.mxu0 0
    %2821 = vmatpush1.bf16.msra.mxu0 %v2109
    %2822 = vmatprep.subr.bf16.mxu0 0
    %2823 = vmatpush1.bf16.msra.mxu0 %v2110
    %2824 = vmatprep.subr.bf16.mxu0 0
    %2825 = vmatpush1.bf16.msra.mxu0 %v2111
    %2826 = vmatprep.subr.bf16.mxu0 0
    %2827 = vmatpush1.bf16.msra.mxu0 %v2112
    %2828 = vmatprep.subr.bf16.mxu0 0
    %2829 = vmatpush1.bf16.msra.mxu0 %v2113
    %2830 = vmatprep.subr.bf16.mxu0 0
    %2831 = vmatpush1.bf16.msra.mxu0 %v2114
    %2832 = vmatprep.subr.bf16.mxu0 0
    %2833 = vmatpush1.bf16.msra.mxu0 %v2115
    %2834 = vmatprep.subr.bf16.mxu0 0
    %2835 = vmatpush1.bf16.msra.mxu0 %v2116
    %2836 = vmatprep.subr.bf16.mxu0 0
    %2837 = vmatpush1.bf16.msra.mxu0 %v2117
    %2838 = vmatprep.mubr.bf16.mxu0 %v202
    %2839 = vmatmul.mubr.bf16.gmra.mrb[0].mxu0 %v201
    %v2840 = vpop.f32.mrb[0].mxu0
    %v2841 = vadd.f32 %v2800, %v2840
    %v2842 = vpop.f32.mrb[0].mxu0
    %v2843 = vpop.f32.mrb[0].mxu0
    %v2844 = vadd.f32 %v2803, %v2843
    %v2845 = vpop.f32.mrb[0].mxu0
    %2846 = vdwg.mxu0
    %2847 = vmatprep.subr.bf16.mxu0 0
    %2848 = vmatpush1.bf16.msra.mxu0 %v2118
    %2849 = vmatprep.subr.bf16.mxu0 0
    %2850 = vmatpush1.bf16.msra.mxu0 %v2119
    %2851 = vmatprep.subr.bf16.mxu0 0
    %2852 = vmatpush1.bf16.msra.mxu0 %v2120
    %2853 = vmatprep.subr.bf16.mxu0 0
    %2854 = vmatpush1.bf16.msra.mxu0 %v2121
    %2855 = vmatprep.subr.bf16.mxu0 0
    %2856 = vmatpush1.bf16.msra.mxu0 %v2122
    %2857 = vmatprep.subr.bf16.mxu0 0
    %2858 = vmatpush1.bf16.msra.mxu0 %v2123
    %2859 = vmatprep.subr.bf16.mxu0 0
    %2860 = vmatpush1.bf16.msra.mxu0 %v2124
    %2861 = vmatprep.subr.bf16.mxu0 0
    %2862 = vmatpush1.bf16.msra.mxu0 %v2125
    %2863 = vmatprep.subr.bf16.mxu0 0
    %2864 = vmatpush1.bf16.msra.mxu0 %v2126
    %2865 = vmatprep.subr.bf16.mxu0 0
    %2866 = vmatpush1.bf16.msra.mxu0 %v2127
    %2867 = vmatprep.subr.bf16.mxu0 0
    %2868 = vmatpush1.bf16.msra.mxu0 %v2128
    %2869 = vmatprep.subr.bf16.mxu0 0
    %2870 = vmatpush1.bf16.msra.mxu0 %v2129
    %2871 = vmatprep.subr.bf16.mxu0 0
    %2872 = vmatpush1.bf16.msra.mxu0 %v2130
    %2873 = vmatprep.subr.bf16.mxu0 0
    %2874 = vmatpush1.bf16.msra.mxu0 %v2131
    %2875 = vmatprep.subr.bf16.mxu0 0
    %2876 = vmatpush1.bf16.msra.mxu0 %v2132
    %2877 = vmatprep.subr.bf16.mxu0 0
    %2878 = vmatpush1.bf16.msra.mxu0 %v2133
    %2879 = vmatprep.mubr.bf16.mxu0 %v204
    %2880 = vmatmul.mubr.bf16.gmra.mrb[0].mxu0 %v203
    %v2881 = vpop.f32.mrb[0].mxu0
    %v2882 = vadd.f32 %v2841, %v2881
    %v2883 = vpop.f32.mrb[0].mxu0
    %v2884 = vpop.f32.mrb[0].mxu0
    %v2885 = vadd.f32 %v2844, %v2884
    %v2886 = vpop.f32.mrb[0].mxu0
    %2887 = vdwg.mxu0
    %2888 = vmatprep.subr.bf16.mxu0 0
    %2889 = vmatpush1.bf16.msra.mxu0 %v2134
    %2890 = vmatprep.subr.bf16.mxu0 0
    %2891 = vmatpush1.bf16.msra.mxu0 %v2135
    %2892 = vmatprep.subr.bf16.mxu0 0
    %2893 = vmatpush1.bf16.msra.mxu0 %v2136
    %2894 = vmatprep.subr.bf16.mxu0 0
    %2895 = vmatpush1.bf16.msra.mxu0 %v2137
    %2896 = vmatprep.subr.bf16.mxu0 0
    %2897 = vmatpush1.bf16.msra.mxu0 %v2138
    %2898 = vmatprep.subr.bf16.mxu0 0
    %2899 = vmatpush1.bf16.msra.mxu0 %v2139
    %2900 = vmatprep.subr.bf16.mxu0 0
    %2901 = vmatpush1.bf16.msra.mxu0 %v2140
    %2902 = vmatprep.subr.bf16.mxu0 0
    %2903 = vmatpush1.bf16.msra.mxu0 %v2141
    %2904 = vmatprep.subr.bf16.mxu0 0
    %2905 = vmatpush1.bf16.msra.mxu0 %v2142
    %2906 = vmatprep.subr.bf16.mxu0 0
    %2907 = vmatpush1.bf16.msra.mxu0 %v2143
    %2908 = vmatprep.subr.bf16.mxu0 0
    %2909 = vmatpush1.bf16.msra.mxu0 %v2144
    %2910 = vmatprep.subr.bf16.mxu0 0
    %2911 = vmatpush1.bf16.msra.mxu0 %v2145
    %2912 = vmatprep.subr.bf16.mxu0 0
    %2913 = vmatpush1.bf16.msra.mxu0 %v2146
    %2914 = vmatprep.subr.bf16.mxu0 0
    %2915 = vmatpush1.bf16.msra.mxu0 %v2147
    %2916 = vmatprep.subr.bf16.mxu0 0
    %2917 = vmatpush1.bf16.msra.mxu0 %v2148
    %2918 = vmatprep.subr.bf16.mxu0 0
    %2919 = vmatpush1.bf16.msra.mxu0 %v2149
    %2920 = vmatprep.mubr.bf16.mxu0 %v206
    %2921 = vmatmul.mubr.bf16.gmra.mrb[0].mxu0 %v205
    %v2922 = vpop.f32.mrb[0].mxu0
    %v2923 = vadd.f32 %v2882, %v2922
    %v2924 = vpop.f32.mrb[0].mxu0
    %v2925 = vpop.f32.mrb[0].mxu0
    %v2926 = vadd.f32 %v2885, %v2925
    %v2927 = vpop.f32.mrb[0].mxu0
    %2928 = vdwg.mxu0
    %2929 = vmatprep.subr.bf16.mxu0 0
    %2930 = vmatpush1.bf16.msra.mxu0 %v2150
    %2931 = vmatprep.subr.bf16.mxu0 0
    %2932 = vmatpush1.bf16.msra.mxu0 %v2151
    %2933 = vmatprep.subr.bf16.mxu0 0
    %2934 = vmatpush1.bf16.msra.mxu0 %v2152
    %2935 = vmatprep.subr.bf16.mxu0 0
    %2936 = vmatpush1.bf16.msra.mxu0 %v2153
    %2937 = vmatprep.subr.bf16.mxu0 0
    %2938 = vmatpush1.bf16.msra.mxu0 %v2154
    %2939 = vmatprep.subr.bf16.mxu0 0
    %2940 = vmatpush1.bf16.msra.mxu0 %v2155
    %2941 = vmatprep.subr.bf16.mxu0 0
    %2942 = vmatpush1.bf16.msra.mxu0 %v2156
    %2943 = vmatprep.subr.bf16.mxu0 0
    %2944 = vmatpush1.bf16.msra.mxu0 %v2157
    %2945 = vmatprep.subr.bf16.mxu0 0
    %2946 = vmatpush1.bf16.msra.mxu0 %v2158
    %2947 = vmatprep.subr.bf16.mxu0 0
    %2948 = vmatpush1.bf16.msra.mxu0 %v2159
    %2949 = vmatprep.subr.bf16.mxu0 0
    %2950 = vmatpush1.bf16.msra.mxu0 %v2160
    %2951 = vmatprep.subr.bf16.mxu0 0
    %2952 = vmatpush1.bf16.msra.mxu0 %v2161
    %2953 = vmatprep.subr.bf16.mxu0 0
    %2954 = vmatpush1.bf16.msra.mxu0 %v2162
    %2955 = vmatprep.subr.bf16.mxu0 0
    %2956 = vmatpush1.bf16.msra.mxu0 %v2163
    %2957 = vmatprep.subr.bf16.mxu0 0
    %2958 = vmatpush1.bf16.msra.mxu0 %v2164
    %2959 = vmatprep.subr.bf16.mxu0 0
    %2960 = vmatpush1.bf16.msra.mxu0 %v2165
    %2961 = vmatprep.mubr.bf16.mxu0 %v208
    %2962 = vmatmul.mubr.bf16.gmra.mrb[0].mxu0 %v207
    %v2963 = vpop.f32.mrb[0].mxu0
    %v2964 = vadd.f32 %v2923, %v2963
    %v2965 = vpop.f32.mrb[0].mxu0
    %v2966 = vpop.f32.mrb[0].mxu0
    %v2967 = vadd.f32 %v2926, %v2966
    %v2968 = vpop.f32.mrb[0].mxu0
    %2969 = vdwg.mxu0
    %2970 = vmatprep.subr.bf16.mxu0 0
    %2971 = vmatpush1.bf16.msra.mxu0 %v2166
    %2972 = vmatprep.subr.bf16.mxu0 0
    %2973 = vmatpush1.bf16.msra.mxu0 %v2167
    %2974 = vmatprep.subr.bf16.mxu0 0
    %2975 = vmatpush1.bf16.msra.mxu0 %v2168
    %2976 = vmatprep.subr.bf16.mxu0 0
    %2977 = vmatpush1.bf16.msra.mxu0 %v2169
    %2978 = vmatprep.subr.bf16.mxu0 0
    %2979 = vmatpush1.bf16.msra.mxu0 %v2170
    %2980 = vmatprep.subr.bf16.mxu0 0
    %2981 = vmatpush1.bf16.msra.mxu0 %v2171
    %2982 = vmatprep.subr.bf16.mxu0 0
    %2983 = vmatpush1.bf16.msra.mxu0 %v2172
    %2984 = vmatprep.subr.bf16.mxu0 0
    %2985 = vmatpush1.bf16.msra.mxu0 %v2173
    %2986 = vmatprep.subr.bf16.mxu0 0
    %2987 = vmatpush1.bf16.msra.mxu0 %v2174
    %2988 = vmatprep.subr.bf16.mxu0 0
    %2989 = vmatpush1.bf16.msra.mxu0 %v2175
    %2990 = vmatprep.subr.bf16.mxu0 0
    %2991 = vmatpush1.bf16.msra.mxu0 %v2176
    %2992 = vmatprep.subr.bf16.mxu0 0
    %2993 = vmatpush1.bf16.msra.mxu0 %v2177
    %2994 = vmatprep.subr.bf16.mxu0 0
    %2995 = vmatpush1.bf16.msra.mxu0 %v2178
    %2996 = vmatprep.subr.bf16.mxu0 0
    %2997 = vmatpush1.bf16.msra.mxu0 %v2179
    %2998 = vmatprep.subr.bf16.mxu0 0
    %2999 = vmatpush1.bf16.msra.mxu0 %v2180
    %3000 = vmatprep.subr.bf16.mxu0 0
    %3001 = vmatpush1.bf16.msra.mxu0 %v2181
    %3002 = vmatprep.mubr.bf16.mxu0 %v210
    %3003 = vmatmul.mubr.bf16.gmra.mrb[0].mxu0 %v209
    %v3004 = vpop.f32.mrb[0].mxu0
    %v3005 = vadd.f32 %v2964, %v3004
    %v3006 = vpop.f32.mrb[0].mxu0
    %v3007 = vpop.f32.mrb[0].mxu0
    %v3008 = vadd.f32 %v2967, %v3007
    %v3009 = vpop.f32.mrb[0].mxu0
    %3010 = vdwg.mxu0
    %3011 = vmatprep.subr.bf16.mxu0 0
    %3012 = vmatpush1.bf16.msra.mxu0 %v2182
    %3013 = vmatprep.subr.bf16.mxu0 0
    %3014 = vmatpush1.bf16.msra.mxu0 %v2183
    %3015 = vmatprep.subr.bf16.mxu0 0
    %3016 = vmatpush1.bf16.msra.mxu0 %v2184
    %3017 = vmatprep.subr.bf16.mxu0 0
    %3018 = vmatpush1.bf16.msra.mxu0 %v2185
    %3019 = vmatprep.subr.bf16.mxu0 0
    %3020 = vmatpush1.bf16.msra.mxu0 %v2186
    %3021 = vmatprep.subr.bf16.mxu0 0
    %3022 = vmatpush1.bf16.msra.mxu0 %v2187
    %3023 = vmatprep.subr.bf16.mxu0 0
    %3024 = vmatpush1.bf16.msra.mxu0 %v2188
    %3025 = vmatprep.subr.bf16.mxu0 0
    %3026 = vmatpush1.bf16.msra.mxu0 %v2189
    %3027 = vmatprep.subr.bf16.mxu0 0
    %3028 = vmatpush1.bf16.msra.mxu0 %v2190
    %3029 = vmatprep.subr.bf16.mxu0 0
    %3030 = vmatpush1.bf16.msra.mxu0 %v2191
    %3031 = vmatprep.subr.bf16.mxu0 0
    %3032 = vmatpush1.bf16.msra.mxu0 %v2192
    %3033 = vmatprep.subr.bf16.mxu0 0
    %3034 = vmatpush1.bf16.msra.mxu0 %v2193
    %3035 = vmatprep.subr.bf16.mxu0 0
    %3036 = vmatpush1.bf16.msra.mxu0 %v2194
    %3037 = vmatprep.subr.bf16.mxu0 0
    %3038 = vmatpush1.bf16.msra.mxu0 %v2195
    %3039 = vmatprep.subr.bf16.mxu0 0
    %3040 = vmatpush1.bf16.msra.mxu0 %v2196
    %3041 = vmatprep.subr.bf16.mxu0 0
    %3042 = vmatpush1.bf16.msra.mxu0 %v2197
    %3043 = vmatprep.mubr.bf16.mxu0 %v212
    %3044 = vmatmul.mubr.bf16.gmra.mrb[0].mxu0 %v211
    %v3045 = vpop.f32.mrb[0].mxu0
    %v3046 = vadd.f32 %v3005, %v3045
    %v3047 = vpop.f32.mrb[0].mxu0
    %v3048 = vpop.f32.mrb[0].mxu0
    %v3049 = vadd.f32 %v3008, %v3048
    %v3050 = vpop.f32.mrb[0].mxu0
    %3051 = vdwg.mxu0
    %3052 = vmatprep.subr.bf16.mxu0 0
    %3053 = vmatpush1.bf16.msra.mxu0 %v2198
    %3054 = vmatprep.subr.bf16.mxu0 0
    %3055 = vmatpush1.bf16.msra.mxu0 %v2199
    %3056 = vmatprep.subr.bf16.mxu0 0
    %3057 = vmatpush1.bf16.msra.mxu0 %v2200
    %3058 = vmatprep.subr.bf16.mxu0 0
    %3059 = vmatpush1.bf16.msra.mxu0 %v2201
    %3060 = vmatprep.subr.bf16.mxu0 0
    %3061 = vmatpush1.bf16.msra.mxu0 %v2202
    %3062 = vmatprep.subr.bf16.mxu0 0
    %3063 = vmatpush1.bf16.msra.mxu0 %v2203
    %3064 = vmatprep.subr.bf16.mxu0 0
    %3065 = vmatpush1.bf16.msra.mxu0 %v2204
    %3066 = vmatprep.subr.bf16.mxu0 0
    %3067 = vmatpush1.bf16.msra.mxu0 %v2205
    %3068 = vmatprep.subr.bf16.mxu0 0
    %3069 = vmatpush1.bf16.msra.mxu0 %v2206
    %3070 = vmatprep.subr.bf16.mxu0 0
    %3071 = vmatpush1.bf16.msra.mxu0 %v2207
    %3072 = vmatprep.subr.bf16.mxu0 0
    %3073 = vmatpush1.bf16.msra.mxu0 %v2208
    %3074 = vmatprep.subr.bf16.mxu0 0
    %3075 = vmatpush1.bf16.msra.mxu0 %v2209
    %3076 = vmatprep.subr.bf16.mxu0 0
    %3077 = vmatpush1.bf16.msra.mxu0 %v2210
    %3078 = vmatprep.subr.bf16.mxu0 0
    %3079 = vmatpush1.bf16.msra.mxu0 %v2211
    %3080 = vmatprep.subr.bf16.mxu0 0
    %3081 = vmatpush1.bf16.msra.mxu0 %v2212
    %3082 = vmatprep.subr.bf16.mxu0 0
    %3083 = vmatpush1.bf16.msra.mxu0 %v2213
    %3084 = vmatprep.mubr.bf16.mxu0 %v214
    %3085 = vmatmul.mubr.bf16.gmra.mrb[0].mxu0 %v213
    %v3086 = vpop.f32.mrb[0].mxu0
    %v3087 = vadd.f32 %v3046, %v3086
    %v3088 = vpop.f32.mrb[0].mxu0
    %v3089 = vpop.f32.mrb[0].mxu0
    %v3090 = vadd.f32 %v3049, %v3089
    %v3091 = vpop.f32.mrb[0].mxu0
    %3092 = vdwg.mxu0
    %3093 = vmatprep.subr.bf16.mxu0 0
    %3094 = vmatpush1.bf16.msra.mxu0 %v2214
    %3095 = vmatprep.subr.bf16.mxu0 0
    %3096 = vmatpush1.bf16.msra.mxu0 %v2215
    %3097 = vmatprep.subr.bf16.mxu0 0
    %3098 = vmatpush1.bf16.msra.mxu0 %v2216
    %3099 = vmatprep.subr.bf16.mxu0 0
    %3100 = vmatpush1.bf16.msra.mxu0 %v2217
    %3101 = vmatprep.subr.bf16.mxu0 0
    %3102 = vmatpush1.bf16.msra.mxu0 %v2218
    %3103 = vmatprep.subr.bf16.mxu0 0
    %3104 = vmatpush1.bf16.msra.mxu0 %v2219
    %3105 = vmatprep.subr.bf16.mxu0 0
    %3106 = vmatpush1.bf16.msra.mxu0 %v2220
    %3107 = vmatprep.subr.bf16.mxu0 0
    %3108 = vmatpush1.bf16.msra.mxu0 %v2221
    %3109 = vmatprep.subr.bf16.mxu0 0
    %3110 = vmatpush1.bf16.msra.mxu0 %v2222
    %3111 = vmatprep.subr.bf16.mxu0 0
    %3112 = vmatpush1.bf16.msra.mxu0 %v2223
    %3113 = vmatprep.subr.bf16.mxu0 0
    %3114 = vmatpush1.bf16.msra.mxu0 %v2224
    %3115 = vmatprep.subr.bf16.mxu0 0
    %3116 = vmatpush1.bf16.msra.mxu0 %v2225
    %3117 = vmatprep.subr.bf16.mxu0 0
    %3118 = vmatpush1.bf16.msra.mxu0 %v2226
    %3119 = vmatprep.subr.bf16.mxu0 0
    %3120 = vmatpush1.bf16.msra.mxu0 %v2227
    %3121 = vmatprep.subr.bf16.mxu0 0
    %3122 = vmatpush1.bf16.msra.mxu0 %v2228
    %3123 = vmatprep.subr.bf16.mxu0 0
    %3124 = vmatpush1.bf16.msra.mxu0 %v2229
    %3125 = vmatprep.mubr.bf16.mxu0 %v216
    %3126 = vmatmul.mubr.bf16.gmra.mrb[0].mxu0 %v215
    %v3127 = vpop.f32.mrb[0].mxu0
    %v3128 = vadd.f32 %v3087, %v3127
    %v3129 = vpop.f32.mrb[0].mxu0
    %v3130 = vpop.f32.mrb[0].mxu0
    %v3131 = vadd.f32 %v3090, %v3130
    %v3132 = vpop.f32.mrb[0].mxu0
    %3133 = vdwg.mxu0
    %3134 = vmatprep.subr.bf16.mxu0 0
    %3135 = vmatpush1.bf16.msra.mxu0 %v2230
    %3136 = vmatprep.subr.bf16.mxu0 0
    %3137 = vmatpush1.bf16.msra.mxu0 %v2231
    %3138 = vmatprep.subr.bf16.mxu0 0
    %3139 = vmatpush1.bf16.msra.mxu0 %v2232
    %3140 = vmatprep.subr.bf16.mxu0 0
    %3141 = vmatpush1.bf16.msra.mxu0 %v2233
    %3142 = vmatprep.subr.bf16.mxu0 0
    %3143 = vmatpush1.bf16.msra.mxu0 %v2234
    %3144 = vmatprep.subr.bf16.mxu0 0
    %3145 = vmatpush1.bf16.msra.mxu0 %v2235
    %3146 = vmatprep.subr.bf16.mxu0 0
    %3147 = vmatpush1.bf16.msra.mxu0 %v2236
    %3148 = vmatprep.subr.bf16.mxu0 0
    %3149 = vmatpush1.bf16.msra.mxu0 %v2237
    %3150 = vmatprep.subr.bf16.mxu0 0
    %3151 = vmatpush1.bf16.msra.mxu0 %v2238
    %3152 = vmatprep.subr.bf16.mxu0 0
    %3153 = vmatpush1.bf16.msra.mxu0 %v2239
    %3154 = vmatprep.subr.bf16.mxu0 0
    %3155 = vmatpush1.bf16.msra.mxu0 %v2240
    %3156 = vmatprep.subr.bf16.mxu0 0
    %3157 = vmatpush1.bf16.msra.mxu0 %v2241
    %3158 = vmatprep.subr.bf16.mxu0 0
    %3159 = vmatpush1.bf16.msra.mxu0 %v2242
    %3160 = vmatprep.subr.bf16.mxu0 0
    %3161 = vmatpush1.bf16.msra.mxu0 %v2243
    %3162 = vmatprep.subr.bf16.mxu0 0
    %3163 = vmatpush1.bf16.msra.mxu0 %v2244
    %3164 = vmatprep.subr.bf16.mxu0 0
    %3165 = vmatpush1.bf16.msra.mxu0 %v2245
    %3166 = vmatprep.mubr.bf16.mxu0 %v218
    %3167 = vmatmul.mubr.bf16.gmra.mrb[0].mxu0 %v217
    %v3168 = vpop.f32.mrb[0].mxu0
    %v3169 = vadd.f32 %v3128, %v3168
    %v3170 = vpop.f32.mrb[0].mxu0
    %v3171 = vpop.f32.mrb[0].mxu0
    %v3172 = vadd.f32 %v3131, %v3171
    %v3173 = vpop.f32.mrb[0].mxu0
    %3174 = vdwg.mxu0
    %3175 = vmatprep.subr.bf16.mxu0 0
    %3176 = vmatpush1.bf16.msra.mxu0 %v2246
    %3177 = vmatprep.subr.bf16.mxu0 0
    %3178 = vmatpush1.bf16.msra.mxu0 %v2247
    %3179 = vmatprep.subr.bf16.mxu0 0
    %3180 = vmatpush1.bf16.msra.mxu0 %v2248
    %3181 = vmatprep.subr.bf16.mxu0 0
    %3182 = vmatpush1.bf16.msra.mxu0 %v2249
    %3183 = vmatprep.subr.bf16.mxu0 0
    %3184 = vmatpush1.bf16.msra.mxu0 %v2250
    %3185 = vmatprep.subr.bf16.mxu0 0
    %3186 = vmatpush1.bf16.msra.mxu0 %v2251
    %3187 = vmatprep.subr.bf16.mxu0 0
    %3188 = vmatpush1.bf16.msra.mxu0 %v2252
    %3189 = vmatprep.subr.bf16.mxu0 0
    %3190 = vmatpush1.bf16.msra.mxu0 %v2253
    %3191 = vmatprep.subr.bf16.mxu0 0
    %3192 = vmatpush1.bf16.msra.mxu0 %v2254
    %3193 = vmatprep.subr.bf16.mxu0 0
    %3194 = vmatpush1.bf16.msra.mxu0 %v2255
    %3195 = vmatprep.subr.bf16.mxu0 0
    %3196 = vmatpush1.bf16.msra.mxu0 %v2256
    %3197 = vmatprep.subr.bf16.mxu0 0
    %3198 = vmatpush1.bf16.msra.mxu0 %v2257
    %3199 = vmatprep.subr.bf16.mxu0 0
    %3200 = vmatpush1.bf16.msra.mxu0 %v2258
    %3201 = vmatprep.subr.bf16.mxu0 0
    %3202 = vmatpush1.bf16.msra.mxu0 %v2259
    %3203 = vmatprep.subr.bf16.mxu0 0
    %3204 = vmatpush1.bf16.msra.mxu0 %v2260
    %3205 = vmatprep.subr.bf16.mxu0 0
    %3206 = vmatpush1.bf16.msra.mxu0 %v2261
    %3207 = vmatprep.mubr.bf16.mxu0 %v220
    %3208 = vmatmul.mubr.bf16.gmra.mrb[0].mxu0 %v219
    %v3209 = vpop.f32.mrb[0].mxu0
    %v3210 = vadd.f32 %v3169, %v3209
    %v3211 = vpop.f32.mrb[0].mxu0
    %v3212 = vpop.f32.mrb[0].mxu0
    %v3213 = vadd.f32 %v3172, %v3212
    %v3214 = vpop.f32.mrb[0].mxu0
    %3215 = vdwg.mxu0
    %3216 = vmatprep.subr.bf16.mxu0 0
    %3217 = vmatpush1.bf16.msra.mxu0 %v2262
    %3218 = vmatprep.subr.bf16.mxu0 0
    %3219 = vmatpush1.bf16.msra.mxu0 %v2263
    %3220 = vmatprep.subr.bf16.mxu0 0
    %3221 = vmatpush1.bf16.msra.mxu0 %v2264
    %3222 = vmatprep.subr.bf16.mxu0 0
    %3223 = vmatpush1.bf16.msra.mxu0 %v2265
    %3224 = vmatprep.subr.bf16.mxu0 0
    %3225 = vmatpush1.bf16.msra.mxu0 %v2266
    %3226 = vmatprep.subr.bf16.mxu0 0
    %3227 = vmatpush1.bf16.msra.mxu0 %v2267
    %3228 = vmatprep.subr.bf16.mxu0 0
    %3229 = vmatpush1.bf16.msra.mxu0 %v2268
    %3230 = vmatprep.subr.bf16.mxu0 0
    %3231 = vmatpush1.bf16.msra.mxu0 %v2269
    %3232 = vmatprep.subr.bf16.mxu0 0
    %3233 = vmatpush1.bf16.msra.mxu0 %v2270
    %3234 = vmatprep.subr.bf16.mxu0 0
    %3235 = vmatpush1.bf16.msra.mxu0 %v2271
    %3236 = vmatprep.subr.bf16.mxu0 0
    %3237 = vmatpush1.bf16.msra.mxu0 %v2272
    %3238 = vmatprep.subr.bf16.mxu0 0
    %3239 = vmatpush1.bf16.msra.mxu0 %v2273
    %3240 = vmatprep.subr.bf16.mxu0 0
    %3241 = vmatpush1.bf16.msra.mxu0 %v2274
    %3242 = vmatprep.subr.bf16.mxu0 0
    %3243 = vmatpush1.bf16.msra.mxu0 %v2275
    %3244 = vmatprep.subr.bf16.mxu0 0
    %3245 = vmatpush1.bf16.msra.mxu0 %v2276
    %3246 = vmatprep.subr.bf16.mxu0 0
    %3247 = vmatpush1.bf16.msra.mxu0 %v2277
    %3248 = vmatprep.mubr.bf16.mxu0 %v222
    %3249 = vmatmul.mubr.bf16.gmra.mrb[0].mxu0 %v221
    %v3250 = vpop.f32.mrb[0].mxu0
    %v3251 = vadd.f32 %v3210, %v3250
    %v3252 = vpop.f32.mrb[0].mxu0
    %v3253 = vpop.f32.mrb[0].mxu0
    %v3254 = vadd.f32 %v3213, %v3253
    %v3255 = vpop.f32.mrb[0].mxu0
    %3256 = vdwg.mxu0
    %3257 = vmatprep.subr.bf16.mxu0 0
    %3258 = vmatpush1.bf16.msra.mxu0 %v2278
    %3259 = vmatprep.subr.bf16.mxu0 0
    %3260 = vmatpush1.bf16.msra.mxu0 %v2279
    %3261 = vmatprep.subr.bf16.mxu0 0
    %3262 = vmatpush1.bf16.msra.mxu0 %v2280
    %3263 = vmatprep.subr.bf16.mxu0 0
    %3264 = vmatpush1.bf16.msra.mxu0 %v2281
    %3265 = vmatprep.subr.bf16.mxu0 0
    %3266 = vmatpush1.bf16.msra.mxu0 %v2282
    %3267 = vmatprep.subr.bf16.mxu0 0
    %3268 = vmatpush1.bf16.msra.mxu0 %v2283
    %3269 = vmatprep.subr.bf16.mxu0 0
    %3270 = vmatpush1.bf16.msra.mxu0 %v2284
    %3271 = vmatprep.subr.bf16.mxu0 0
    %3272 = vmatpush1.bf16.msra.mxu0 %v2285
    %3273 = vmatprep.subr.bf16.mxu0 0
    %3274 = vmatpush1.bf16.msra.mxu0 %v2286
    %3275 = vmatprep.subr.bf16.mxu0 0
    %3276 = vmatpush1.bf16.msra.mxu0 %v2287
    %3277 = vmatprep.subr.bf16.mxu0 0
    %3278 = vmatpush1.bf16.msra.mxu0 %v2288
    %3279 = vmatprep.subr.bf16.mxu0 0
    %3280 = vmatpush1.bf16.msra.mxu0 %v2289
    %3281 = vmatprep.subr.bf16.mxu0 0
    %3282 = vmatpush1.bf16.msra.mxu0 %v2290
    %3283 = vmatprep.subr.bf16.mxu0 0
    %3284 = vmatpush1.bf16.msra.mxu0 %v2291
    %3285 = vmatprep.subr.bf16.mxu0 0
    %3286 = vmatpush1.bf16.msra.mxu0 %v2292
    %3287 = vmatprep.subr.bf16.mxu0 0
    %3288 = vmatpush1.bf16.msra.mxu0 %v2293
    %3289 = vmatprep.mubr.bf16.mxu0 %v224
    %3290 = vmatmul.mubr.bf16.gmra.mrb[0].mxu0 %v223
    %v3291 = vpop.f32.mrb[0].mxu0
    %v3292 = vadd.f32 %v3251, %v3291
    %v3293 = vpop.f32.mrb[0].mxu0
    %v3294 = vpop.f32.mrb[0].mxu0
    %v3295 = vadd.f32 %v3254, %v3294
    %v3296 = vpop.f32.mrb[0].mxu0
    %3297 = vdwg.mxu0
    %3298 = vmatprep.subr.bf16.mxu0 0
    %3299 = vmatpush1.bf16.msra.mxu0 %v2294
    %3300 = vmatprep.subr.bf16.mxu0 0
    %3301 = vmatpush1.bf16.msra.mxu0 %v2295
    %3302 = vmatprep.subr.bf16.mxu0 0
    %3303 = vmatpush1.bf16.msra.mxu0 %v2296
    %3304 = vmatprep.subr.bf16.mxu0 0
    %3305 = vmatpush1.bf16.msra.mxu0 %v2297
    %3306 = vmatprep.subr.bf16.mxu0 0
    %3307 = vmatpush1.bf16.msra.mxu0 %v2298
    %3308 = vmatprep.subr.bf16.mxu0 0
    %3309 = vmatpush1.bf16.msra.mxu0 %v2299
    %3310 = vmatprep.subr.bf16.mxu0 0
    %3311 = vmatpush1.bf16.msra.mxu0 %v2300
    %3312 = vmatprep.subr.bf16.mxu0 0
    %3313 = vmatpush1.bf16.msra.mxu0 %v2301
    %3314 = vmatprep.subr.bf16.mxu0 0
    %3315 = vmatpush1.bf16.msra.mxu0 %v2302
    %3316 = vmatprep.subr.bf16.mxu0 0
    %3317 = vmatpush1.bf16.msra.mxu0 %v2303
    %3318 = vmatprep.subr.bf16.mxu0 0
    %3319 = vmatpush1.bf16.msra.mxu0 %v2304
    %3320 = vmatprep.subr.bf16.mxu0 0
    %3321 = vmatpush1.bf16.msra.mxu0 %v2305
    %3322 = vmatprep.subr.bf16.mxu0 0
    %3323 = vmatpush1.bf16.msra.mxu0 %v2306
    %3324 = vmatprep.subr.bf16.mxu0 0
    %3325 = vmatpush1.bf16.msra.mxu0 %v2307
    %3326 = vmatprep.subr.bf16.mxu0 0
    %3327 = vmatpush1.bf16.msra.mxu0 %v2308
    %3328 = vmatprep.subr.bf16.mxu0 0
    %3329 = vmatpush1.bf16.msra.mxu0 %v2309
    %3330 = vmatprep.mubr.bf16.mxu0 %v226
    %3331 = vmatmul.mubr.bf16.gmra.mrb[0].mxu0 %v225
    %v3332 = vpop.f32.mrb[0].mxu0
    %v3333 = vadd.f32 %v3292, %v3332
    %v3334 = vpop.f32.mrb[0].mxu0
    %v3335 = vpop.f32.mrb[0].mxu0
    %v3336 = vadd.f32 %v3295, %v3335
    %v3337 = vpop.f32.mrb[0].mxu0
    %3338 = vdwg.mxu0
    %3339 = vmatprep.subr.bf16.mxu0 0
    %3340 = vmatpush1.bf16.msra.mxu0 %v2310
    %3341 = vmatprep.subr.bf16.mxu0 0
    %3342 = vmatpush1.bf16.msra.mxu0 %v2311
    %3343 = vmatprep.subr.bf16.mxu0 0
    %3344 = vmatpush1.bf16.msra.mxu0 %v2312
    %3345 = vmatprep.subr.bf16.mxu0 0
    %3346 = vmatpush1.bf16.msra.mxu0 %v2313
    %3347 = vmatprep.subr.bf16.mxu0 0
    %3348 = vmatpush1.bf16.msra.mxu0 %v2314
    %3349 = vmatprep.subr.bf16.mxu0 0
    %3350 = vmatpush1.bf16.msra.mxu0 %v2315
    %3351 = vmatprep.subr.bf16.mxu0 0
    %3352 = vmatpush1.bf16.msra.mxu0 %v2316
    %3353 = vmatprep.subr.bf16.mxu0 0
    %3354 = vmatpush1.bf16.msra.mxu0 %v2317
    %3355 = vmatprep.subr.bf16.mxu0 0
    %3356 = vmatpush1.bf16.msra.mxu0 %v2318
    %3357 = vmatprep.subr.bf16.mxu0 0
    %3358 = vmatpush1.bf16.msra.mxu0 %v2319
    %3359 = vmatprep.subr.bf16.mxu0 0
    %3360 = vmatpush1.bf16.msra.mxu0 %v2320
    %3361 = vmatprep.subr.bf16.mxu0 0
    %3362 = vmatpush1.bf16.msra.mxu0 %v2321
    %3363 = vmatprep.subr.bf16.mxu0 0
    %3364 = vmatpush1.bf16.msra.mxu0 %v2322
    %3365 = vmatprep.subr.bf16.mxu0 0
    %3366 = vmatpush1.bf16.msra.mxu0 %v2323
    %3367 = vmatprep.subr.bf16.mxu0 0
    %3368 = vmatpush1.bf16.msra.mxu0 %v2324
    %3369 = vmatprep.subr.bf16.mxu0 0
    %3370 = vmatpush1.bf16.msra.mxu0 %v2325
    %3371 = vmatprep.mubr.bf16.mxu0 %v228
    %3372 = vmatmul.mubr.bf16.gmra.mrb[0].mxu0 %v227
    %v3373 = vpop.f32.mrb[0].mxu0
    %v3374 = vadd.f32 %v3333, %v3373
    %v3375 = vpop.f32.mrb[0].mxu0
    %v3376 = vpop.f32.mrb[0].mxu0
    %v3377 = vadd.f32 %v3336, %v3376
    %v3378 = vpop.f32.mrb[0].mxu0
    %3379 = vdwg.mxu0
    %3380 = vmatprep.subr.bf16.mxu0 0
    %3381 = vmatpush1.bf16.msra.mxu0 %v2326
    %3382 = vmatprep.subr.bf16.mxu0 0
    %3383 = vmatpush1.bf16.msra.mxu0 %v2327
    %3384 = vmatprep.subr.bf16.mxu0 0
    %3385 = vmatpush1.bf16.msra.mxu0 %v2328
    %3386 = vmatprep.subr.bf16.mxu0 0
    %3387 = vmatpush1.bf16.msra.mxu0 %v2329
    %3388 = vmatprep.subr.bf16.mxu0 0
    %3389 = vmatpush1.bf16.msra.mxu0 %v2330
    %3390 = vmatprep.subr.bf16.mxu0 0
    %3391 = vmatpush1.bf16.msra.mxu0 %v2331
    %3392 = vmatprep.subr.bf16.mxu0 0
    %3393 = vmatpush1.bf16.msra.mxu0 %v2332
    %3394 = vmatprep.subr.bf16.mxu0 0
    %3395 = vmatpush1.bf16.msra.mxu0 %v2333
    %3396 = vmatprep.subr.bf16.mxu0 0
    %3397 = vmatpush1.bf16.msra.mxu0 %v2334
    %3398 = vmatprep.subr.bf16.mxu0 0
    %3399 = vmatpush1.bf16.msra.mxu0 %v2335
    %3400 = vmatprep.subr.bf16.mxu0 0
    %3401 = vmatpush1.bf16.msra.mxu0 %v2336
    %3402 = vmatprep.subr.bf16.mxu0 0
    %3403 = vmatpush1.bf16.msra.mxu0 %v2337
    %3404 = vmatprep.subr.bf16.mxu0 0
    %3405 = vmatpush1.bf16.msra.mxu0 0
    %3406 = vmatprep.subr.bf16.mxu0 0
    %3407 = vmatpush1.bf16.msra.mxu0 0
    %3408 = vmatprep.subr.bf16.mxu0 0
    %3409 = vmatpush1.bf16.msra.mxu0 0
    %3410 = vmatprep.subr.bf16.mxu0 0
    %3411 = vmatpush1.bf16.msra.mxu0 0
    %3412 = vmatprep.mubr.bf16.mxu0 %v2640
    %3413 = vmatmul.mubr.bf16.gmra.mrb[0].mxu0 %v229
    %v3414 = vpop.f32.mrb[0].mxu0
    %v3415 = vadd.f32 %v3374, %v3414
    %v3416 = vpop.f32.mrb[0].mxu0
    %v3417 = vpop.f32.mrb[0].mxu0
    %v3418 = vadd.f32 %v3377, %v3417
    %v3419 = vpop.f32.mrb[0].mxu0
    %3420 = vdwg.mxu0
    %v3421 = vmul.f32 %v3415, 0.5
    %v3422 = vmul.f32 %v3418, 0.5
    %v3423 = vtanh.pop %v3421
    %v3424 = vtanh.pop %v3422
    %v3425 = vmul.f32 %v3423, 0.5
    %v3426 = vmul.f32 %v3424, 0.5
    %v3427 = vadd.f32 %v3425, 0.5
    %v3428 = vadd.f32 %v3426, 0.5
    %v3429 = vpack.c.bf16 %v3428, %v3427
    %v3430 = vld [vmem:[#allocation8] sm:$0xf]
    %v3431 = vld [vmem:[#allocation8 + $0x4] sm:$0xf]
    %v3432 = vld [vmem:[#allocation8 + $0x8] sm:$0xf]
    %v3433 = vld [vmem:[#allocation8 + $0xc] sm:$0xf]
    %v3434 = vld [vmem:[#allocation8 + $0x10] sm:$0xf]
    %v3435 = vld [vmem:[#allocation8 + $0x14] sm:$0xf]
    %v3436 = vld [vmem:[#allocation8 + $0x18] sm:$0xf]
    %v3437 = vld [vmem:[#allocation8 + $0x1c] sm:$0xf]
    %v3438 = vld [vmem:[#allocation8 + $0x20] sm:$0xf]
    %v3439 = vld [vmem:[#allocation8 + $0x24] sm:$0xf]
    %v3440 = vld [vmem:[#allocation8 + $0x28] sm:$0xf]
    %v3441 = vld [vmem:[#allocation8 + $0x2c] sm:$0xf]
    %v3442 = vld [vmem:[#allocation8 + $0x30] sm:$0xf]
    %v3443 = vld [vmem:[#allocation8 + $0x34] sm:$0xf]
    %v3444 = vld [vmem:[#allocation8 + $0x38] sm:$0xf]
    %v3445 = vld [vmem:[#allocation8 + $0x3c] sm:$0xf]
    %v3446 = vld [vmem:[#allocation10] sm:$0x1]
    %v3448 = vlaneseq
    %v3449 = vshrl.u32 %v3448, 7
    %v3450 = vsub.s32 0, %v3449
    %v3451 = vrot.slane %v3446, %v3450
    %v3469 = vunpack.c.l.b16 %v3430
    %v3470 = vunpack.c.l.b16 %v3431
    %v3471 = vunpack.c.l.b16 %v3432
    %v3472 = vunpack.c.l.b16 %v3433
    %v3473 = vunpack.c.l.b16 %v3434
    %v3474 = vunpack.c.l.b16 %v3435
    %v3475 = vunpack.c.l.b16 %v3436
    %v3476 = vunpack.c.l.b16 %v3437
    %v3477 = vunpack.c.l.b16 %v3438
    %v3478 = vunpack.c.l.b16 %v3439
    %v3479 = vunpack.c.l.b16 %v3440
    %v3480 = vunpack.c.l.b16 %v3441
    %v3481 = vunpack.c.l.b16 %v3442
    %v3482 = vunpack.c.l.b16 %v3443
    %v3483 = vunpack.c.l.b16 %v3444
    %v3484 = vunpack.c.l.b16 %v3445
    %v3485 = vpack.c.b16 %v3470, %v3469
    %v3486 = vpack.c.b16 %v3472, %v3471
    %v3487 = vpack.c.b16 %v3474, %v3473
    %v3488 = vpack.c.b16 %v3476, %v3475
    %v3489 = vpack.c.b16 %v3478, %v3477
    %v3490 = vpack.c.b16 %v3480, %v3479
    %v3491 = vpack.c.b16 %v3482, %v3481
    %v3492 = vpack.c.b16 %v3484, %v3483
    %3501 = vmatprep.subr.bf16.mxu0 0
    %3502 = vmatpush1.bf16.msra.mxu0 %v3485
    %3503 = vmatprep.subr.bf16.mxu0 0
    %3504 = vmatpush1.bf16.msra.mxu0 %v3486
    %3505 = vmatprep.subr.bf16.mxu0 0
    %3506 = vmatpush1.bf16.msra.mxu0 %v3487
    %3507 = vmatprep.subr.bf16.mxu0 0
    %3508 = vmatpush1.bf16.msra.mxu0 %v3488
    %3509 = vmatprep.subr.bf16.mxu0 0
    %3510 = vmatpush1.bf16.msra.mxu0 %v3489
    %3511 = vmatprep.subr.bf16.mxu0 0
    %3512 = vmatpush1.bf16.msra.mxu0 %v3490
    %3513 = vmatprep.subr.bf16.mxu0 0
    %3514 = vmatpush1.bf16.msra.mxu0 %v3491
    %3515 = vmatprep.subr.bf16.mxu0 0
    %3516 = vmatpush1.bf16.msra.mxu0 %v3492
    %3517 = vmatprep.subr.bf16.mxu0 0
    %3518 = vmatpush1.bf16.msra.mxu0 0
    %3519 = vmatprep.subr.bf16.mxu0 0
    %3520 = vmatpush1.bf16.msra.mxu0 0
    %3521 = vmatprep.subr.bf16.mxu0 0
    %3522 = vmatpush1.bf16.msra.mxu0 0
    %3523 = vmatprep.subr.bf16.mxu0 0
    %3524 = vmatpush1.bf16.msra.mxu0 0
    %3525 = vmatprep.subr.bf16.mxu0 0
    %3526 = vmatpush1.bf16.msra.mxu0 0
    %3527 = vmatprep.subr.bf16.mxu0 0
    %3528 = vmatpush1.bf16.msra.mxu0 0
    %3529 = vmatprep.subr.bf16.mxu0 0
    %3530 = vmatpush1.bf16.msra.mxu0 0
    %3531 = vmatprep.subr.bf16.mxu0 0
    %3532 = vmatpush1.bf16.msra.mxu0 0
    %3533 = vmatprep.mubr.bf16.mxu0 0
    %3534 = vmatmul.mubr.bf16.gmra.mrb[0].mxu0 %v3429
    %v3535 = vpop.f32.mrb[0].mxu0
    %v3536 = vadd.f32 %v3451, %v3535
    %v3537 = vpop.f32.mrb[0].mxu0
    %v3538 = vpop.f32.mrb[0].mxu0
    %v3539 = vadd.f32 %v3451, %v3538
    %v3540 = vpop.f32.mrb[0].mxu0
    %3541 = vdwg.mxu0
    %v3542 = vmul.f32 %v3536, 0.5
    %v3543 = vmul.f32 %v3539, 0.5
    %v3544 = vtanh.pop %v3542
    %v3545 = vtanh.pop %v3543
    %v3546 = vmul.f32 %v3544, 0.5
    %v3547 = vmul.f32 %v3545, 0.5
    %v3548 = vadd.f32 %v3546, 0.5
    %v3549 = vadd.f32 %v3547, 0.5
    %v3550 = vpack.c.bf16 %v3549, %v3548
    %v3551 = vld [vmem:[#allocation11] sm:$0xf]
    %v3552 = vld [vmem:[#allocation11 + $0x4] sm:$0xf]
    %v3553 = vld [vmem:[#allocation11 + $0x8] sm:$0xf]
    %v3554 = vld [vmem:[#allocation11 + $0xc] sm:$0xf]
    %v3555 = vld [vmem:[#allocation11 + $0x10] sm:$0xf]
    %v3556 = vld [vmem:[#allocation11 + $0x14] sm:$0xf]
    %v3557 = vld [vmem:[#allocation11 + $0x18] sm:$0xf]
    %v3558 = vld [vmem:[#allocation11 + $0x1c] sm:$0xf]
    %v3559 = vld [vmem:[#allocation11 + $0x20] sm:$0xf]
    %v3560 = vld [vmem:[#allocation11 + $0x24] sm:$0xf]
    %v3561 = vld [vmem:[#allocation11 + $0x28] sm:$0xf]
    %v3562 = vld [vmem:[#allocation11 + $0x2c] sm:$0xf]
    %v3563 = vld [vmem:[#allocation11 + $0x30] sm:$0xf]
    %v3564 = vld [vmem:[#allocation11 + $0x34] sm:$0xf]
    %v3565 = vld [vmem:[#allocation11 + $0x38] sm:$0xf]
    %v3566 = vld [vmem:[#allocation11 + $0x3c] sm:$0xf]
    %v3567 = vld [vmem:[#allocation13] sm:$0x1]
    %v3569 = vlaneseq
    %v3570 = vshrl.u32 %v3569, 7
    %v3571 = vsub.s32 0, %v3570
    %v3572 = vrot.slane %v3567, %v3571
    %v3590 = vunpack.c.l.b16 %v3551
    %v3591 = vunpack.c.l.b16 %v3552
    %v3592 = vunpack.c.l.b16 %v3553
    %v3593 = vunpack.c.l.b16 %v3554
    %v3594 = vunpack.c.l.b16 %v3555
    %v3595 = vunpack.c.l.b16 %v3556
    %v3596 = vunpack.c.l.b16 %v3557
    %v3597 = vunpack.c.l.b16 %v3558
    %v3598 = vunpack.c.l.b16 %v3559
    %v3599 = vunpack.c.l.b16 %v3560
    %v3600 = vunpack.c.l.b16 %v3561
    %v3601 = vunpack.c.l.b16 %v3562
    %v3602 = vunpack.c.l.b16 %v3563
    %v3603 = vunpack.c.l.b16 %v3564
    %v3604 = vunpack.c.l.b16 %v3565
    %v3605 = vunpack.c.l.b16 %v3566
    %v3606 = vpack.c.b16 %v3591, %v3590
    %v3607 = vpack.c.b16 %v3593, %v3592
    %v3608 = vpack.c.b16 %v3595, %v3594
    %v3609 = vpack.c.b16 %v3597, %v3596
    %v3610 = vpack.c.b16 %v3599, %v3598
    %v3611 = vpack.c.b16 %v3601, %v3600
    %v3612 = vpack.c.b16 %v3603, %v3602
    %v3613 = vpack.c.b16 %v3605, %v3604
    %3622 = vmatprep.subr.bf16.mxu0 0
    %3623 = vmatpush1.bf16.msra.mxu0 %v3606
    %3624 = vmatprep.subr.bf16.mxu0 0
    %3625 = vmatpush1.bf16.msra.mxu0 %v3607
    %3626 = vmatprep.subr.bf16.mxu0 0
    %3627 = vmatpush1.bf16.msra.mxu0 %v3608
    %3628 = vmatprep.subr.bf16.mxu0 0
    %3629 = vmatpush1.bf16.msra.mxu0 %v3609
    %3630 = vmatprep.subr.bf16.mxu0 0
    %3631 = vmatpush1.bf16.msra.mxu0 %v3610
    %3632 = vmatprep.subr.bf16.mxu0 0
    %3633 = vmatpush1.bf16.msra.mxu0 %v3611
    %3634 = vmatprep.subr.bf16.mxu0 0
    %3635 = vmatpush1.bf16.msra.mxu0 %v3612
    %3636 = vmatprep.subr.bf16.mxu0 0
    %3637 = vmatpush1.bf16.msra.mxu0 %v3613
    %3638 = vmatprep.subr.bf16.mxu0 0
    %3639 = vmatpush1.bf16.msra.mxu0 0
    %3640 = vmatprep.subr.bf16.mxu0 0
    %3641 = vmatpush1.bf16.msra.mxu0 0
    %3642 = vmatprep.subr.bf16.mxu0 0
    %3643 = vmatpush1.bf16.msra.mxu0 0
    %3644 = vmatprep.subr.bf16.mxu0 0
    %3645 = vmatpush1.bf16.msra.mxu0 0
    %3646 = vmatprep.subr.bf16.mxu0 0
    %3647 = vmatpush1.bf16.msra.mxu0 0
    %3648 = vmatprep.subr.bf16.mxu0 0
    %3649 = vmatpush1.bf16.msra.mxu0 0
    %3650 = vmatprep.subr.bf16.mxu0 0
    %3651 = vmatpush1.bf16.msra.mxu0 0
    %3652 = vmatprep.subr.bf16.mxu0 0
    %3653 = vmatpush1.bf16.msra.mxu0 0
    %3654 = vmatprep.mubr.bf16.mxu0 0
    %3655 = vmatmul.mubr.bf16.gmra.mrb[0].mxu0 %v3550
    %v3656 = vpop.f32.mrb[0].mxu0
    %v3657 = vadd.f32 %v3572, %v3656
    %v3658 = vpop.f32.mrb[0].mxu0
    %v3659 = vpop.f32.mrb[0].mxu0
    %v3660 = vadd.f32 %v3572, %v3659
    %v3661 = vpop.f32.mrb[0].mxu0
    %3662 = vdwg.mxu0
    %3663 = vmax.xlane.f32.xlu0 %v3657
    %v3664 = vpop.xlane.xlu0 %3663
    %3665 = vmax.xlane.f32.xlu0 %v3660
    %v3666 = vpop.xlane.xlu0 %3665
    %v3667 = vsub.f32 %v3657, %v3664
    %v3668 = vsub.f32 %v3660, %v3666
    %v3669 = vmul.f32 %v3667, 1.442695
    %v3670 = vpow.pop %v3669
    %v3671 = vmul.f32 %v3668, 1.442695
    %v3672 = vpow.pop %v3671
    %3673 = vadd.xlane.f32.xlu0 %v3670
    %v3674 = vpop.xlane.xlu0 %3673
    %3675 = vadd.xlane.f32.xlu0 %v3672
    %v3676 = vpop.xlane.xlu0 %3675
    %v3677 = vlog2.pop %v3674
    %v3678 = vmul.f32 %v3677, 0.6931472
    %v3679 = vlog2.pop %v3676
    %v3680 = vmul.f32 %v3679, 0.6931472
    %v3681 = vsub.f32 %v3667, %v3678
    %v3682 = vsub.f32 %v3668, %v3680
    %3683 = vst [vmem:[#allocation14] sm:$0xff] %v3681
    %3684 = vst [vmem:[#allocation14 + $0x8] sm:$0xff] %v3682
    // Predicated region
    $region58: #{tpu_custom_call.1} parent=1 // pred_check
      _
    $region59: #{tpu_custom_call.1} parent=1 // pred_check_branch
      %3686 = sbr.rel (0) target = $region61
    $region60: #{tpu_custom_call.1} parent=1 // pred_region
      %s3688 = ssub.s32 256, 256
      %3689 = vsyncadd [#allocation4], %s3688
      %s3690 = sshll.u32 [#allocation14], 4
      %s3691 = int_to_ptr.vmem [resolvable:$true] %s3690
      %3696 = dma.vmem_to_hbm [thread:$0]  %s3691, 256, %s7, [#allocation4], 128, 128, 8
    $region61: #{tpu_custom_call.1} parent=1 // pred_fallthru
      _
    // Predicated region
    $region62: #{tpu_custom_call.1} parent=1 // pred_check
      _
    $region63: #{tpu_custom_call.1} parent=1 // pred_check_branch
      %3698 = sbr.rel (0) target = $region65
    $region64: #{tpu_custom_call.1} parent=1 // pred_region
      %3699 = dma.done [#allocation4], 256
    $region65: #{tpu_custom_call.1} parent=1 // pred_fallthru
      _
    %3700 = vsyncpa [#allocation3], 1
    %3701 = vsyncpa [#allocation6], 1
    %3702 = vsyncpa [#allocation9], 1
    %3703 = vsyncpa [#allocation12], 1
    %3704 = vsyncpa [#allocation4], 1

</llo_original>
